<compile_context>
chip_gen: v5e
topology: v5e:2x2
jax: 0.10.0
libtpu: 0.0.40
codegen_flags: <defaults>
</compile_context>

<pallas_src>
import jax
import jax.numpy as jnp
from jax.experimental import pallas as pl
from jax.experimental.pallas import tpu as pltpu


# ----------------------------------------------------------------------------
# Kernel
# ----------------------------------------------------------------------------
def mlp_kernel(x_ref, w1_ref, b1_ref, w2_ref, b2_ref, w3_ref, b3_ref,
               o_ref, acc_ref):
    """Grid = (batch_tiles, k_tiles). Layer-1 partial products accumulate in an
    f32 VMEM scratch; bias/ReLU + layers 2-3 run in the final-K epilogue."""
    k = pl.program_id(1)

    @pl.when(k == 0)
    def _init():
        acc_ref[...] = jnp.zeros_like(acc_ref)

    # (bm, tk) @ (tk, H1) on the MXU, bf16 operands, f32 accumulation.
    acc_ref[...] += jnp.dot(x_ref[...], w1_ref[...],
                            preferred_element_type=jnp.float32)

    @pl.when(k == pl.num_programs(1) - 1)
    def _epilogue():
        rows = acc_ref.shape[0]
        chunk = rows if rows <= 128 else 128   # keep h1/h2 within the vreg file
        for r0 in range(0, rows, chunk):       # static (trace-time) loop
            h1 = jnp.maximum(acc_ref[r0:r0 + chunk, :] + b1_ref[...], 0.0)
            h2 = jnp.maximum(
                jnp.dot(h1.astype(w2_ref.dtype), w2_ref[...],
                        preferred_element_type=jnp.float32) + b2_ref[...],
                0.0)
            out = (jnp.dot(h2.astype(w3_ref.dtype), w3_ref[...],
                           preferred_element_type=jnp.float32) + b3_ref[...])
            o_ref[r0:r0 + chunk, :] = out.astype(o_ref.dtype)


# ----------------------------------------------------------------------------
# Sizing helpers
# ----------------------------------------------------------------------------
def _round_up(a, m):
    return -(-a // m) * m


def _vmem_capacity_bytes():
    try:
        return int(pltpu.get_tpu_info().vmem_capacity_bytes)
    except Exception:
        return 64 * 1024 * 1024   # conservative floor (v7x per-TC VMEM)


def _tile_bytes(bm, tk, H1, H2, O, in_bytes):
    """Estimated VMEM footprint (double-buffered pipelined blocks + scratch)."""
    return (2 * bm * tk * in_bytes               # x tiles
            + 2 * tk * H1 * in_bytes             # W1 tiles
            + 2 * (H1 * H2 + H2 * O) * in_bytes  # W2 / W3 (constant blocks)
            + 2 * (H1 + H2 + O) * 4              # biases (f32)
            + 2 * bm * O * 4                     # output tiles (f32)
            + bm * H1 * 4)                       # f32 accumulator scratch


def _pick_k_tile(K, bm, H1, H2, O, budget_bytes, in_bytes):
    cands = [c for c in (32768, 16384, 8192, 4096, 2048, 1024, 512, 256, 128)
             if c <= max(K, 128)]
    fitting = [c for c in cands
               if _tile_bytes(bm, c, H1, H2, O, in_bytes) <= budget_bytes]
    if not fitting:
        return 128
    exact = [c for c in fitting if K % c == 0]
    return exact[0] if exact else fitting[0]


# ----------------------------------------------------------------------------
# One-time parameter preparation (call at model init, NOT per forward)
# ----------------------------------------------------------------------------
def prepare_params(w1, b1, w2, b2, w3, b3, *,
                   param_dtype=jnp.bfloat16, bm_cap=512, tk=None):
    H1, K = w1.shape
    H2 = w2.shape[0]
    O = w3.shape[0]

    cap = _vmem_capacity_bytes()
    usable = int(cap * 0.8)                      # headroom for Mosaic scratch
    in_bytes = jnp.dtype(param_dtype).itemsize
    if tk is None:
        tk = _pick_k_tile(K, bm_cap, H1, H2, O, usable, in_bytes)
    Kp = _round_up(K, tk)

    return dict(
        w1t=jnp.pad(w1.T.astype(param_dtype), ((0, Kp - K), (0, 0))),  # (Kp,H1)
        b1=b1.reshape(1, H1).astype(jnp.float32),
        w2t=w2.T.astype(param_dtype),                                  # (H1,H2)
        b2=b2.reshape(1, H2).astype(jnp.float32),
        w3t=w3.T.astype(param_dtype),                                  # (H2,O)
        b3=b3.reshape(1, O).astype(jnp.float32),
        tk=int(tk), K=int(K), Kp=int(Kp),
        H1=int(H1), H2=int(H2), O=int(O),
        bm_cap=int(bm_cap), vmem_usable=int(usable),
        param_dtype=param_dtype,
    )


# ----------------------------------------------------------------------------
# Forward pass
# ----------------------------------------------------------------------------
def mlp_forward(x, params):
    """x: (B, C, D, H, W) or (B, K).  Returns (B, output_dim) float32."""
    p = params
    B = x.shape[0]
    K, Kp, tk = p["K"], p["Kp"], p["tk"]
    H1, H2, O = p["H1"], p["H2"], p["O"]

    x_flat = x.reshape(B, -1).astype(p["param_dtype"])
    assert x_flat.shape[1] == K, "input feature size mismatch"

    # Batch tile: sublane-aligned (>=16 rows for bf16), capped by bm_cap so W1
    # (re-streamed once per batch tile) is read as few times as possible.
    row_align = 16 if jnp.dtype(p["param_dtype"]).itemsize == 2 else 8
    bm = min(_round_up(max(B, row_align), row_align), p["bm_cap"])
    Bp = _round_up(B, bm)
    # TODO(synk): on v7x (2 TensorCores) a single batch tile leaves one core
    # idle; a K-split parallel axis with per-core partial accumulators would
    # recover the 2x streaming bandwidth -- omitted for simplicity.

    if Bp != B or Kp != K:
        x_flat = jnp.pad(x_flat, ((0, Bp - B), (0, Kp - K)))

    in_bytes = jnp.dtype(p["param_dtype"]).itemsize
    est = _tile_bytes(bm, tk, H1, H2, O, in_bytes)
    vmem_limit = int(min(p["vmem_usable"], est + (16 << 20)))
    vmem_limit = int(max(vmem_limit, est + (4 << 20), 32 << 20))

    grid = (Bp // bm, Kp // tk)

    out = pl.pallas_call(
        mlp_kernel,
        out_shape=jax.ShapeDtypeStruct((Bp, O), jnp.float32),
        grid_spec=pltpu.PrefetchScalarGridSpec(
            num_scalar_prefetch=0,
            grid=grid,
            in_specs=[
                pl.BlockSpec((bm, tk), lambda i, k: (i, k)),    # x tile
                pl.BlockSpec((tk, H1), lambda i, k: (k, 0)),    # W1.T tile
                pl.BlockSpec((1, H1), lambda i, k: (0, 0)),     # b1
                pl.BlockSpec((H1, H2), lambda i, k: (0, 0)),    # W2.T (resident)
                pl.BlockSpec((1, H2), lambda i, k: (0, 0)),     # b2
                pl.BlockSpec((H2, O), lambda i, k: (0, 0)),     # W3.T (resident)
                pl.BlockSpec((1, O), lambda i, k: (0, 0)),      # b3
            ],
            out_specs=pl.BlockSpec((bm, O), lambda i, k: (i, 0)),
            scratch_shapes=[pltpu.VMEM((bm, H1), jnp.float32)],
        ),
        compiler_params=pltpu.CompilerParams(
            dimension_semantics=("parallel", "arbitrary"),
            vmem_limit_bytes=vmem_limit),
    )(x_flat, p["w1t"], p["b1"], p["w2t"], p["b2"], p["w3t"], p["b3"])

    return out[:B]


def reference(x, w1, b1, w2, b2, w3, b3):
    B = x.shape[0]
    xf = x.reshape(B, -1)
    h1 = jnp.maximum(xf @ w1.T + b1, 0.0)
    h2 = jnp.maximum(h1 @ w2.T + b2, 0.0)
    return h2 @ w3.T + b3


if __name__ == "__main__":
    key = jax.random.PRNGKey(0)
    k_x, k_w1, k_b1, k_w2, k_b2, k_w3, k_b3 = jax.random.split(key, 7)

    # Small shapes consistent with the module structure:
    # (B, C, D, H, W) flatten -> Linear(K,512) -> ReLU -> Linear(512,512) -> ReLU -> Linear(512,128)
    # TODO(synk): the real module uses flatten_dim = 256*16*16*16 (=1,048,576);
    # the kernel tiles/pads K so that size works too, the demo keeps K small.
    B, C, D, H, W = 2, 4, 8, 8, 8
    K = C * D * H * W                 # 2048
    H1 = H2 = 512
    O = 128

    x = jax.random.normal(k_x, (B, C, D, H, W), dtype=jnp.float32)
    w1 = jax.random.normal(k_w1, (H1, K), dtype=jnp.float32) * (1.0 / K ** 0.5)
    b1 = jax.random.normal(k_b1, (H1,), dtype=jnp.float32) * 0.1
    w2 = jax.random.normal(k_w2, (H2, H1), dtype=jnp.float32) * (1.0 / H1 ** 0.5)
    b2 = jax.random.normal(k_b2, (H2,), dtype=jnp.float32) * 0.1
    w3 = jax.random.normal(k_w3, (O, H2), dtype=jnp.float32) * (1.0 / H2 ** 0.5)
    b3 = jax.random.normal(k_b3, (O,), dtype=jnp.float32) * 0.1

    ref = reference(x, w1, b1, w2, b2, w3, b3)

    # One-time param prep (transpose + bf16 cast + K padding) -- NOT per call.
    params = prepare_params(w1, b1, w2, b2, w3, b3)
    out = jax.block_until_ready(mlp_forward(x, params))

    # Forced small K tile to exercise the multi-step accumulation path.
    params_tiled = prepare_params(w1, b1, w2, b2, w3, b3, tk=512)
    out_tiled = jax.block_until_ready(mlp_forward(x, params_tiled))

    assert out.shape == (B, O)
    # bf16 weight/activation streaming -> slightly relaxed tolerance vs f32 ref.
    assert jnp.allclose(out, ref, atol=5e-2, rtol=5e-2), "mismatch (auto tk)"
    assert jnp.allclose(out_tiled, ref, atol=5e-2, rtol=5e-2), "mismatch (tk=512)"

    print("KERNEL_OK")
</pallas_src>

<mosaic_0001>
module attributes {stable_mosaic.version = 11 : i64} {
  func.func @mlp_kernel(%arg0: i32, %arg1: i32, %arg2: memref<16x2048xbf16, #tpu.memory_space<vmem>>, %arg3: memref<2048x512xbf16, #tpu.memory_space<vmem>>, %arg4: memref<1x512xf32, #tpu.memory_space<vmem>>, %arg5: memref<512x512xbf16, #tpu.memory_space<vmem>>, %arg6: memref<1x512xf32, #tpu.memory_space<vmem>>, %arg7: memref<512x128xbf16, #tpu.memory_space<vmem>>, %arg8: memref<1x128xf32, #tpu.memory_space<vmem>>, %arg9: memref<16x128xf32, #tpu.memory_space<vmem>>, %arg10: memref<16x512xf32, #tpu.memory_space<vmem>>) attributes {dimension_semantics = [#tpu.dimension_semantics<parallel>, #tpu.dimension_semantics<arbitrary>], iteration_bounds = array<i64: 1, 1>, scalar_prefetch = 0 : i64, scratch_operands = 1 : i64, tpu.core_type = #tpu.core_type<tc>, window_params = [{transform_indices = @transform_0, window_bounds = array<i64: 16, 2048>}, {transform_indices = @transform_1, window_bounds = array<i64: 2048, 512>}, {pipeline_mode = #tpu.pipeline_mode<synchronous>, transform_indices = @transform_2, window_bounds = array<i64: 1, 512>}, {pipeline_mode = #tpu.pipeline_mode<synchronous>, transform_indices = @transform_3, window_bounds = array<i64: 512, 512>}, {pipeline_mode = #tpu.pipeline_mode<synchronous>, transform_indices = @transform_4, window_bounds = array<i64: 1, 512>}, {pipeline_mode = #tpu.pipeline_mode<synchronous>, transform_indices = @transform_5, window_bounds = array<i64: 512, 128>}, {pipeline_mode = #tpu.pipeline_mode<synchronous>, transform_indices = @transform_6, window_bounds = array<i64: 1, 128>}, {transform_indices = @transform_7, window_bounds = array<i64: 16, 128>}]} {
    %c0_i32 = arith.constant 0 : i32
    %0 = arith.cmpi eq, %arg1, %c0_i32 : i32
    %1 = arith.extui %0 : i1 to i32
    %c0_i32_0 = arith.constant 0 : i32
    %2 = arith.cmpi ne, %1, %c0_i32_0 : i32
    scf.if %2 {
      %cst_10 = arith.constant 0.000000e+00 : f32
      %12 = vector.broadcast %cst_10 : f32 to vector<16x512xf32>
      %c0_11 = arith.constant 0 : index
      %c0_12 = arith.constant 0 : index
      %13 = vector.load %arg10[%c0_11, %c0_12] : memref<16x512xf32, #tpu.memory_space<vmem>>, vector<16x512xf32>
      tpu.vector_store %arg10[%c0_11, %c0_12], %12 {strides = array<i32>} : memref<16x512xf32, #tpu.memory_space<vmem>>, vector<16x512xf32>,
    } else {
    }
    %c0 = arith.constant 0 : index
    %c0_1 = arith.constant 0 : index
    %3 = vector.load %arg10[%c0, %c0_1] : memref<16x512xf32, #tpu.memory_space<vmem>>, vector<16x512xf32>
    %c0_2 = arith.constant 0 : index
    %c0_3 = arith.constant 0 : index
    %4 = vector.load %arg2[%c0_2, %c0_3] : memref<16x2048xbf16, #tpu.memory_space<vmem>>, vector<16x2048xbf16>
    %c0_4 = arith.constant 0 : index
    %c0_5 = arith.constant 0 : index
    %5 = vector.load %arg3[%c0_4, %c0_5] : memref<2048x512xbf16, #tpu.memory_space<vmem>>, vector<2048x512xbf16>
    %cst = arith.constant dense<0.000000e+00> : vector<16x512xf32>
    %6 = tpu.matmul %4, %5, %cst {dimension_numbers = #tpu.dot_dimension_numbers<[1], [0], [0], [1], [0, 0, 1, 1], [], []>} : vector<16x2048xbf16>, vector<2048x512xbf16>, vector<16x512xf32> -> vector<16x512xf32>
    %7 = arith.addf %3, %6 : vector<16x512xf32>
    %c0_6 = arith.constant 0 : index
    %c0_7 = arith.constant 0 : index
    %8 = vector.load %arg10[%c0_6, %c0_7] : memref<16x512xf32, #tpu.memory_space<vmem>>, vector<16x512xf32>
    tpu.vector_store %arg10[%c0_6, %c0_7], %7 {strides = array<i32>} : memref<16x512xf32, #tpu.memory_space<vmem>>, vector<16x512xf32>,
    %c0_i32_8 = arith.constant 0 : i32
    %9 = arith.cmpi eq, %arg1, %c0_i32_8 : i32
    %10 = arith.extui %9 : i1 to i32
    %c0_i32_9 = arith.constant 0 : i32
    %11 = arith.cmpi ne, %10, %c0_i32_9 : i32
    scf.if %11 {
      %c0_10 = arith.constant 0 : index
      %c0_11 = arith.constant 0 : index
      %12 = vector.load %arg10[%c0_10, %c0_11] : memref<16x512xf32, #tpu.memory_space<vmem>>, vector<16x512xf32>
      %c0_12 = arith.constant 0 : index
      %c0_13 = arith.constant 0 : index
      %13 = vector.load %arg4[%c0_12, %c0_13] : memref<1x512xf32, #tpu.memory_space<vmem>>, vector<1x512xf32>
      %14 = vector.broadcast %13 : vector<1x512xf32> to vector<16x512xf32>
      %15 = arith.addf %12, %14 : vector<16x512xf32>
      %cst_14 = arith.constant 0.000000e+00 : f32
      %16 = vector.broadcast %cst_14 : f32 to vector<16x512xf32>
      %17 = arith.maximumf %15, %16 : vector<16x512xf32>
      %18 = arith.truncf %17 : vector<16x512xf32> to vector<16x512xbf16>
      %c0_15 = arith.constant 0 : index
      %c0_16 = arith.constant 0 : index
      %19 = vector.load %arg5[%c0_15, %c0_16] : memref<512x512xbf16, #tpu.memory_space<vmem>>, vector<512x512xbf16>
      %cst_17 = arith.constant dense<0.000000e+00> : vector<16x512xf32>
      %20 = tpu.matmul %18, %19, %cst_17 {dimension_numbers = #tpu.dot_dimension_numbers<[1], [0], [0], [1], [0, 0, 1, 1], [], []>} : vector<16x512xbf16>, vector<512x512xbf16>, vector<16x512xf32> -> vector<16x512xf32>
      %c0_18 = arith.constant 0 : index
      %c0_19 = arith.constant 0 : index
      %21 = vector.load %arg6[%c0_18, %c0_19] : memref<1x512xf32, #tpu.memory_space<vmem>>, vector<1x512xf32>
      %22 = vector.broadcast %21 : vector<1x512xf32> to vector<16x512xf32>
      %23 = arith.addf %20, %22 : vector<16x512xf32>
      %cst_20 = arith.constant 0.000000e+00 : f32
      %24 = vector.broadcast %cst_20 : f32 to vector<16x512xf32>
      %25 = arith.maximumf %23, %24 : vector<16x512xf32>
      %26 = arith.truncf %25 : vector<16x512xf32> to vector<16x512xbf16>
      %c0_21 = arith.constant 0 : index
      %c0_22 = arith.constant 0 : index
      %27 = vector.load %arg7[%c0_21, %c0_22] : memref<512x128xbf16, #tpu.memory_space<vmem>>, vector<512x128xbf16>
      %cst_23 = arith.constant dense<0.000000e+00> : vector<16x128xf32>
      %28 = tpu.matmul %26, %27, %cst_23 {dimension_numbers = #tpu.dot_dimension_numbers<[1], [0], [0], [1], [0, 0, 1, 1], [], []>} : vector<16x512xbf16>, vector<512x128xbf16>, vector<16x128xf32> -> vector<16x128xf32>
      %c0_24 = arith.constant 0 : index
      %c0_25 = arith.constant 0 : index
      %29 = vector.load %arg8[%c0_24, %c0_25] : memref<1x128xf32, #tpu.memory_space<vmem>>, vector<1x128xf32>
      %30 = vector.broadcast %29 : vector<1x128xf32> to vector<16x128xf32>
      %31 = arith.addf %28, %30 : vector<16x128xf32>
      %c0_26 = arith.constant 0 : index
      %c0_27 = arith.constant 0 : index
      %32 = vector.load %arg9[%c0_26, %c0_27] : memref<16x128xf32, #tpu.memory_space<vmem>>, vector<16x128xf32>
      tpu.vector_store %arg9[%c0_26, %c0_27], %31 {strides = array<i32>} : memref<16x128xf32, #tpu.memory_space<vmem>>, vector<16x128xf32>,
    } else {
    }
    return
  }
  func.func @transform_0(%arg0: i32, %arg1: i32) -> (i32, i32) {
    %c0_i32 = arith.constant 0 : i32
    return %arg0, %arg1 : i32, i32
  }
  func.func @transform_1(%arg0: i32, %arg1: i32) -> (i32, i32) {
    %c0_i32 = arith.constant 0 : i32
    %c0_i32_0 = arith.constant 0 : i32
    return %arg1, %c0_i32 : i32, i32
  }
  func.func @transform_2(%arg0: i32, %arg1: i32) -> (i32, i32) {
    %c0_i32 = arith.constant 0 : i32
    %c0_i32_0 = arith.constant 0 : i32
    %c0_i32_1 = arith.constant 0 : i32
    return %c0_i32, %c0_i32_0 : i32, i32
  }
  func.func @transform_3(%arg0: i32, %arg1: i32) -> (i32, i32) {
    %c0_i32 = arith.constant 0 : i32
    %c0_i32_0 = arith.constant 0 : i32
    %c0_i32_1 = arith.constant 0 : i32
    return %c0_i32, %c0_i32_0 : i32, i32
  }
  func.func @transform_4(%arg0: i32, %arg1: i32) -> (i32, i32) {
    %c0_i32 = arith.constant 0 : i32
    %c0_i32_0 = arith.constant 0 : i32
    %c0_i32_1 = arith.constant 0 : i32
    return %c0_i32, %c0_i32_0 : i32, i32
  }
  func.func @transform_5(%arg0: i32, %arg1: i32) -> (i32, i32) {
    %c0_i32 = arith.constant 0 : i32
    %c0_i32_0 = arith.constant 0 : i32
    %c0_i32_1 = arith.constant 0 : i32
    return %c0_i32, %c0_i32_0 : i32, i32
  }
  func.func @transform_6(%arg0: i32, %arg1: i32) -> (i32, i32) {
    %c0_i32 = arith.constant 0 : i32
    %c0_i32_0 = arith.constant 0 : i32
    %c0_i32_1 = arith.constant 0 : i32
    return %c0_i32, %c0_i32_0 : i32, i32
  }
  func.func @transform_7(%arg0: i32, %arg1: i32) -> (i32, i32) {
    %c0_i32 = arith.constant 0 : i32
    %c0_i32_0 = arith.constant 0 : i32
    return %arg0, %c0_i32 : i32, i32
  }
}

</mosaic_0001>

<llo_original>
// kernel: tpu_custom_call.1
$region0: #{tpu_custom_call.1}
  #allocation0 [shape = 'u32[]', space=smem, size = 0x4, offset = 0x4, fixed_abs, tag = 'smem constant byte address 0x4 - core index']
  #allocation1 [shape = 'u32[72,128]{1,0:T(1,128)}', space=vmem, size = 0x9000, scoped, tag = 'internal scratch']
  #allocation2 [shape = 'f32[16,512]{1,0:T(8,128)}', space=vmem, size = 0x8000, scoped, tag = 'scratch operand']
  %s0 = inlined_call_operand.hbm [shape: bf16[16,2048], index: 0, kind: input, shape index: {}]
  %s1 = inlined_call_operand.hbm [shape: bf16[2048,512], index: 1, kind: input, shape index: {}]
  %s2 = inlined_call_operand.hbm [shape: f32[1,512], index: 2, kind: input, shape index: {}]
  %s3 = inlined_call_operand.hbm [shape: bf16[512,512], index: 3, kind: input, shape index: {}]
  %s4 = inlined_call_operand.hbm [shape: f32[1,512], index: 4, kind: input, shape index: {}]
  %s5 = inlined_call_operand.hbm [shape: bf16[512,128], index: 5, kind: input, shape index: {}]
  %s6 = inlined_call_operand.hbm [shape: f32[1,128], index: 6, kind: input, shape index: {}]
  %s7 = inlined_call_operand.hbm [shape: f32[16,128], index: 7, kind: output, shape index: {}]
  %s8 = sld [smem:[#allocation0]]
  $region74: #{tpu_custom_call.1} parent=0
    _
  %s10 = ssub.s32 1, %s8
  %s11 = scalar_select 0, %s10, %s8
  $region1: #{tpu_custom_call.1} parent=0
    #allocation3 [shape = 'u8[65536]{0}', space=vmem, size = 0x10000, scoped, tag = 'input window, operand 0, single buffered']
    #allocation4 [shape = 's32[1]{0}', space=sflag, size = 0x4, scoped, tag = 'scoped memory for tpu_custom_call.1']
    #allocation5 [shape = 's32[1]{0}', space=sflag, size = 0x4, scoped, tag = 'scoped memory for tpu_custom_call.1']
    #allocation6 [shape = 'u8[2097152]{0}', space=vmem, size = 0x200000, scoped, tag = 'input window, operand 1, single buffered']
    #allocation7 [shape = 's32[1]{0}', space=sflag, size = 0x4, scoped, tag = 'scoped memory for tpu_custom_call.1']
    #allocation8 [shape = 'u8[2048]{0}', space=vmem, size = 0x800, scoped, tag = 'input window, operand 2, single buffered']
    #allocation9 [shape = 'u8[524288]{0}', space=vmem, size = 0x80000, scoped, tag = 'input window, operand 3, single buffered']
    #allocation10 [shape = 's32[1]{0}', space=sflag, size = 0x4, scoped, tag = 'scoped memory for tpu_custom_call.1']
    #allocation11 [shape = 'u8[2048]{0}', space=vmem, size = 0x800, scoped, tag = 'input window, operand 4, single buffered']
    #allocation12 [shape = 'u8[131072]{0}', space=vmem, size = 0x20000, scoped, tag = 'input window, operand 5, single buffered']
    #allocation13 [shape = 's32[1]{0}', space=sflag, size = 0x4, scoped, tag = 'scoped memory for tpu_custom_call.1']
    #allocation14 [shape = 'u8[512]{0}', space=vmem, size = 0x400, scoped, tag = 'input window, operand 6, single buffered']
    #allocation15 [shape = 'u8[8192]{0}', space=vmem, size = 0x2000, scoped, tag = 'output window, operand 0, single buffered']
    %12 = vsyncpa [#allocation4], 0
    %13 = vsyncpa [#allocation7], 0
    %14 = vsyncpa [#allocation10], 0
    %15 = vsyncpa [#allocation13], 0
    %16 = vsyncpa [#allocation5], 0
    // Predicated region
    $region2: #{tpu_custom_call.1} parent=1 // pred_check
      _
    $region3: #{tpu_custom_call.1} parent=1 // pred_check_branch
      %18 = sbr.rel (0) target = $region5
    $region4: #{tpu_custom_call.1} parent=1 // pred_region
      %20 = vsyncadd [#allocation4], 0
      %s21 = sshll.u32 %s0, 4
      %s22 = int_to_ptr.hbm [resolvable:$true] %s21
      %s23 = sshll.u32 [#allocation3], 4
      %s24 = int_to_ptr.vmem [resolvable:$true] %s23
      %29 = dma.hbm_to_vmem [thread:$0]  %s22, 2048, %s24, [#allocation4], 1024, 1024, 64
    $region5: #{tpu_custom_call.1} parent=1 // pred_fallthru
      _
    // Predicated region
    $region6: #{tpu_custom_call.1} parent=1 // pred_check
      _
    $region7: #{tpu_custom_call.1} parent=1 // pred_check_branch
      %31 = sbr.rel (0) target = $region9
    $region8: #{tpu_custom_call.1} parent=1 // pred_region
      %33 = vsyncadd [#allocation7], 0
      %s34 = sshll.u32 %s1, 4
      %s35 = int_to_ptr.hbm [resolvable:$true] %s34
      %s36 = sshll.u32 [#allocation6], 4
      %s37 = int_to_ptr.vmem [resolvable:$true] %s36
      %42 = dma.hbm_to_vmem [thread:$0]  %s35, 65536, %s37, [#allocation7], 256, 256, 16
    $region9: #{tpu_custom_call.1} parent=1 // pred_fallthru
      _
    // Predicated region
    $region10: #{tpu_custom_call.1} parent=1 // pred_check
      _
    $region11: #{tpu_custom_call.1} parent=1 // pred_check_branch
      %44 = sbr.rel (0) target = $region13
    $region12: #{tpu_custom_call.1} parent=1 // pred_region
      %46 = vsyncadd [#allocation7], 0
      %s48 = sshll.u32 %s2, 4
      %s49 = int_to_ptr.hbm [resolvable:$true] %s48
      %s50 = sshll.u32 [#allocation8], 4
      %s51 = int_to_ptr.vmem [resolvable:$true] %s50
      %53 = dma.hbm_to_vmem [thread:$0]  %s49, 64, %s51, [#allocation7]
    $region13: #{tpu_custom_call.1} parent=1 // pred_fallthru
      _
    // Predicated region
    $region14: #{tpu_custom_call.1} parent=1 // pred_check
      _
    $region15: #{tpu_custom_call.1} parent=1 // pred_check_branch
      %55 = sbr.rel (0) target = $region17
    $region16: #{tpu_custom_call.1} parent=1 // pred_region
      %57 = vsyncadd [#allocation10], 0
      %s58 = sshll.u32 %s3, 4
      %s59 = int_to_ptr.hbm [resolvable:$true] %s58
      %s60 = sshll.u32 [#allocation9], 4
      %s61 = int_to_ptr.vmem [resolvable:$true] %s60
      %66 = dma.hbm_to_vmem [thread:$0]  %s59, 16384, %s61, [#allocation10], 256, 256, 16
    $region17: #{tpu_custom_call.1} parent=1 // pred_fallthru
      _
    // Predicated region
    $region18: #{tpu_custom_call.1} parent=1 // pred_check
      _
    $region19: #{tpu_custom_call.1} parent=1 // pred_check_branch
      %68 = sbr.rel (0) target = $region21
    $region20: #{tpu_custom_call.1} parent=1 // pred_region
      %70 = vsyncadd [#allocation10], 0
      %s72 = sshll.u32 %s4, 4
      %s73 = int_to_ptr.hbm [resolvable:$true] %s72
      %s74 = sshll.u32 [#allocation11], 4
      %s75 = int_to_ptr.vmem [resolvable:$true] %s74
      %77 = dma.hbm_to_vmem [thread:$0]  %s73, 64, %s75, [#allocation10]
    $region21: #{tpu_custom_call.1} parent=1 // pred_fallthru
      _
    // Predicated region
    $region22: #{tpu_custom_call.1} parent=1 // pred_check
      _
    $region23: #{tpu_custom_call.1} parent=1 // pred_check_branch
      %79 = sbr.rel (0) target = $region25
    $region24: #{tpu_custom_call.1} parent=1 // pred_region
      %81 = vsyncadd [#allocation13], 0
      %s82 = sshll.u32 %s5, 4
      %s83 = int_to_ptr.hbm [resolvable:$true] %s82
      %s84 = sshll.u32 [#allocation12], 4
      %s85 = int_to_ptr.vmem [resolvable:$true] %s84
      %90 = dma.hbm_to_vmem [thread:$0]  %s83, 4096, %s85, [#allocation13], 64, 64, 4
    $region25: #{tpu_custom_call.1} parent=1 // pred_fallthru
      _
    // Predicated region
    $region26: #{tpu_custom_call.1} parent=1 // pred_check
      _
    $region27: #{tpu_custom_call.1} parent=1 // pred_check_branch
      %92 = sbr.rel (0) target = $region29
    $region28: #{tpu_custom_call.1} parent=1 // pred_region
      %94 = vsyncadd [#allocation13], 0
      %s96 = sshll.u32 %s6, 4
      %s97 = int_to_ptr.hbm [resolvable:$true] %s96
      %s98 = sshll.u32 [#allocation14], 4
      %s99 = int_to_ptr.vmem [resolvable:$true] %s98
      %101 = dma.hbm_to_vmem [thread:$0]  %s97, 16, %s99, [#allocation13]
    $region29: #{tpu_custom_call.1} parent=1 // pred_fallthru
      _
    // Predicated region
    $region30: #{tpu_custom_call.1} parent=1 // pred_check
      _
    $region31: #{tpu_custom_call.1} parent=1 // pred_check_branch
      %103 = sbr.rel (0) target = $region33
    $region32: #{tpu_custom_call.1} parent=1 // pred_region
      %105 = dma.done [#allocation4], 2048
    $region33: #{tpu_custom_call.1} parent=1 // pred_fallthru
      _
    // Predicated region
    $region34: #{tpu_custom_call.1} parent=1 // pred_check
      _
    $region35: #{tpu_custom_call.1} parent=1 // pred_check_branch
      %107 = sbr.rel (0) target = $region37
    $region36: #{tpu_custom_call.1} parent=1 // pred_region
      %109 = dma.done [#allocation7], 65536
    $region37: #{tpu_custom_call.1} parent=1 // pred_fallthru
      _
    // Predicated region
    $region38: #{tpu_custom_call.1} parent=1 // pred_check
      _
    $region39: #{tpu_custom_call.1} parent=1 // pred_check_branch
      %111 = sbr.rel (0) target = $region41
    $region40: #{tpu_custom_call.1} parent=1 // pred_region
      %113 = dma.done [#allocation7], 64
    $region41: #{tpu_custom_call.1} parent=1 // pred_fallthru
      _
    // Predicated region
    $region42: #{tpu_custom_call.1} parent=1 // pred_check
      _
    $region43: #{tpu_custom_call.1} parent=1 // pred_check_branch
      %115 = sbr.rel (0) target = $region45
    $region44: #{tpu_custom_call.1} parent=1 // pred_region
      %117 = dma.done [#allocation10], 16384
    $region45: #{tpu_custom_call.1} parent=1 // pred_fallthru
      _
    // Predicated region
    $region46: #{tpu_custom_call.1} parent=1 // pred_check
      _
    $region47: #{tpu_custom_call.1} parent=1 // pred_check_branch
      %119 = sbr.rel (0) target = $region49
    $region48: #{tpu_custom_call.1} parent=1 // pred_region
      %121 = dma.done [#allocation10], 64
    $region49: #{tpu_custom_call.1} parent=1 // pred_fallthru
      _
    // Predicated region
    $region50: #{tpu_custom_call.1} parent=1 // pred_check
      _
    $region51: #{tpu_custom_call.1} parent=1 // pred_check_branch
      %123 = sbr.rel (0) target = $region53
    $region52: #{tpu_custom_call.1} parent=1 // pred_region
      %125 = dma.done [#allocation13], 4096
    $region53: #{tpu_custom_call.1} parent=1 // pred_fallthru
      _
    // Predicated region
    $region54: #{tpu_custom_call.1} parent=1 // pred_check
      _
    $region55: #{tpu_custom_call.1} parent=1 // pred_check_branch
      %127 = sbr.rel (0) target = $region57
    $region56: #{tpu_custom_call.1} parent=1 // pred_region
      %129 = dma.done [#allocation13], 16
    $region57: #{tpu_custom_call.1} parent=1 // pred_fallthru
      _
    %p130 = scmp.eq.s32.totalorder 0, 0
    // Predicated region
    $region58: #{tpu_custom_call.1} parent=1 // pred_check
      %p131 = pneg %p130
    $region59: #{tpu_custom_call.1} parent=1 // pred_check_branch
      %133 = sbr.rel (%p131) target = $region61
    $region60: #{tpu_custom_call.1} parent=1 // pred_region
      %134 = vst [vmem:[#allocation2] sm:$0xff] 0.0
      %135 = vst [vmem:[#allocation2 + $0x8] sm:$0xff] 0.0
      %136 = vst [vmem:[#allocation2 + $0x10] sm:$0xff] 0.0
      %137 = vst [vmem:[#allocation2 + $0x18] sm:$0xff] 0.0
      %138 = vst [vmem:[#allocation2 + $0x20] sm:$0xff] 0.0
      %139 = vst [vmem:[#allocation2 + $0x28] sm:$0xff] 0.0
      %140 = vst [vmem:[#allocation2 + $0x30] sm:$0xff] 0.0
      %141 = vst [vmem:[#allocation2 + $0x38] sm:$0xff] 0.0
    $region61: #{tpu_custom_call.1} parent=1 // pred_fallthru
      _
    %v142 = vld [vmem:[#allocation2] sm:$0xff]
    %v143 = vld [vmem:[#allocation2 + $0x8] sm:$0xff]
    %v144 = vld [vmem:[#allocation2 + $0x10] sm:$0xff]
    %v145 = vld [vmem:[#allocation2 + $0x18] sm:$0xff]
    %v146 = vld [vmem:[#allocation2 + $0x20] sm:$0xff]
    %v147 = vld [vmem:[#allocation2 + $0x28] sm:$0xff]
    %v148 = vld [vmem:[#allocation2 + $0x30] sm:$0xff]
    %v149 = vld [vmem:[#allocation2 + $0x38] sm:$0xff]
    %v150 = vld [vmem:[#allocation3] sm:$0xff]
    %v151 = vld [vmem:[#allocation3 + $0x8] sm:$0xff]
    %v152 = vld [vmem:[#allocation3 + $0x10] sm:$0xff]
    %v153 = vld [vmem:[#allocation3 + $0x18] sm:$0xff]
    %v154 = vld [vmem:[#allocation3 + $0x20] sm:$0xff]
    %v155 = vld [vmem:[#allocation3 + $0x28] sm:$0xff]
    %v156 = vld [vmem:[#allocation3 + $0x30] sm:$0xff]
    %v157 = vld [vmem:[#allocation3 + $0x38] sm:$0xff]
    %v158 = vld [vmem:[#allocation3 + $0x40] sm:$0xff]
    %v159 = vld [vmem:[#allocation3 + $0x48] sm:$0xff]
    %v160 = vld [vmem:[#allocation3 + $0x50] sm:$0xff]
    %v161 = vld [vmem:[#allocation3 + $0x58] sm:$0xff]
    %v162 = vld [vmem:[#allocation3 + $0x60] sm:$0xff]
    %v163 = vld [vmem:[#allocation3 + $0x68] sm:$0xff]
    %v164 = vld [vmem:[#allocation3 + $0x70] sm:$0xff]
    %v165 = vld [vmem:[#allocation3 + $0x78] sm:$0xff]
    %v166 = vld [vmem:[#allocation6] sm:$0xff]
    %v167 = vld [vmem:[#allocation6 + $0x8] sm:$0xff]
    %v168 = vld [vmem:[#allocation6 + $0x10] sm:$0xff]
    %v169 = vld [vmem:[#allocation6 + $0x18] sm:$0xff]
    %v170 = vld [vmem:[#allocation6 + $0x20] sm:$0xff]
    %v171 = vld [vmem:[#allocation6 + $0x28] sm:$0xff]
    %v172 = vld [vmem:[#allocation6 + $0x30] sm:$0xff]
    %v173 = vld [vmem:[#allocation6 + $0x38] sm:$0xff]
    %v174 = vld [vmem:[#allocation6 + $0x40] sm:$0xff]
    %v175 = vld [vmem:[#allocation6 + $0x48] sm:$0xff]
    %v176 = vld [vmem:[#allocation6 + $0x50] sm:$0xff]
    %v177 = vld [vmem:[#allocation6 + $0x58] sm:$0xff]
    %v178 = vld [vmem:[#allocation6 + $0x60] sm:$0xff]
    %v179 = vld [vmem:[#allocation6 + $0x68] sm:$0xff]
    %v180 = vld [vmem:[#allocation6 + $0x70] sm:$0xff]
    %v181 = vld [vmem:[#allocation6 + $0x78] sm:$0xff]
    %v182 = vld [vmem:[#allocation6 + $0x80] sm:$0xff]
    %v183 = vld [vmem:[#allocation6 + $0x88] sm:$0xff]
    %v184 = vld [vmem:[#allocation6 + $0x90] sm:$0xff]
    %v185 = vld [vmem:[#allocation6 + $0x98] sm:$0xff]
    %v186 = vld [vmem:[#allocation6 + $0xa0] sm:$0xff]
    %v187 = vld [vmem:[#allocation6 + $0xa8] sm:$0xff]
    %v188 = vld [vmem:[#allocation6 + $0xb0] sm:$0xff]
    %v189 = vld [vmem:[#allocation6 + $0xb8] sm:$0xff]
    %v190 = vld [vmem:[#allocation6 + $0xc0] sm:$0xff]
    %v191 = vld [vmem:[#allocation6 + $0xc8] sm:$0xff]
    %v192 = vld [vmem:[#allocation6 + $0xd0] sm:$0xff]
    %v193 = vld [vmem:[#allocation6 + $0xd8] sm:$0xff]
    %v194 = vld [vmem:[#allocation6 + $0xe0] sm:$0xff]
    %v195 = vld [vmem:[#allocation6 + $0xe8] sm:$0xff]
    %v196 = vld [vmem:[#allocation6 + $0xf0] sm:$0xff]
    %v197 = vld [vmem:[#allocation6 + $0xf8] sm:$0xff]
    %v198 = vld [vmem:[#allocation6 + $0x100] sm:$0xff]
    %v199 = vld [vmem:[#allocation6 + $0x108] sm:$0xff]
    %v200 = vld [vmem:[#allocation6 + $0x110] sm:$0xff]
    %v201 = vld [vmem:[#allocation6 + $0x118] sm:$0xff]
    %v202 = vld [vmem:[#allocation6 + $0x120] sm:$0xff]
    %v203 = vld [vmem:[#allocation6 + $0x128] sm:$0xff]
    %v204 = vld [vmem:[#allocation6 + $0x130] sm:$0xff]
    %v205 = vld [vmem:[#allocation6 + $0x138] sm:$0xff]
    %v206 = vld [vmem:[#allocation6 + $0x140] sm:$0xff]
    %v207 = vld [vmem:[#allocation6 + $0x148] sm:$0xff]
    %v208 = vld [vmem:[#allocation6 + $0x150] sm:$0xff]
    %v209 = vld [vmem:[#allocation6 + $0x158] sm:$0xff]
    %v210 = vld [vmem:[#allocation6 + $0x160] sm:$0xff]
    %v211 = vld [vmem:[#allocation6 + $0x168] sm:$0xff]
    %v212 = vld [vmem:[#allocation6 + $0x170] sm:$0xff]
    %v213 = vld [vmem:[#allocation6 + $0x178] sm:$0xff]
    %v214 = vld [vmem:[#allocation6 + $0x180] sm:$0xff]
    %v215 = vld [vmem:[#allocation6 + $0x188] sm:$0xff]
    %v216 = vld [vmem:[#allocation6 + $0x190] sm:$0xff]
    %v217 = vld [vmem:[#allocation6 + $0x198] sm:$0xff]
    %v218 = vld [vmem:[#allocation6 + $0x1a0] sm:$0xff]
    %v219 = vld [vmem:[#allocation6 + $0x1a8] sm:$0xff]
    %v220 = vld [vmem:[#allocation6 + $0x1b0] sm:$0xff]
    %v221 = vld [vmem:[#allocation6 + $0x1b8] sm:$0xff]
    %v222 = vld [vmem:[#allocation6 + $0x1c0] sm:$0xff]
    %v223 = vld [vmem:[#allocation6 + $0x1c8] sm:$0xff]
    %v224 = vld [vmem:[#allocation6 + $0x1d0] sm:$0xff]
    %v225 = vld [vmem:[#allocation6 + $0x1d8] sm:$0xff]
    %v226 = vld [vmem:[#allocation6 + $0x1e0] sm:$0xff]
    %v227 = vld [vmem:[#allocation6 + $0x1e8] sm:$0xff]
    %v228 = vld [vmem:[#allocation6 + $0x1f0] sm:$0xff]
    %v229 = vld [vmem:[#allocation6 + $0x1f8] sm:$0xff]
    %v230 = vld [vmem:[#allocation6 + $0x200] sm:$0xff]
    %v231 = vld [vmem:[#allocation6 + $0x208] sm:$0xff]
    %v232 = vld [vmem:[#allocation6 + $0x210] sm:$0xff]
    %v233 = vld [vmem:[#allocation6 + $0x218] sm:$0xff]
    %v234 = vld [vmem:[#allocation6 + $0x220] sm:$0xff]
    %v235 = vld [vmem:[#allocation6 + $0x228] sm:$0xff]
    %v236 = vld [vmem:[#allocation6 + $0x230] sm:$0xff]
    %v237 = vld [vmem:[#allocation6 + $0x238] sm:$0xff]
    %v238 = vld [vmem:[#allocation6 + $0x240] sm:$0xff]
    %v239 = vld [vmem:[#allocation6 + $0x248] sm:$0xff]
    %v240 = vld [vmem:[#allocation6 + $0x250] sm:$0xff]
    %v241 = vld [vmem:[#allocation6 + $0x258] sm:$0xff]
    %v242 = vld [vmem:[#allocation6 + $0x260] sm:$0xff]
    %v243 = vld [vmem:[#allocation6 + $0x268] sm:$0xff]
    %v244 = vld [vmem:[#allocation6 + $0x270] sm:$0xff]
    %v245 = vld [vmem:[#allocation6 + $0x278] sm:$0xff]
    %v246 = vld [vmem:[#allocation6 + $0x280] sm:$0xff]
    %v247 = vld [vmem:[#allocation6 + $0x288] sm:$0xff]
    %v248 = vld [vmem:[#allocation6 + $0x290] sm:$0xff]
    %v249 = vld [vmem:[#allocation6 + $0x298] sm:$0xff]
    %v250 = vld [vmem:[#allocation6 + $0x2a0] sm:$0xff]
    %v251 = vld [vmem:[#allocation6 + $0x2a8] sm:$0xff]
    %v252 = vld [vmem:[#allocation6 + $0x2b0] sm:$0xff]
    %v253 = vld [vmem:[#allocation6 + $0x2b8] sm:$0xff]
    %v254 = vld [vmem:[#allocation6 + $0x2c0] sm:$0xff]
    %v255 = vld [vmem:[#allocation6 + $0x2c8] sm:$0xff]
    %v256 = vld [vmem:[#allocation6 + $0x2d0] sm:$0xff]
    %v257 = vld [vmem:[#allocation6 + $0x2d8] sm:$0xff]
    %v258 = vld [vmem:[#allocation6 + $0x2e0] sm:$0xff]
    %v259 = vld [vmem:[#allocation6 + $0x2e8] sm:$0xff]
    %v260 = vld [vmem:[#allocation6 + $0x2f0] sm:$0xff]
    %v261 = vld [vmem:[#allocation6 + $0x2f8] sm:$0xff]
    %v262 = vld [vmem:[#allocation6 + $0x300] sm:$0xff]
    %v263 = vld [vmem:[#allocation6 + $0x308] sm:$0xff]
    %v264 = vld [vmem:[#allocation6 + $0x310] sm:$0xff]
    %v265 = vld [vmem:[#allocation6 + $0x318] sm:$0xff]
    %v266 = vld [vmem:[#allocation6 + $0x320] sm:$0xff]
    %v267 = vld [vmem:[#allocation6 + $0x328] sm:$0xff]
    %v268 = vld [vmem:[#allocation6 + $0x330] sm:$0xff]
    %v269 = vld [vmem:[#allocation6 + $0x338] sm:$0xff]
    %v270 = vld [vmem:[#allocation6 + $0x340] sm:$0xff]
    %v271 = vld [vmem:[#allocation6 + $0x348] sm:$0xff]
    %v272 = vld [vmem:[#allocation6 + $0x350] sm:$0xff]
    %v273 = vld [vmem:[#allocation6 + $0x358] sm:$0xff]
    %v274 = vld [vmem:[#allocation6 + $0x360] sm:$0xff]
    %v275 = vld [vmem:[#allocation6 + $0x368] sm:$0xff]
    %v276 = vld [vmem:[#allocation6 + $0x370] sm:$0xff]
    %v277 = vld [vmem:[#allocation6 + $0x378] sm:$0xff]
    %v278 = vld [vmem:[#allocation6 + $0x380] sm:$0xff]
    %v279 = vld [vmem:[#allocation6 + $0x388] sm:$0xff]
    %v280 = vld [vmem:[#allocation6 + $0x390] sm:$0xff]
    %v281 = vld [vmem:[#allocation6 + $0x398] sm:$0xff]
    %v282 = vld [vmem:[#allocation6 + $0x3a0] sm:$0xff]
    %v283 = vld [vmem:[#allocation6 + $0x3a8] sm:$0xff]
    %v284 = vld [vmem:[#allocation6 + $0x3b0] sm:$0xff]
    %v285 = vld [vmem:[#allocation6 + $0x3b8] sm:$0xff]
    %v286 = vld [vmem:[#allocation6 + $0x3c0] sm:$0xff]
    %v287 = vld [vmem:[#allocation6 + $0x3c8] sm:$0xff]
    %v288 = vld [vmem:[#allocation6 + $0x3d0] sm:$0xff]
    %v289 = vld [vmem:[#allocation6 + $0x3d8] sm:$0xff]
    %v290 = vld [vmem:[#allocation6 + $0x3e0] sm:$0xff]
    %v291 = vld [vmem:[#allocation6 + $0x3e8] sm:$0xff]
    %v292 = vld [vmem:[#allocation6 + $0x3f0] sm:$0xff]
    %v293 = vld [vmem:[#allocation6 + $0x3f8] sm:$0xff]
    %v294 = vld [vmem:[#allocation6 + $0x400] sm:$0xff]
    %v295 = vld [vmem:[#allocation6 + $0x408] sm:$0xff]
    %v296 = vld [vmem:[#allocation6 + $0x410] sm:$0xff]
    %v297 = vld [vmem:[#allocation6 + $0x418] sm:$0xff]
    %v298 = vld [vmem:[#allocation6 + $0x420] sm:$0xff]
    %v299 = vld [vmem:[#allocation6 + $0x428] sm:$0xff]
    %v300 = vld [vmem:[#allocation6 + $0x430] sm:$0xff]
    %v301 = vld [vmem:[#allocation6 + $0x438] sm:$0xff]
    %v302 = vld [vmem:[#allocation6 + $0x440] sm:$0xff]
    %v303 = vld [vmem:[#allocation6 + $0x448] sm:$0xff]
    %v304 = vld [vmem:[#allocation6 + $0x450] sm:$0xff]
    %v305 = vld [vmem:[#allocation6 + $0x458] sm:$0xff]
    %v306 = vld [vmem:[#allocation6 + $0x460] sm:$0xff]
    %v307 = vld [vmem:[#allocation6 + $0x468] sm:$0xff]
    %v308 = vld [vmem:[#allocation6 + $0x470] sm:$0xff]
    %v309 = vld [vmem:[#allocation6 + $0x478] sm:$0xff]
    %v310 = vld [vmem:[#allocation6 + $0x480] sm:$0xff]
    %v311 = vld [vmem:[#allocation6 + $0x488] sm:$0xff]
    %v312 = vld [vmem:[#allocation6 + $0x490] sm:$0xff]
    %v313 = vld [vmem:[#allocation6 + $0x498] sm:$0xff]
    %v314 = vld [vmem:[#allocation6 + $0x4a0] sm:$0xff]
    %v315 = vld [vmem:[#allocation6 + $0x4a8] sm:$0xff]
    %v316 = vld [vmem:[#allocation6 + $0x4b0] sm:$0xff]
    %v317 = vld [vmem:[#allocation6 + $0x4b8] sm:$0xff]
    %v318 = vld [vmem:[#allocation6 + $0x4c0] sm:$0xff]
    %v319 = vld [vmem:[#allocation6 + $0x4c8] sm:$0xff]
    %v320 = vld [vmem:[#allocation6 + $0x4d0] sm:$0xff]
    %v321 = vld [vmem:[#allocation6 + $0x4d8] sm:$0xff]
    %v322 = vld [vmem:[#allocation6 + $0x4e0] sm:$0xff]
    %v323 = vld [vmem:[#allocation6 + $0x4e8] sm:$0xff]
    %v324 = vld [vmem:[#allocation6 + $0x4f0] sm:$0xff]
    %v325 = vld [vmem:[#allocation6 + $0x4f8] sm:$0xff]
    %v326 = vld [vmem:[#allocation6 + $0x500] sm:$0xff]
    %v327 = vld [vmem:[#allocation6 + $0x508] sm:$0xff]
    %v328 = vld [vmem:[#allocation6 + $0x510] sm:$0xff]
    %v329 = vld [vmem:[#allocation6 + $0x518] sm:$0xff]
    %v330 = vld [vmem:[#allocation6 + $0x520] sm:$0xff]
    %v331 = vld [vmem:[#allocation6 + $0x528] sm:$0xff]
    %v332 = vld [vmem:[#allocation6 + $0x530] sm:$0xff]
    %v333 = vld [vmem:[#allocation6 + $0x538] sm:$0xff]
    %v334 = vld [vmem:[#allocation6 + $0x540] sm:$0xff]
    %v335 = vld [vmem:[#allocation6 + $0x548] sm:$0xff]
    %v336 = vld [vmem:[#allocation6 + $0x550] sm:$0xff]
    %v337 = vld [vmem:[#allocation6 + $0x558] sm:$0xff]
    %v338 = vld [vmem:[#allocation6 + $0x560] sm:$0xff]
    %v339 = vld [vmem:[#allocation6 + $0x568] sm:$0xff]
    %v340 = vld [vmem:[#allocation6 + $0x570] sm:$0xff]
    %v341 = vld [vmem:[#allocation6 + $0x578] sm:$0xff]
    %v342 = vld [vmem:[#allocation6 + $0x580] sm:$0xff]
    %v343 = vld [vmem:[#allocation6 + $0x588] sm:$0xff]
    %v344 = vld [vmem:[#allocation6 + $0x590] sm:$0xff]
    %v345 = vld [vmem:[#allocation6 + $0x598] sm:$0xff]
    %v346 = vld [vmem:[#allocation6 + $0x5a0] sm:$0xff]
    %v347 = vld [vmem:[#allocation6 + $0x5a8] sm:$0xff]
    %v348 = vld [vmem:[#allocation6 + $0x5b0] sm:$0xff]
    %v349 = vld [vmem:[#allocation6 + $0x5b8] sm:$0xff]
    %v350 = vld [vmem:[#allocation6 + $0x5c0] sm:$0xff]
    %v351 = vld [vmem:[#allocation6 + $0x5c8] sm:$0xff]
    %v352 = vld [vmem:[#allocation6 + $0x5d0] sm:$0xff]
    %v353 = vld [vmem:[#allocation6 + $0x5d8] sm:$0xff]
    %v354 = vld [vmem:[#allocation6 + $0x5e0] sm:$0xff]
    %v355 = vld [vmem:[#allocation6 + $0x5e8] sm:$0xff]
    %v356 = vld [vmem:[#allocation6 + $0x5f0] sm:$0xff]
    %v357 = vld [vmem:[#allocation6 + $0x5f8] sm:$0xff]
    %v358 = vld [vmem:[#allocation6 + $0x600] sm:$0xff]
    %v359 = vld [vmem:[#allocation6 + $0x608] sm:$0xff]
    %v360 = vld [vmem:[#allocation6 + $0x610] sm:$0xff]
    %v361 = vld [vmem:[#allocation6 + $0x618] sm:$0xff]
    %v362 = vld [vmem:[#allocation6 + $0x620] sm:$0xff]
    %v363 = vld [vmem:[#allocation6 + $0x628] sm:$0xff]
    %v364 = vld [vmem:[#allocation6 + $0x630] sm:$0xff]
    %v365 = vld [vmem:[#allocation6 + $0x638] sm:$0xff]
    %v366 = vld [vmem:[#allocation6 + $0x640] sm:$0xff]
    %v367 = vld [vmem:[#allocation6 + $0x648] sm:$0xff]
    %v368 = vld [vmem:[#allocation6 + $0x650] sm:$0xff]
    %v369 = vld [vmem:[#allocation6 + $0x658] sm:$0xff]
    %v370 = vld [vmem:[#allocation6 + $0x660] sm:$0xff]
    %v371 = vld [vmem:[#allocation6 + $0x668] sm:$0xff]
    %v372 = vld [vmem:[#allocation6 + $0x670] sm:$0xff]
    %v373 = vld [vmem:[#allocation6 + $0x678] sm:$0xff]
    %v374 = vld [vmem:[#allocation6 + $0x680] sm:$0xff]
    %v375 = vld [vmem:[#allocation6 + $0x688] sm:$0xff]
    %v376 = vld [vmem:[#allocation6 + $0x690] sm:$0xff]
    %v377 = vld [vmem:[#allocation6 + $0x698] sm:$0xff]
    %v378 = vld [vmem:[#allocation6 + $0x6a0] sm:$0xff]
    %v379 = vld [vmem:[#allocation6 + $0x6a8] sm:$0xff]
    %v380 = vld [vmem:[#allocation6 + $0x6b0] sm:$0xff]
    %v381 = vld [vmem:[#allocation6 + $0x6b8] sm:$0xff]
    %v382 = vld [vmem:[#allocation6 + $0x6c0] sm:$0xff]
    %v383 = vld [vmem:[#allocation6 + $0x6c8] sm:$0xff]
    %v384 = vld [vmem:[#allocation6 + $0x6d0] sm:$0xff]
    %v385 = vld [vmem:[#allocation6 + $0x6d8] sm:$0xff]
    %v386 = vld [vmem:[#allocation6 + $0x6e0] sm:$0xff]
    %v387 = vld [vmem:[#allocation6 + $0x6e8] sm:$0xff]
    %v388 = vld [vmem:[#allocation6 + $0x6f0] sm:$0xff]
    %v389 = vld [vmem:[#allocation6 + $0x6f8] sm:$0xff]
    %v390 = vld [vmem:[#allocation6 + $0x700] sm:$0xff]
    %v391 = vld [vmem:[#allocation6 + $0x708] sm:$0xff]
    %v392 = vld [vmem:[#allocation6 + $0x710] sm:$0xff]
    %v393 = vld [vmem:[#allocation6 + $0x718] sm:$0xff]
    %v394 = vld [vmem:[#allocation6 + $0x720] sm:$0xff]
    %v395 = vld [vmem:[#allocation6 + $0x728] sm:$0xff]
    %v396 = vld [vmem:[#allocation6 + $0x730] sm:$0xff]
    %v397 = vld [vmem:[#allocation6 + $0x738] sm:$0xff]
    %v398 = vld [vmem:[#allocation6 + $0x740] sm:$0xff]
    %v399 = vld [vmem:[#allocation6 + $0x748] sm:$0xff]
    %v400 = vld [vmem:[#allocation6 + $0x750] sm:$0xff]
    %v401 = vld [vmem:[#allocation6 + $0x758] sm:$0xff]
    %v402 = vld [vmem:[#allocation6 + $0x760] sm:$0xff]
    %v403 = vld [vmem:[#allocation6 + $0x768] sm:$0xff]
    %v404 = vld [vmem:[#allocation6 + $0x770] sm:$0xff]
    %v405 = vld [vmem:[#allocation6 + $0x778] sm:$0xff]
    %v406 = vld [vmem:[#allocation6 + $0x780] sm:$0xff]
    %v407 = vld [vmem:[#allocation6 + $0x788] sm:$0xff]
    %v408 = vld [vmem:[#allocation6 + $0x790] sm:$0xff]
    %v409 = vld [vmem:[#allocation6 + $0x798] sm:$0xff]
    %v410 = vld [vmem:[#allocation6 + $0x7a0] sm:$0xff]
    %v411 = vld [vmem:[#allocation6 + $0x7a8] sm:$0xff]
    %v412 = vld [vmem:[#allocation6 + $0x7b0] sm:$0xff]
    %v413 = vld [vmem:[#allocation6 + $0x7b8] sm:$0xff]
    %v414 = vld [vmem:[#allocation6 + $0x7c0] sm:$0xff]
    %v415 = vld [vmem:[#allocation6 + $0x7c8] sm:$0xff]
    %v416 = vld [vmem:[#allocation6 + $0x7d0] sm:$0xff]
    %v417 = vld [vmem:[#allocation6 + $0x7d8] sm:$0xff]
    %v418 = vld [vmem:[#allocation6 + $0x7e0] sm:$0xff]
    %v419 = vld [vmem:[#allocation6 + $0x7e8] sm:$0xff]
    %v420 = vld [vmem:[#allocation6 + $0x7f0] sm:$0xff]
    %v421 = vld [vmem:[#allocation6 + $0x7f8] sm:$0xff]
    %v422 = vld [vmem:[#allocation6 + $0x800] sm:$0xff]
    %v423 = vld [vmem:[#allocation6 + $0x808] sm:$0xff]
    %v424 = vld [vmem:[#allocation6 + $0x810] sm:$0xff]
    %v425 = vld [vmem:[#allocation6 + $0x818] sm:$0xff]
    %v426 = vld [vmem:[#allocation6 + $0x820] sm:$0xff]
    %v427 = vld [vmem:[#allocation6 + $0x828] sm:$0xff]
    %v428 = vld [vmem:[#allocation6 + $0x830] sm:$0xff]
    %v429 = vld [vmem:[#allocation6 + $0x838] sm:$0xff]
    %v430 = vld [vmem:[#allocation6 + $0x840] sm:$0xff]
    %v431 = vld [vmem:[#allocation6 + $0x848] sm:$0xff]
    %v432 = vld [vmem:[#allocation6 + $0x850] sm:$0xff]
    %v433 = vld [vmem:[#allocation6 + $0x858] sm:$0xff]
    %v434 = vld [vmem:[#allocation6 + $0x860] sm:$0xff]
    %v435 = vld [vmem:[#allocation6 + $0x868] sm:$0xff]
    %v436 = vld [vmem:[#allocation6 + $0x870] sm:$0xff]
    %v437 = vld [vmem:[#allocation6 + $0x878] sm:$0xff]
    %v438 = vld [vmem:[#allocation6 + $0x880] sm:$0xff]
    %v439 = vld [vmem:[#allocation6 + $0x888] sm:$0xff]
    %v440 = vld [vmem:[#allocation6 + $0x890] sm:$0xff]
    %v441 = vld [vmem:[#allocation6 + $0x898] sm:$0xff]
    %v442 = vld [vmem:[#allocation6 + $0x8a0] sm:$0xff]
    %v443 = vld [vmem:[#allocation6 + $0x8a8] sm:$0xff]
    %v444 = vld [vmem:[#allocation6 + $0x8b0] sm:$0xff]
    %v445 = vld [vmem:[#allocation6 + $0x8b8] sm:$0xff]
    %v446 = vld [vmem:[#allocation6 + $0x8c0] sm:$0xff]
    %v447 = vld [vmem:[#allocation6 + $0x8c8] sm:$0xff]
    %v448 = vld [vmem:[#allocation6 + $0x8d0] sm:$0xff]
    %v449 = vld [vmem:[#allocation6 + $0x8d8] sm:$0xff]
    %v450 = vld [vmem:[#allocation6 + $0x8e0] sm:$0xff]
    %v451 = vld [vmem:[#allocation6 + $0x8e8] sm:$0xff]
    %v452 = vld [vmem:[#allocation6 + $0x8f0] sm:$0xff]
    %v453 = vld [vmem:[#allocation6 + $0x8f8] sm:$0xff]
    %v454 = vld [vmem:[#allocation6 + $0x900] sm:$0xff]
    %v455 = vld [vmem:[#allocation6 + $0x908] sm:$0xff]
    %v456 = vld [vmem:[#allocation6 + $0x910] sm:$0xff]
    %v457 = vld [vmem:[#allocation6 + $0x918] sm:$0xff]
    %v458 = vld [vmem:[#allocation6 + $0x920] sm:$0xff]
    %v459 = vld [vmem:[#allocation6 + $0x928] sm:$0xff]
    %v460 = vld [vmem:[#allocation6 + $0x930] sm:$0xff]
    %v461 = vld [vmem:[#allocation6 + $0x938] sm:$0xff]
    %v462 = vld [vmem:[#allocation6 + $0x940] sm:$0xff]
    %v463 = vld [vmem:[#allocation6 + $0x948] sm:$0xff]
    %v464 = vld [vmem:[#allocation6 + $0x950] sm:$0xff]
    %v465 = vld [vmem:[#allocation6 + $0x958] sm:$0xff]
    %v466 = vld [vmem:[#allocation6 + $0x960] sm:$0xff]
    %v467 = vld [vmem:[#allocation6 + $0x968] sm:$0xff]
    %v468 = vld [vmem:[#allocation6 + $0x970] sm:$0xff]
    %v469 = vld [vmem:[#allocation6 + $0x978] sm:$0xff]
    %v470 = vld [vmem:[#allocation6 + $0x980] sm:$0xff]
    %v471 = vld [vmem:[#allocation6 + $0x988] sm:$0xff]
    %v472 = vld [vmem:[#allocation6 + $0x990] sm:$0xff]
    %v473 = vld [vmem:[#allocation6 + $0x998] sm:$0xff]
    %v474 = vld [vmem:[#allocation6 + $0x9a0] sm:$0xff]
    %v475 = vld [vmem:[#allocation6 + $0x9a8] sm:$0xff]
    %v476 = vld [vmem:[#allocation6 + $0x9b0] sm:$0xff]
    %v477 = vld [vmem:[#allocation6 + $0x9b8] sm:$0xff]
    %v478 = vld [vmem:[#allocation6 + $0x9c0] sm:$0xff]
    %v479 = vld [vmem:[#allocation6 + $0x9c8] sm:$0xff]
    %v480 = vld [vmem:[#allocation6 + $0x9d0] sm:$0xff]
    %v481 = vld [vmem:[#allocation6 + $0x9d8] sm:$0xff]
    %v482 = vld [vmem:[#allocation6 + $0x9e0] sm:$0xff]
    %v483 = vld [vmem:[#allocation6 + $0x9e8] sm:$0xff]
    %v484 = vld [vmem:[#allocation6 + $0x9f0] sm:$0xff]
    %v485 = vld [vmem:[#allocation6 + $0x9f8] sm:$0xff]
    %v486 = vld [vmem:[#allocation6 + $0xa00] sm:$0xff]
    %v487 = vld [vmem:[#allocation6 + $0xa08] sm:$0xff]
    %v488 = vld [vmem:[#allocation6 + $0xa10] sm:$0xff]
    %v489 = vld [vmem:[#allocation6 + $0xa18] sm:$0xff]
    %v490 = vld [vmem:[#allocation6 + $0xa20] sm:$0xff]
    %v491 = vld [vmem:[#allocation6 + $0xa28] sm:$0xff]
    %v492 = vld [vmem:[#allocation6 + $0xa30] sm:$0xff]
    %v493 = vld [vmem:[#allocation6 + $0xa38] sm:$0xff]
    %v494 = vld [vmem:[#allocation6 + $0xa40] sm:$0xff]
    %v495 = vld [vmem:[#allocation6 + $0xa48] sm:$0xff]
    %v496 = vld [vmem:[#allocation6 + $0xa50] sm:$0xff]
    %v497 = vld [vmem:[#allocation6 + $0xa58] sm:$0xff]
    %v498 = vld [vmem:[#allocation6 + $0xa60] sm:$0xff]
    %v499 = vld [vmem:[#allocation6 + $0xa68] sm:$0xff]
    %v500 = vld [vmem:[#allocation6 + $0xa70] sm:$0xff]
    %v501 = vld [vmem:[#allocation6 + $0xa78] sm:$0xff]
    %v502 = vld [vmem:[#allocation6 + $0xa80] sm:$0xff]
    %v503 = vld [vmem:[#allocation6 + $0xa88] sm:$0xff]
    %v504 = vld [vmem:[#allocation6 + $0xa90] sm:$0xff]
    %v505 = vld [vmem:[#allocation6 + $0xa98] sm:$0xff]
    %v506 = vld [vmem:[#allocation6 + $0xaa0] sm:$0xff]
    %v507 = vld [vmem:[#allocation6 + $0xaa8] sm:$0xff]
    %v508 = vld [vmem:[#allocation6 + $0xab0] sm:$0xff]
    %v509 = vld [vmem:[#allocation6 + $0xab8] sm:$0xff]
    %v510 = vld [vmem:[#allocation6 + $0xac0] sm:$0xff]
    %v511 = vld [vmem:[#allocation6 + $0xac8] sm:$0xff]
    %v512 = vld [vmem:[#allocation6 + $0xad0] sm:$0xff]
    %v513 = vld [vmem:[#allocation6 + $0xad8] sm:$0xff]
    %v514 = vld [vmem:[#allocation6 + $0xae0] sm:$0xff]
    %v515 = vld [vmem:[#allocation6 + $0xae8] sm:$0xff]
    %v516 = vld [vmem:[#allocation6 + $0xaf0] sm:$0xff]
    %v517 = vld [vmem:[#allocation6 + $0xaf8] sm:$0xff]
    %v518 = vld [vmem:[#allocation6 + $0xb00] sm:$0xff]
    %v519 = vld [vmem:[#allocation6 + $0xb08] sm:$0xff]
    %v520 = vld [vmem:[#allocation6 + $0xb10] sm:$0xff]
    %v521 = vld [vmem:[#allocation6 + $0xb18] sm:$0xff]
    %v522 = vld [vmem:[#allocation6 + $0xb20] sm:$0xff]
    %v523 = vld [vmem:[#allocation6 + $0xb28] sm:$0xff]
    %v524 = vld [vmem:[#allocation6 + $0xb30] sm:$0xff]
    %v525 = vld [vmem:[#allocation6 + $0xb38] sm:$0xff]
    %v526 = vld [vmem:[#allocation6 + $0xb40] sm:$0xff]
    %v527 = vld [vmem:[#allocation6 + $0xb48] sm:$0xff]
    %v528 = vld [vmem:[#allocation6 + $0xb50] sm:$0xff]
    %v529 = vld [vmem:[#allocation6 + $0xb58] sm:$0xff]
    %v530 = vld [vmem:[#allocation6 + $0xb60] sm:$0xff]
    %v531 = vld [vmem:[#allocation6 + $0xb68] sm:$0xff]
    %v532 = vld [vmem:[#allocation6 + $0xb70] sm:$0xff]
    %v533 = vld [vmem:[#allocation6 + $0xb78] sm:$0xff]
    %v534 = vld [vmem:[#allocation6 + $0xb80] sm:$0xff]
    %v535 = vld [vmem:[#allocation6 + $0xb88] sm:$0xff]
    %v536 = vld [vmem:[#allocation6 + $0xb90] sm:$0xff]
    %v537 = vld [vmem:[#allocation6 + $0xb98] sm:$0xff]
    %v538 = vld [vmem:[#allocation6 + $0xba0] sm:$0xff]
    %v539 = vld [vmem:[#allocation6 + $0xba8] sm:$0xff]
    %v540 = vld [vmem:[#allocation6 + $0xbb0] sm:$0xff]
    %v541 = vld [vmem:[#allocation6 + $0xbb8] sm:$0xff]
    %v542 = vld [vmem:[#allocation6 + $0xbc0] sm:$0xff]
    %v543 = vld [vmem:[#allocation6 + $0xbc8] sm:$0xff]
    %v544 = vld [vmem:[#allocation6 + $0xbd0] sm:$0xff]
    %v545 = vld [vmem:[#allocation6 + $0xbd8] sm:$0xff]
    %v546 = vld [vmem:[#allocation6 + $0xbe0] sm:$0xff]
    %v547 = vld [vmem:[#allocation6 + $0xbe8] sm:$0xff]
    %v548 = vld [vmem:[#allocation6 + $0xbf0] sm:$0xff]
    %v549 = vld [vmem:[#allocation6 + $0xbf8] sm:$0xff]
    %v550 = vld [vmem:[#allocation6 + $0xc00] sm:$0xff]
    %v551 = vld [vmem:[#allocation6 + $0xc08] sm:$0xff]
    %v552 = vld [vmem:[#allocation6 + $0xc10] sm:$0xff]
    %v553 = vld [vmem:[#allocation6 + $0xc18] sm:$0xff]
    %v554 = vld [vmem:[#allocation6 + $0xc20] sm:$0xff]
    %v555 = vld [vmem:[#allocation6 + $0xc28] sm:$0xff]
    %v556 = vld [vmem:[#allocation6 + $0xc30] sm:$0xff]
    %v557 = vld [vmem:[#allocation6 + $0xc38] sm:$0xff]
    %v558 = vld [vmem:[#allocation6 + $0xc40] sm:$0xff]
    %v559 = vld [vmem:[#allocation6 + $0xc48] sm:$0xff]
    %v560 = vld [vmem:[#allocation6 + $0xc50] sm:$0xff]
    %v561 = vld [vmem:[#allocation6 + $0xc58] sm:$0xff]
    %v562 = vld [vmem:[#allocation6 + $0xc60] sm:$0xff]
    %v563 = vld [vmem:[#allocation6 + $0xc68] sm:$0xff]
    %v564 = vld [vmem:[#allocation6 + $0xc70] sm:$0xff]
    %v565 = vld [vmem:[#allocation6 + $0xc78] sm:$0xff]
    %v566 = vld [vmem:[#allocation6 + $0xc80] sm:$0xff]
    %v567 = vld [vmem:[#allocation6 + $0xc88] sm:$0xff]
    %v568 = vld [vmem:[#allocation6 + $0xc90] sm:$0xff]
    %v569 = vld [vmem:[#allocation6 + $0xc98] sm:$0xff]
    %v570 = vld [vmem:[#allocation6 + $0xca0] sm:$0xff]
    %v571 = vld [vmem:[#allocation6 + $0xca8] sm:$0xff]
    %v572 = vld [vmem:[#allocation6 + $0xcb0] sm:$0xff]
    %v573 = vld [vmem:[#allocation6 + $0xcb8] sm:$0xff]
    %v574 = vld [vmem:[#allocation6 + $0xcc0] sm:$0xff]
    %v575 = vld [vmem:[#allocation6 + $0xcc8] sm:$0xff]
    %v576 = vld [vmem:[#allocation6 + $0xcd0] sm:$0xff]
    %v577 = vld [vmem:[#allocation6 + $0xcd8] sm:$0xff]
    %v578 = vld [vmem:[#allocation6 + $0xce0] sm:$0xff]
    %v579 = vld [vmem:[#allocation6 + $0xce8] sm:$0xff]
    %v580 = vld [vmem:[#allocation6 + $0xcf0] sm:$0xff]
    %v581 = vld [vmem:[#allocation6 + $0xcf8] sm:$0xff]
    %v582 = vld [vmem:[#allocation6 + $0xd00] sm:$0xff]
    %v583 = vld [vmem:[#allocation6 + $0xd08] sm:$0xff]
    %v584 = vld [vmem:[#allocation6 + $0xd10] sm:$0xff]
    %v585 = vld [vmem:[#allocation6 + $0xd18] sm:$0xff]
    %v586 = vld [vmem:[#allocation6 + $0xd20] sm:$0xff]
    %v587 = vld [vmem:[#allocation6 + $0xd28] sm:$0xff]
    %v588 = vld [vmem:[#allocation6 + $0xd30] sm:$0xff]
    %v589 = vld [vmem:[#allocation6 + $0xd38] sm:$0xff]
    %v590 = vld [vmem:[#allocation6 + $0xd40] sm:$0xff]
    %v591 = vld [vmem:[#allocation6 + $0xd48] sm:$0xff]
    %v592 = vld [vmem:[#allocation6 + $0xd50] sm:$0xff]
    %v593 = vld [vmem:[#allocation6 + $0xd58] sm:$0xff]
    %v594 = vld [vmem:[#allocation6 + $0xd60] sm:$0xff]
    %v595 = vld [vmem:[#allocation6 + $0xd68] sm:$0xff]
    %v596 = vld [vmem:[#allocation6 + $0xd70] sm:$0xff]
    %v597 = vld [vmem:[#allocation6 + $0xd78] sm:$0xff]
    %v598 = vld [vmem:[#allocation6 + $0xd80] sm:$0xff]
    %v599 = vld [vmem:[#allocation6 + $0xd88] sm:$0xff]
    %v600 = vld [vmem:[#allocation6 + $0xd90] sm:$0xff]
    %v601 = vld [vmem:[#allocation6 + $0xd98] sm:$0xff]
    %v602 = vld [vmem:[#allocation6 + $0xda0] sm:$0xff]
    %v603 = vld [vmem:[#allocation6 + $0xda8] sm:$0xff]
    %v604 = vld [vmem:[#allocation6 + $0xdb0] sm:$0xff]
    %v605 = vld [vmem:[#allocation6 + $0xdb8] sm:$0xff]
    %v606 = vld [vmem:[#allocation6 + $0xdc0] sm:$0xff]
    %v607 = vld [vmem:[#allocation6 + $0xdc8] sm:$0xff]
    %v608 = vld [vmem:[#allocation6 + $0xdd0] sm:$0xff]
    %v609 = vld [vmem:[#allocation6 + $0xdd8] sm:$0xff]
    %v610 = vld [vmem:[#allocation6 + $0xde0] sm:$0xff]
    %v611 = vld [vmem:[#allocation6 + $0xde8] sm:$0xff]
    %v612 = vld [vmem:[#allocation6 + $0xdf0] sm:$0xff]
    %v613 = vld [vmem:[#allocation6 + $0xdf8] sm:$0xff]
    %v614 = vld [vmem:[#allocation6 + $0xe00] sm:$0xff]
    %v615 = vld [vmem:[#allocation6 + $0xe08] sm:$0xff]
    %v616 = vld [vmem:[#allocation6 + $0xe10] sm:$0xff]
    %v617 = vld [vmem:[#allocation6 + $0xe18] sm:$0xff]
    %v618 = vld [vmem:[#allocation6 + $0xe20] sm:$0xff]
    %v619 = vld [vmem:[#allocation6 + $0xe28] sm:$0xff]
    %v620 = vld [vmem:[#allocation6 + $0xe30] sm:$0xff]
    %v621 = vld [vmem:[#allocation6 + $0xe38] sm:$0xff]
    %v622 = vld [vmem:[#allocation6 + $0xe40] sm:$0xff]
    %v623 = vld [vmem:[#allocation6 + $0xe48] sm:$0xff]
    %v624 = vld [vmem:[#allocation6 + $0xe50] sm:$0xff]
    %v625 = vld [vmem:[#allocation6 + $0xe58] sm:$0xff]
    %v626 = vld [vmem:[#allocation6 + $0xe60] sm:$0xff]
    %v627 = vld [vmem:[#allocation6 + $0xe68] sm:$0xff]
    %v628 = vld [vmem:[#allocation6 + $0xe70] sm:$0xff]
    %v629 = vld [vmem:[#allocation6 + $0xe78] sm:$0xff]
    %v630 = vld [vmem:[#allocation6 + $0xe80] sm:$0xff]
    %v631 = vld [vmem:[#allocation6 + $0xe88] sm:$0xff]
    %v632 = vld [vmem:[#allocation6 + $0xe90] sm:$0xff]
    %v633 = vld [vmem:[#allocation6 + $0xe98] sm:$0xff]
    %v634 = vld [vmem:[#allocation6 + $0xea0] sm:$0xff]
    %v635 = vld [vmem:[#allocation6 + $0xea8] sm:$0xff]
    %v636 = vld [vmem:[#allocation6 + $0xeb0] sm:$0xff]
    %v637 = vld [vmem:[#allocation6 + $0xeb8] sm:$0xff]
    %v638 = vld [vmem:[#allocation6 + $0xec0] sm:$0xff]
    %v639 = vld [vmem:[#allocation6 + $0xec8] sm:$0xff]
    %v640 = vld [vmem:[#allocation6 + $0xed0] sm:$0xff]
    %v641 = vld [vmem:[#allocation6 + $0xed8] sm:$0xff]
    %v642 = vld [vmem:[#allocation6 + $0xee0] sm:$0xff]
    %v643 = vld [vmem:[#allocation6 + $0xee8] sm:$0xff]
    %v644 = vld [vmem:[#allocation6 + $0xef0] sm:$0xff]
    %v645 = vld [vmem:[#allocation6 + $0xef8] sm:$0xff]
    %v646 = vld [vmem:[#allocation6 + $0xf00] sm:$0xff]
    %v647 = vld [vmem:[#allocation6 + $0xf08] sm:$0xff]
    %v648 = vld [vmem:[#allocation6 + $0xf10] sm:$0xff]
    %v649 = vld [vmem:[#allocation6 + $0xf18] sm:$0xff]
    %v650 = vld [vmem:[#allocation6 + $0xf20] sm:$0xff]
    %v651 = vld [vmem:[#allocation6 + $0xf28] sm:$0xff]
    %v652 = vld [vmem:[#allocation6 + $0xf30] sm:$0xff]
    %v653 = vld [vmem:[#allocation6 + $0xf38] sm:$0xff]
    %v654 = vld [vmem:[#allocation6 + $0xf40] sm:$0xff]
    %v655 = vld [vmem:[#allocation6 + $0xf48] sm:$0xff]
    %v656 = vld [vmem:[#allocation6 + $0xf50] sm:$0xff]
    %v657 = vld [vmem:[#allocation6 + $0xf58] sm:$0xff]
    %v658 = vld [vmem:[#allocation6 + $0xf60] sm:$0xff]
    %v659 = vld [vmem:[#allocation6 + $0xf68] sm:$0xff]
    %v660 = vld [vmem:[#allocation6 + $0xf70] sm:$0xff]
    %v661 = vld [vmem:[#allocation6 + $0xf78] sm:$0xff]
    %v662 = vld [vmem:[#allocation6 + $0xf80] sm:$0xff]
    %v663 = vld [vmem:[#allocation6 + $0xf88] sm:$0xff]
    %v664 = vld [vmem:[#allocation6 + $0xf90] sm:$0xff]
    %v665 = vld [vmem:[#allocation6 + $0xf98] sm:$0xff]
    %v666 = vld [vmem:[#allocation6 + $0xfa0] sm:$0xff]
    %v667 = vld [vmem:[#allocation6 + $0xfa8] sm:$0xff]
    %v668 = vld [vmem:[#allocation6 + $0xfb0] sm:$0xff]
    %v669 = vld [vmem:[#allocation6 + $0xfb8] sm:$0xff]
    %v670 = vld [vmem:[#allocation6 + $0xfc0] sm:$0xff]
    %v671 = vld [vmem:[#allocation6 + $0xfc8] sm:$0xff]
    %v672 = vld [vmem:[#allocation6 + $0xfd0] sm:$0xff]
    %v673 = vld [vmem:[#allocation6 + $0xfd8] sm:$0xff]
    %v674 = vld [vmem:[#allocation6 + $0xfe0] sm:$0xff]
    %v675 = vld [vmem:[#allocation6 + $0xfe8] sm:$0xff]
    %v676 = vld [vmem:[#allocation6 + $0xff0] sm:$0xff]
    %v677 = vld [vmem:[#allocation6 + $0xff8] sm:$0xff]
    %v694 = vunpack.c.l.b16 %v150
    %v695 = vunpack.c.h.b16 %v150
    %v696 = vunpack.c.l.b16 %v151
    %v697 = vunpack.c.h.b16 %v151
    %v698 = vunpack.c.l.b16 %v152
    %v699 = vunpack.c.h.b16 %v152
    %v700 = vunpack.c.l.b16 %v153
    %v701 = vunpack.c.h.b16 %v153
    %v702 = vunpack.c.l.b16 %v154
    %v703 = vunpack.c.h.b16 %v154
    %v704 = vunpack.c.l.b16 %v155
    %v705 = vunpack.c.h.b16 %v155
    %v706 = vunpack.c.l.b16 %v156
    %v707 = vunpack.c.h.b16 %v156
    %v708 = vunpack.c.l.b16 %v157
    %v709 = vunpack.c.h.b16 %v157
    %v710 = vunpack.c.l.b16 %v158
    %v711 = vunpack.c.h.b16 %v158
    %v712 = vunpack.c.l.b16 %v159
    %v713 = vunpack.c.h.b16 %v159
    %v714 = vunpack.c.l.b16 %v160
    %v715 = vunpack.c.h.b16 %v160
    %v716 = vunpack.c.l.b16 %v161
    %v717 = vunpack.c.h.b16 %v161
    %v718 = vunpack.c.l.b16 %v162
    %v719 = vunpack.c.h.b16 %v162
    %v720 = vunpack.c.l.b16 %v163
    %v721 = vunpack.c.h.b16 %v163
    %v722 = vunpack.c.l.b16 %v164
    %v723 = vunpack.c.h.b16 %v164
    %v724 = vunpack.c.l.b16 %v165
    %v725 = vunpack.c.h.b16 %v165
    %v726 = vpack.c.b16 %v710, %v694
    %v727 = vpack.c.b16 %v711, %v695
    %v728 = vpack.c.b16 %v712, %v696
    %v729 = vpack.c.b16 %v713, %v697
    %v730 = vpack.c.b16 %v714, %v698
    %v731 = vpack.c.b16 %v715, %v699
    %v732 = vpack.c.b16 %v716, %v700
    %v733 = vpack.c.b16 %v717, %v701
    %v734 = vpack.c.b16 %v718, %v702
    %v735 = vpack.c.b16 %v719, %v703
    %v736 = vpack.c.b16 %v720, %v704
    %v737 = vpack.c.b16 %v721, %v705
    %v738 = vpack.c.b16 %v722, %v706
    %v739 = vpack.c.b16 %v723, %v707
    %v740 = vpack.c.b16 %v724, %v708
    %v741 = vpack.c.b16 %v725, %v709
    %v1270 = vunpack.c.l.b16 %v166
    %v1271 = vunpack.c.h.b16 %v166
    %v1272 = vunpack.c.l.b16 %v167
    %v1273 = vunpack.c.h.b16 %v167
    %v1274 = vunpack.c.l.b16 %v168
    %v1275 = vunpack.c.h.b16 %v168
    %v1276 = vunpack.c.l.b16 %v169
    %v1277 = vunpack.c.h.b16 %v169
    %v1278 = vunpack.c.l.b16 %v170
    %v1279 = vunpack.c.h.b16 %v170
    %v1280 = vunpack.c.l.b16 %v171
    %v1281 = vunpack.c.h.b16 %v171
    %v1282 = vunpack.c.l.b16 %v172
    %v1283 = vunpack.c.h.b16 %v172
    %v1284 = vunpack.c.l.b16 %v173
    %v1285 = vunpack.c.h.b16 %v173
    %v1286 = vunpack.c.l.b16 %v174
    %v1287 = vunpack.c.h.b16 %v174
    %v1288 = vunpack.c.l.b16 %v175
    %v1289 = vunpack.c.h.b16 %v175
    %v1290 = vunpack.c.l.b16 %v176
    %v1291 = vunpack.c.h.b16 %v176
    %v1292 = vunpack.c.l.b16 %v177
    %v1293 = vunpack.c.h.b16 %v177
    %v1294 = vunpack.c.l.b16 %v178
    %v1295 = vunpack.c.h.b16 %v178
    %v1296 = vunpack.c.l.b16 %v179
    %v1297 = vunpack.c.h.b16 %v179
    %v1298 = vunpack.c.l.b16 %v180
    %v1299 = vunpack.c.h.b16 %v180
    %v1300 = vunpack.c.l.b16 %v181
    %v1301 = vunpack.c.h.b16 %v181
    %v1302 = vunpack.c.l.b16 %v182
    %v1303 = vunpack.c.h.b16 %v182
    %v1304 = vunpack.c.l.b16 %v183
    %v1305 = vunpack.c.h.b16 %v183
    %v1306 = vunpack.c.l.b16 %v184
    %v1307 = vunpack.c.h.b16 %v184
    %v1308 = vunpack.c.l.b16 %v185
    %v1309 = vunpack.c.h.b16 %v185
    %v1310 = vunpack.c.l.b16 %v186
    %v1311 = vunpack.c.h.b16 %v186
    %v1312 = vunpack.c.l.b16 %v187
    %v1313 = vunpack.c.h.b16 %v187
    %v1314 = vunpack.c.l.b16 %v188
    %v1315 = vunpack.c.h.b16 %v188
    %v1316 = vunpack.c.l.b16 %v189
    %v1317 = vunpack.c.h.b16 %v189
    %v1318 = vunpack.c.l.b16 %v190
    %v1319 = vunpack.c.h.b16 %v190
    %v1320 = vunpack.c.l.b16 %v191
    %v1321 = vunpack.c.h.b16 %v191
    %v1322 = vunpack.c.l.b16 %v192
    %v1323 = vunpack.c.h.b16 %v192
    %v1324 = vunpack.c.l.b16 %v193
    %v1325 = vunpack.c.h.b16 %v193
    %v1326 = vunpack.c.l.b16 %v194
    %v1327 = vunpack.c.h.b16 %v194
    %v1328 = vunpack.c.l.b16 %v195
    %v1329 = vunpack.c.h.b16 %v195
    %v1330 = vunpack.c.l.b16 %v196
    %v1331 = vunpack.c.h.b16 %v196
    %v1332 = vunpack.c.l.b16 %v197
    %v1333 = vunpack.c.h.b16 %v197
    %v1334 = vunpack.c.l.b16 %v198
    %v1335 = vunpack.c.h.b16 %v198
    %v1336 = vunpack.c.l.b16 %v199
    %v1337 = vunpack.c.h.b16 %v199
    %v1338 = vunpack.c.l.b16 %v200
    %v1339 = vunpack.c.h.b16 %v200
    %v1340 = vunpack.c.l.b16 %v201
    %v1341 = vunpack.c.h.b16 %v201
    %v1342 = vunpack.c.l.b16 %v202
    %v1343 = vunpack.c.h.b16 %v202
    %v1344 = vunpack.c.l.b16 %v203
    %v1345 = vunpack.c.h.b16 %v203
    %v1346 = vunpack.c.l.b16 %v204
    %v1347 = vunpack.c.h.b16 %v204
    %v1348 = vunpack.c.l.b16 %v205
    %v1349 = vunpack.c.h.b16 %v205
    %v1350 = vunpack.c.l.b16 %v206
    %v1351 = vunpack.c.h.b16 %v206
    %v1352 = vunpack.c.l.b16 %v207
    %v1353 = vunpack.c.h.b16 %v207
    %v1354 = vunpack.c.l.b16 %v208
    %v1355 = vunpack.c.h.b16 %v208
    %v1356 = vunpack.c.l.b16 %v209
    %v1357 = vunpack.c.h.b16 %v209
    %v1358 = vunpack.c.l.b16 %v210
    %v1359 = vunpack.c.h.b16 %v210
    %v1360 = vunpack.c.l.b16 %v211
    %v1361 = vunpack.c.h.b16 %v211
    %v1362 = vunpack.c.l.b16 %v212
    %v1363 = vunpack.c.h.b16 %v212
    %v1364 = vunpack.c.l.b16 %v213
    %v1365 = vunpack.c.h.b16 %v213
    %v1366 = vunpack.c.l.b16 %v214
    %v1367 = vunpack.c.h.b16 %v214
    %v1368 = vunpack.c.l.b16 %v215
    %v1369 = vunpack.c.h.b16 %v215
    %v1370 = vunpack.c.l.b16 %v216
    %v1371 = vunpack.c.h.b16 %v216
    %v1372 = vunpack.c.l.b16 %v217
    %v1373 = vunpack.c.h.b16 %v217
    %v1374 = vunpack.c.l.b16 %v218
    %v1375 = vunpack.c.h.b16 %v218
    %v1376 = vunpack.c.l.b16 %v219
    %v1377 = vunpack.c.h.b16 %v219
    %v1378 = vunpack.c.l.b16 %v220
    %v1379 = vunpack.c.h.b16 %v220
    %v1380 = vunpack.c.l.b16 %v221
    %v1381 = vunpack.c.h.b16 %v221
    %v1382 = vunpack.c.l.b16 %v222
    %v1383 = vunpack.c.h.b16 %v222
    %v1384 = vunpack.c.l.b16 %v223
    %v1385 = vunpack.c.h.b16 %v223
    %v1386 = vunpack.c.l.b16 %v224
    %v1387 = vunpack.c.h.b16 %v224
    %v1388 = vunpack.c.l.b16 %v225
    %v1389 = vunpack.c.h.b16 %v225
    %v1390 = vunpack.c.l.b16 %v226
    %v1391 = vunpack.c.h.b16 %v226
    %v1392 = vunpack.c.l.b16 %v227
    %v1393 = vunpack.c.h.b16 %v227
    %v1394 = vunpack.c.l.b16 %v228
    %v1395 = vunpack.c.h.b16 %v228
    %v1396 = vunpack.c.l.b16 %v229
    %v1397 = vunpack.c.h.b16 %v229
    %v1398 = vunpack.c.l.b16 %v230
    %v1399 = vunpack.c.h.b16 %v230
    %v1400 = vunpack.c.l.b16 %v231
    %v1401 = vunpack.c.h.b16 %v231
    %v1402 = vunpack.c.l.b16 %v232
    %v1403 = vunpack.c.h.b16 %v232
    %v1404 = vunpack.c.l.b16 %v233
    %v1405 = vunpack.c.h.b16 %v233
    %v1406 = vunpack.c.l.b16 %v234
    %v1407 = vunpack.c.h.b16 %v234
    %v1408 = vunpack.c.l.b16 %v235
    %v1409 = vunpack.c.h.b16 %v235
    %v1410 = vunpack.c.l.b16 %v236
    %v1411 = vunpack.c.h.b16 %v236
    %v1412 = vunpack.c.l.b16 %v237
    %v1413 = vunpack.c.h.b16 %v237
    %v1414 = vunpack.c.l.b16 %v238
    %v1415 = vunpack.c.h.b16 %v238
    %v1416 = vunpack.c.l.b16 %v239
    %v1417 = vunpack.c.h.b16 %v239
    %v1418 = vunpack.c.l.b16 %v240
    %v1419 = vunpack.c.h.b16 %v240
    %v1420 = vunpack.c.l.b16 %v241
    %v1421 = vunpack.c.h.b16 %v241
    %v1422 = vunpack.c.l.b16 %v242
    %v1423 = vunpack.c.h.b16 %v242
    %v1424 = vunpack.c.l.b16 %v243
    %v1425 = vunpack.c.h.b16 %v243
    %v1426 = vunpack.c.l.b16 %v244
    %v1427 = vunpack.c.h.b16 %v244
    %v1428 = vunpack.c.l.b16 %v245
    %v1429 = vunpack.c.h.b16 %v245
    %v1430 = vunpack.c.l.b16 %v246
    %v1431 = vunpack.c.h.b16 %v246
    %v1432 = vunpack.c.l.b16 %v247
    %v1433 = vunpack.c.h.b16 %v247
    %v1434 = vunpack.c.l.b16 %v248
    %v1435 = vunpack.c.h.b16 %v248
    %v1436 = vunpack.c.l.b16 %v249
    %v1437 = vunpack.c.h.b16 %v249
    %v1438 = vunpack.c.l.b16 %v250
    %v1439 = vunpack.c.h.b16 %v250
    %v1440 = vunpack.c.l.b16 %v251
    %v1441 = vunpack.c.h.b16 %v251
    %v1442 = vunpack.c.l.b16 %v252
    %v1443 = vunpack.c.h.b16 %v252
    %v1444 = vunpack.c.l.b16 %v253
    %v1445 = vunpack.c.h.b16 %v253
    %v1446 = vunpack.c.l.b16 %v254
    %v1447 = vunpack.c.h.b16 %v254
    %v1448 = vunpack.c.l.b16 %v255
    %v1449 = vunpack.c.h.b16 %v255
    %v1450 = vunpack.c.l.b16 %v256
    %v1451 = vunpack.c.h.b16 %v256
    %v1452 = vunpack.c.l.b16 %v257
    %v1453 = vunpack.c.h.b16 %v257
    %v1454 = vunpack.c.l.b16 %v258
    %v1455 = vunpack.c.h.b16 %v258
    %v1456 = vunpack.c.l.b16 %v259
    %v1457 = vunpack.c.h.b16 %v259
    %v1458 = vunpack.c.l.b16 %v260
    %v1459 = vunpack.c.h.b16 %v260
    %v1460 = vunpack.c.l.b16 %v261
    %v1461 = vunpack.c.h.b16 %v261
    %v1462 = vunpack.c.l.b16 %v262
    %v1463 = vunpack.c.h.b16 %v262
    %v1464 = vunpack.c.l.b16 %v263
    %v1465 = vunpack.c.h.b16 %v263
    %v1466 = vunpack.c.l.b16 %v264
    %v1467 = vunpack.c.h.b16 %v264
    %v1468 = vunpack.c.l.b16 %v265
    %v1469 = vunpack.c.h.b16 %v265
    %v1470 = vunpack.c.l.b16 %v266
    %v1471 = vunpack.c.h.b16 %v266
    %v1472 = vunpack.c.l.b16 %v267
    %v1473 = vunpack.c.h.b16 %v267
    %v1474 = vunpack.c.l.b16 %v268
    %v1475 = vunpack.c.h.b16 %v268
    %v1476 = vunpack.c.l.b16 %v269
    %v1477 = vunpack.c.h.b16 %v269
    %v1478 = vunpack.c.l.b16 %v270
    %v1479 = vunpack.c.h.b16 %v270
    %v1480 = vunpack.c.l.b16 %v271
    %v1481 = vunpack.c.h.b16 %v271
    %v1482 = vunpack.c.l.b16 %v272
    %v1483 = vunpack.c.h.b16 %v272
    %v1484 = vunpack.c.l.b16 %v273
    %v1485 = vunpack.c.h.b16 %v273
    %v1486 = vunpack.c.l.b16 %v274
    %v1487 = vunpack.c.h.b16 %v274
    %v1488 = vunpack.c.l.b16 %v275
    %v1489 = vunpack.c.h.b16 %v275
    %v1490 = vunpack.c.l.b16 %v276
    %v1491 = vunpack.c.h.b16 %v276
    %v1492 = vunpack.c.l.b16 %v277
    %v1493 = vunpack.c.h.b16 %v277
    %v1494 = vunpack.c.l.b16 %v278
    %v1495 = vunpack.c.h.b16 %v278
    %v1496 = vunpack.c.l.b16 %v279
    %v1497 = vunpack.c.h.b16 %v279
    %v1498 = vunpack.c.l.b16 %v280
    %v1499 = vunpack.c.h.b16 %v280
    %v1500 = vunpack.c.l.b16 %v281
    %v1501 = vunpack.c.h.b16 %v281
    %v1502 = vunpack.c.l.b16 %v282
    %v1503 = vunpack.c.h.b16 %v282
    %v1504 = vunpack.c.l.b16 %v283
    %v1505 = vunpack.c.h.b16 %v283
    %v1506 = vunpack.c.l.b16 %v284
    %v1507 = vunpack.c.h.b16 %v284
    %v1508 = vunpack.c.l.b16 %v285
    %v1509 = vunpack.c.h.b16 %v285
    %v1510 = vunpack.c.l.b16 %v286
    %v1511 = vunpack.c.h.b16 %v286
    %v1512 = vunpack.c.l.b16 %v287
    %v1513 = vunpack.c.h.b16 %v287
    %v1514 = vunpack.c.l.b16 %v288
    %v1515 = vunpack.c.h.b16 %v288
    %v1516 = vunpack.c.l.b16 %v289
    %v1517 = vunpack.c.h.b16 %v289
    %v1518 = vunpack.c.l.b16 %v290
    %v1519 = vunpack.c.h.b16 %v290
    %v1520 = vunpack.c.l.b16 %v291
    %v1521 = vunpack.c.h.b16 %v291
    %v1522 = vunpack.c.l.b16 %v292
    %v1523 = vunpack.c.h.b16 %v292
    %v1524 = vunpack.c.l.b16 %v293
    %v1525 = vunpack.c.h.b16 %v293
    %v1526 = vunpack.c.l.b16 %v294
    %v1527 = vunpack.c.h.b16 %v294
    %v1528 = vunpack.c.l.b16 %v295
    %v1529 = vunpack.c.h.b16 %v295
    %v1530 = vunpack.c.l.b16 %v296
    %v1531 = vunpack.c.h.b16 %v296
    %v1532 = vunpack.c.l.b16 %v297
    %v1533 = vunpack.c.h.b16 %v297
    %v1534 = vunpack.c.l.b16 %v298
    %v1535 = vunpack.c.h.b16 %v298
    %v1536 = vunpack.c.l.b16 %v299
    %v1537 = vunpack.c.h.b16 %v299
    %v1538 = vunpack.c.l.b16 %v300
    %v1539 = vunpack.c.h.b16 %v300
    %v1540 = vunpack.c.l.b16 %v301
    %v1541 = vunpack.c.h.b16 %v301
    %v1542 = vunpack.c.l.b16 %v302
    %v1543 = vunpack.c.h.b16 %v302
    %v1544 = vunpack.c.l.b16 %v303
    %v1545 = vunpack.c.h.b16 %v303
    %v1546 = vunpack.c.l.b16 %v304
    %v1547 = vunpack.c.h.b16 %v304
    %v1548 = vunpack.c.l.b16 %v305
    %v1549 = vunpack.c.h.b16 %v305
    %v1550 = vunpack.c.l.b16 %v306
    %v1551 = vunpack.c.h.b16 %v306
    %v1552 = vunpack.c.l.b16 %v307
    %v1553 = vunpack.c.h.b16 %v307
    %v1554 = vunpack.c.l.b16 %v308
    %v1555 = vunpack.c.h.b16 %v308
    %v1556 = vunpack.c.l.b16 %v309
    %v1557 = vunpack.c.h.b16 %v309
    %v1558 = vunpack.c.l.b16 %v310
    %v1559 = vunpack.c.h.b16 %v310
    %v1560 = vunpack.c.l.b16 %v311
    %v1561 = vunpack.c.h.b16 %v311
    %v1562 = vunpack.c.l.b16 %v312
    %v1563 = vunpack.c.h.b16 %v312
    %v1564 = vunpack.c.l.b16 %v313
    %v1565 = vunpack.c.h.b16 %v313
    %v1566 = vunpack.c.l.b16 %v314
    %v1567 = vunpack.c.h.b16 %v314
    %v1568 = vunpack.c.l.b16 %v315
    %v1569 = vunpack.c.h.b16 %v315
    %v1570 = vunpack.c.l.b16 %v316
    %v1571 = vunpack.c.h.b16 %v316
    %v1572 = vunpack.c.l.b16 %v317
    %v1573 = vunpack.c.h.b16 %v317
    %v1574 = vunpack.c.l.b16 %v318
    %v1575 = vunpack.c.h.b16 %v318
    %v1576 = vunpack.c.l.b16 %v319
    %v1577 = vunpack.c.h.b16 %v319
    %v1578 = vunpack.c.l.b16 %v320
    %v1579 = vunpack.c.h.b16 %v320
    %v1580 = vunpack.c.l.b16 %v321
    %v1581 = vunpack.c.h.b16 %v321
    %v1582 = vunpack.c.l.b16 %v322
    %v1583 = vunpack.c.h.b16 %v322
    %v1584 = vunpack.c.l.b16 %v323
    %v1585 = vunpack.c.h.b16 %v323
    %v1586 = vunpack.c.l.b16 %v324
    %v1587 = vunpack.c.h.b16 %v324
    %v1588 = vunpack.c.l.b16 %v325
    %v1589 = vunpack.c.h.b16 %v325
    %v1590 = vunpack.c.l.b16 %v326
    %v1591 = vunpack.c.h.b16 %v326
    %v1592 = vunpack.c.l.b16 %v327
    %v1593 = vunpack.c.h.b16 %v327
    %v1594 = vunpack.c.l.b16 %v328
    %v1595 = vunpack.c.h.b16 %v328
    %v1596 = vunpack.c.l.b16 %v329
    %v1597 = vunpack.c.h.b16 %v329
    %v1598 = vunpack.c.l.b16 %v330
    %v1599 = vunpack.c.h.b16 %v330
    %v1600 = vunpack.c.l.b16 %v331
    %v1601 = vunpack.c.h.b16 %v331
    %v1602 = vunpack.c.l.b16 %v332
    %v1603 = vunpack.c.h.b16 %v332
    %v1604 = vunpack.c.l.b16 %v333
    %v1605 = vunpack.c.h.b16 %v333
    %v1606 = vunpack.c.l.b16 %v334
    %v1607 = vunpack.c.h.b16 %v334
    %v1608 = vunpack.c.l.b16 %v335
    %v1609 = vunpack.c.h.b16 %v335
    %v1610 = vunpack.c.l.b16 %v336
    %v1611 = vunpack.c.h.b16 %v336
    %v1612 = vunpack.c.l.b16 %v337
    %v1613 = vunpack.c.h.b16 %v337
    %v1614 = vunpack.c.l.b16 %v338
    %v1615 = vunpack.c.h.b16 %v338
    %v1616 = vunpack.c.l.b16 %v339
    %v1617 = vunpack.c.h.b16 %v339
    %v1618 = vunpack.c.l.b16 %v340
    %v1619 = vunpack.c.h.b16 %v340
    %v1620 = vunpack.c.l.b16 %v341
    %v1621 = vunpack.c.h.b16 %v341
    %v1622 = vunpack.c.l.b16 %v342
    %v1623 = vunpack.c.h.b16 %v342
    %v1624 = vunpack.c.l.b16 %v343
    %v1625 = vunpack.c.h.b16 %v343
    %v1626 = vunpack.c.l.b16 %v344
    %v1627 = vunpack.c.h.b16 %v344
    %v1628 = vunpack.c.l.b16 %v345
    %v1629 = vunpack.c.h.b16 %v345
    %v1630 = vunpack.c.l.b16 %v346
    %v1631 = vunpack.c.h.b16 %v346
    %v1632 = vunpack.c.l.b16 %v347
    %v1633 = vunpack.c.h.b16 %v347
    %v1634 = vunpack.c.l.b16 %v348
    %v1635 = vunpack.c.h.b16 %v348
    %v1636 = vunpack.c.l.b16 %v349
    %v1637 = vunpack.c.h.b16 %v349
    %v1638 = vunpack.c.l.b16 %v350
    %v1639 = vunpack.c.h.b16 %v350
    %v1640 = vunpack.c.l.b16 %v351
    %v1641 = vunpack.c.h.b16 %v351
    %v1642 = vunpack.c.l.b16 %v352
    %v1643 = vunpack.c.h.b16 %v352
    %v1644 = vunpack.c.l.b16 %v353
    %v1645 = vunpack.c.h.b16 %v353
    %v1646 = vunpack.c.l.b16 %v354
    %v1647 = vunpack.c.h.b16 %v354
    %v1648 = vunpack.c.l.b16 %v355
    %v1649 = vunpack.c.h.b16 %v355
    %v1650 = vunpack.c.l.b16 %v356
    %v1651 = vunpack.c.h.b16 %v356
    %v1652 = vunpack.c.l.b16 %v357
    %v1653 = vunpack.c.h.b16 %v357
    %v1654 = vunpack.c.l.b16 %v358
    %v1655 = vunpack.c.h.b16 %v358
    %v1656 = vunpack.c.l.b16 %v359
    %v1657 = vunpack.c.h.b16 %v359
    %v1658 = vunpack.c.l.b16 %v360
    %v1659 = vunpack.c.h.b16 %v360
    %v1660 = vunpack.c.l.b16 %v361
    %v1661 = vunpack.c.h.b16 %v361
    %v1662 = vunpack.c.l.b16 %v362
    %v1663 = vunpack.c.h.b16 %v362
    %v1664 = vunpack.c.l.b16 %v363
    %v1665 = vunpack.c.h.b16 %v363
    %v1666 = vunpack.c.l.b16 %v364
    %v1667 = vunpack.c.h.b16 %v364
    %v1668 = vunpack.c.l.b16 %v365
    %v1669 = vunpack.c.h.b16 %v365
    %v1670 = vunpack.c.l.b16 %v366
    %v1671 = vunpack.c.h.b16 %v366
    %v1672 = vunpack.c.l.b16 %v367
    %v1673 = vunpack.c.h.b16 %v367
    %v1674 = vunpack.c.l.b16 %v368
    %v1675 = vunpack.c.h.b16 %v368
    %v1676 = vunpack.c.l.b16 %v369
    %v1677 = vunpack.c.h.b16 %v369
    %v1678 = vunpack.c.l.b16 %v370
    %v1679 = vunpack.c.h.b16 %v370
    %v1680 = vunpack.c.l.b16 %v371
    %v1681 = vunpack.c.h.b16 %v371
    %v1682 = vunpack.c.l.b16 %v372
    %v1683 = vunpack.c.h.b16 %v372
    %v1684 = vunpack.c.l.b16 %v373
    %v1685 = vunpack.c.h.b16 %v373
    %v1686 = vunpack.c.l.b16 %v374
    %v1687 = vunpack.c.h.b16 %v374
    %v1688 = vunpack.c.l.b16 %v375
    %v1689 = vunpack.c.h.b16 %v375
    %v1690 = vunpack.c.l.b16 %v376
    %v1691 = vunpack.c.h.b16 %v376
    %v1692 = vunpack.c.l.b16 %v377
    %v1693 = vunpack.c.h.b16 %v377
    %v1694 = vunpack.c.l.b16 %v378
    %v1695 = vunpack.c.h.b16 %v378
    %v1696 = vunpack.c.l.b16 %v379
    %v1697 = vunpack.c.h.b16 %v379
    %v1698 = vunpack.c.l.b16 %v380
    %v1699 = vunpack.c.h.b16 %v380
    %v1700 = vunpack.c.l.b16 %v381
    %v1701 = vunpack.c.h.b16 %v381
    %v1702 = vunpack.c.l.b16 %v382
    %v1703 = vunpack.c.h.b16 %v382
    %v1704 = vunpack.c.l.b16 %v383
    %v1705 = vunpack.c.h.b16 %v383
    %v1706 = vunpack.c.l.b16 %v384
    %v1707 = vunpack.c.h.b16 %v384
    %v1708 = vunpack.c.l.b16 %v385
    %v1709 = vunpack.c.h.b16 %v385
    %v1710 = vunpack.c.l.b16 %v386
    %v1711 = vunpack.c.h.b16 %v386
    %v1712 = vunpack.c.l.b16 %v387
    %v1713 = vunpack.c.h.b16 %v387
    %v1714 = vunpack.c.l.b16 %v388
    %v1715 = vunpack.c.h.b16 %v388
    %v1716 = vunpack.c.l.b16 %v389
    %v1717 = vunpack.c.h.b16 %v389
    %v1718 = vunpack.c.l.b16 %v390
    %v1719 = vunpack.c.h.b16 %v390
    %v1720 = vunpack.c.l.b16 %v391
    %v1721 = vunpack.c.h.b16 %v391
    %v1722 = vunpack.c.l.b16 %v392
    %v1723 = vunpack.c.h.b16 %v392
    %v1724 = vunpack.c.l.b16 %v393
    %v1725 = vunpack.c.h.b16 %v393
    %v1726 = vunpack.c.l.b16 %v394
    %v1727 = vunpack.c.h.b16 %v394
    %v1728 = vunpack.c.l.b16 %v395
    %v1729 = vunpack.c.h.b16 %v395
    %v1730 = vunpack.c.l.b16 %v396
    %v1731 = vunpack.c.h.b16 %v396
    %v1732 = vunpack.c.l.b16 %v397
    %v1733 = vunpack.c.h.b16 %v397
    %v1734 = vunpack.c.l.b16 %v398
    %v1735 = vunpack.c.h.b16 %v398
    %v1736 = vunpack.c.l.b16 %v399
    %v1737 = vunpack.c.h.b16 %v399
    %v1738 = vunpack.c.l.b16 %v400
    %v1739 = vunpack.c.h.b16 %v400
    %v1740 = vunpack.c.l.b16 %v401
    %v1741 = vunpack.c.h.b16 %v401
    %v1742 = vunpack.c.l.b16 %v402
    %v1743 = vunpack.c.h.b16 %v402
    %v1744 = vunpack.c.l.b16 %v403
    %v1745 = vunpack.c.h.b16 %v403
    %v1746 = vunpack.c.l.b16 %v404
    %v1747 = vunpack.c.h.b16 %v404
    %v1748 = vunpack.c.l.b16 %v405
    %v1749 = vunpack.c.h.b16 %v405
    %v1750 = vunpack.c.l.b16 %v406
    %v1751 = vunpack.c.h.b16 %v406
    %v1752 = vunpack.c.l.b16 %v407
    %v1753 = vunpack.c.h.b16 %v407
    %v1754 = vunpack.c.l.b16 %v408
    %v1755 = vunpack.c.h.b16 %v408
    %v1756 = vunpack.c.l.b16 %v409
    %v1757 = vunpack.c.h.b16 %v409
    %v1758 = vunpack.c.l.b16 %v410
    %v1759 = vunpack.c.h.b16 %v410
    %v1760 = vunpack.c.l.b16 %v411
    %v1761 = vunpack.c.h.b16 %v411
    %v1762 = vunpack.c.l.b16 %v412
    %v1763 = vunpack.c.h.b16 %v412
    %v1764 = vunpack.c.l.b16 %v413
    %v1765 = vunpack.c.h.b16 %v413
    %v1766 = vunpack.c.l.b16 %v414
    %v1767 = vunpack.c.h.b16 %v414
    %v1768 = vunpack.c.l.b16 %v415
    %v1769 = vunpack.c.h.b16 %v415
    %v1770 = vunpack.c.l.b16 %v416
    %v1771 = vunpack.c.h.b16 %v416
    %v1772 = vunpack.c.l.b16 %v417
    %v1773 = vunpack.c.h.b16 %v417
    %v1774 = vunpack.c.l.b16 %v418
    %v1775 = vunpack.c.h.b16 %v418
    %v1776 = vunpack.c.l.b16 %v419
    %v1777 = vunpack.c.h.b16 %v419
    %v1778 = vunpack.c.l.b16 %v420
    %v1779 = vunpack.c.h.b16 %v420
    %v1780 = vunpack.c.l.b16 %v421
    %v1781 = vunpack.c.h.b16 %v421
    %v1782 = vunpack.c.l.b16 %v422
    %v1783 = vunpack.c.h.b16 %v422
    %v1784 = vunpack.c.l.b16 %v423
    %v1785 = vunpack.c.h.b16 %v423
    %v1786 = vunpack.c.l.b16 %v424
    %v1787 = vunpack.c.h.b16 %v424
    %v1788 = vunpack.c.l.b16 %v425
    %v1789 = vunpack.c.h.b16 %v425
    %v1790 = vunpack.c.l.b16 %v426
    %v1791 = vunpack.c.h.b16 %v426
    %v1792 = vunpack.c.l.b16 %v427
    %v1793 = vunpack.c.h.b16 %v427
    %v1794 = vunpack.c.l.b16 %v428
    %v1795 = vunpack.c.h.b16 %v428
    %v1796 = vunpack.c.l.b16 %v429
    %v1797 = vunpack.c.h.b16 %v429
    %v1798 = vunpack.c.l.b16 %v430
    %v1799 = vunpack.c.h.b16 %v430
    %v1800 = vunpack.c.l.b16 %v431
    %v1801 = vunpack.c.h.b16 %v431
    %v1802 = vunpack.c.l.b16 %v432
    %v1803 = vunpack.c.h.b16 %v432
    %v1804 = vunpack.c.l.b16 %v433
    %v1805 = vunpack.c.h.b16 %v433
    %v1806 = vunpack.c.l.b16 %v434
    %v1807 = vunpack.c.h.b16 %v434
    %v1808 = vunpack.c.l.b16 %v435
    %v1809 = vunpack.c.h.b16 %v435
    %v1810 = vunpack.c.l.b16 %v436
    %v1811 = vunpack.c.h.b16 %v436
    %v1812 = vunpack.c.l.b16 %v437
    %v1813 = vunpack.c.h.b16 %v437
    %v1814 = vunpack.c.l.b16 %v438
    %v1815 = vunpack.c.h.b16 %v438
    %v1816 = vunpack.c.l.b16 %v439
    %v1817 = vunpack.c.h.b16 %v439
    %v1818 = vunpack.c.l.b16 %v440
    %v1819 = vunpack.c.h.b16 %v440
    %v1820 = vunpack.c.l.b16 %v441
    %v1821 = vunpack.c.h.b16 %v441
    %v1822 = vunpack.c.l.b16 %v442
    %v1823 = vunpack.c.h.b16 %v442
    %v1824 = vunpack.c.l.b16 %v443
    %v1825 = vunpack.c.h.b16 %v443
    %v1826 = vunpack.c.l.b16 %v444
    %v1827 = vunpack.c.h.b16 %v444
    %v1828 = vunpack.c.l.b16 %v445
    %v1829 = vunpack.c.h.b16 %v445
    %v1830 = vunpack.c.l.b16 %v446
    %v1831 = vunpack.c.h.b16 %v446
    %v1832 = vunpack.c.l.b16 %v447
    %v1833 = vunpack.c.h.b16 %v447
    %v1834 = vunpack.c.l.b16 %v448
    %v1835 = vunpack.c.h.b16 %v448
    %v1836 = vunpack.c.l.b16 %v449
    %v1837 = vunpack.c.h.b16 %v449
    %v1838 = vunpack.c.l.b16 %v450
    %v1839 = vunpack.c.h.b16 %v450
    %v1840 = vunpack.c.l.b16 %v451
    %v1841 = vunpack.c.h.b16 %v451
    %v1842 = vunpack.c.l.b16 %v452
    %v1843 = vunpack.c.h.b16 %v452
    %v1844 = vunpack.c.l.b16 %v453
    %v1845 = vunpack.c.h.b16 %v453
    %v1846 = vunpack.c.l.b16 %v454
    %v1847 = vunpack.c.h.b16 %v454
    %v1848 = vunpack.c.l.b16 %v455
    %v1849 = vunpack.c.h.b16 %v455
    %v1850 = vunpack.c.l.b16 %v456
    %v1851 = vunpack.c.h.b16 %v456
    %v1852 = vunpack.c.l.b16 %v457
    %v1853 = vunpack.c.h.b16 %v457
    %v1854 = vunpack.c.l.b16 %v458
    %v1855 = vunpack.c.h.b16 %v458
    %v1856 = vunpack.c.l.b16 %v459
    %v1857 = vunpack.c.h.b16 %v459
    %v1858 = vunpack.c.l.b16 %v460
    %v1859 = vunpack.c.h.b16 %v460
    %v1860 = vunpack.c.l.b16 %v461
    %v1861 = vunpack.c.h.b16 %v461
    %v1862 = vunpack.c.l.b16 %v462
    %v1863 = vunpack.c.h.b16 %v462
    %v1864 = vunpack.c.l.b16 %v463
    %v1865 = vunpack.c.h.b16 %v463
    %v1866 = vunpack.c.l.b16 %v464
    %v1867 = vunpack.c.h.b16 %v464
    %v1868 = vunpack.c.l.b16 %v465
    %v1869 = vunpack.c.h.b16 %v465
    %v1870 = vunpack.c.l.b16 %v466
    %v1871 = vunpack.c.h.b16 %v466
    %v1872 = vunpack.c.l.b16 %v467
    %v1873 = vunpack.c.h.b16 %v467
    %v1874 = vunpack.c.l.b16 %v468
    %v1875 = vunpack.c.h.b16 %v468
    %v1876 = vunpack.c.l.b16 %v469
    %v1877 = vunpack.c.h.b16 %v469
    %v1878 = vunpack.c.l.b16 %v470
    %v1879 = vunpack.c.h.b16 %v470
    %v1880 = vunpack.c.l.b16 %v471
    %v1881 = vunpack.c.h.b16 %v471
    %v1882 = vunpack.c.l.b16 %v472
    %v1883 = vunpack.c.h.b16 %v472
    %v1884 = vunpack.c.l.b16 %v473
    %v1885 = vunpack.c.h.b16 %v473
    %v1886 = vunpack.c.l.b16 %v474
    %v1887 = vunpack.c.h.b16 %v474
    %v1888 = vunpack.c.l.b16 %v475
    %v1889 = vunpack.c.h.b16 %v475
    %v1890 = vunpack.c.l.b16 %v476
    %v1891 = vunpack.c.h.b16 %v476
    %v1892 = vunpack.c.l.b16 %v477
    %v1893 = vunpack.c.h.b16 %v477
    %v1894 = vunpack.c.l.b16 %v478
    %v1895 = vunpack.c.h.b16 %v478
    %v1896 = vunpack.c.l.b16 %v479
    %v1897 = vunpack.c.h.b16 %v479
    %v1898 = vunpack.c.l.b16 %v480
    %v1899 = vunpack.c.h.b16 %v480
    %v1900 = vunpack.c.l.b16 %v481
    %v1901 = vunpack.c.h.b16 %v481
    %v1902 = vunpack.c.l.b16 %v482
    %v1903 = vunpack.c.h.b16 %v482
    %v1904 = vunpack.c.l.b16 %v483
    %v1905 = vunpack.c.h.b16 %v483
    %v1906 = vunpack.c.l.b16 %v484
    %v1907 = vunpack.c.h.b16 %v484
    %v1908 = vunpack.c.l.b16 %v485
    %v1909 = vunpack.c.h.b16 %v485
    %v1910 = vunpack.c.l.b16 %v486
    %v1911 = vunpack.c.h.b16 %v486
    %v1912 = vunpack.c.l.b16 %v487
    %v1913 = vunpack.c.h.b16 %v487
    %v1914 = vunpack.c.l.b16 %v488
    %v1915 = vunpack.c.h.b16 %v488
    %v1916 = vunpack.c.l.b16 %v489
    %v1917 = vunpack.c.h.b16 %v489
    %v1918 = vunpack.c.l.b16 %v490
    %v1919 = vunpack.c.h.b16 %v490
    %v1920 = vunpack.c.l.b16 %v491
    %v1921 = vunpack.c.h.b16 %v491
    %v1922 = vunpack.c.l.b16 %v492
    %v1923 = vunpack.c.h.b16 %v492
    %v1924 = vunpack.c.l.b16 %v493
    %v1925 = vunpack.c.h.b16 %v493
    %v1926 = vunpack.c.l.b16 %v494
    %v1927 = vunpack.c.h.b16 %v494
    %v1928 = vunpack.c.l.b16 %v495
    %v1929 = vunpack.c.h.b16 %v495
    %v1930 = vunpack.c.l.b16 %v496
    %v1931 = vunpack.c.h.b16 %v496
    %v1932 = vunpack.c.l.b16 %v497
    %v1933 = vunpack.c.h.b16 %v497
    %v1934 = vunpack.c.l.b16 %v498
    %v1935 = vunpack.c.h.b16 %v498
    %v1936 = vunpack.c.l.b16 %v499
    %v1937 = vunpack.c.h.b16 %v499
    %v1938 = vunpack.c.l.b16 %v500
    %v1939 = vunpack.c.h.b16 %v500
    %v1940 = vunpack.c.l.b16 %v501
    %v1941 = vunpack.c.h.b16 %v501
    %v1942 = vunpack.c.l.b16 %v502
    %v1943 = vunpack.c.h.b16 %v502
    %v1944 = vunpack.c.l.b16 %v503
    %v1945 = vunpack.c.h.b16 %v503
    %v1946 = vunpack.c.l.b16 %v504
    %v1947 = vunpack.c.h.b16 %v504
    %v1948 = vunpack.c.l.b16 %v505
    %v1949 = vunpack.c.h.b16 %v505
    %v1950 = vunpack.c.l.b16 %v506
    %v1951 = vunpack.c.h.b16 %v506
    %v1952 = vunpack.c.l.b16 %v507
    %v1953 = vunpack.c.h.b16 %v507
    %v1954 = vunpack.c.l.b16 %v508
    %v1955 = vunpack.c.h.b16 %v508
    %v1956 = vunpack.c.l.b16 %v509
    %v1957 = vunpack.c.h.b16 %v509
    %v1958 = vunpack.c.l.b16 %v510
    %v1959 = vunpack.c.h.b16 %v510
    %v1960 = vunpack.c.l.b16 %v511
    %v1961 = vunpack.c.h.b16 %v511
    %v1962 = vunpack.c.l.b16 %v512
    %v1963 = vunpack.c.h.b16 %v512
    %v1964 = vunpack.c.l.b16 %v513
    %v1965 = vunpack.c.h.b16 %v513
    %v1966 = vunpack.c.l.b16 %v514
    %v1967 = vunpack.c.h.b16 %v514
    %v1968 = vunpack.c.l.b16 %v515
    %v1969 = vunpack.c.h.b16 %v515
    %v1970 = vunpack.c.l.b16 %v516
    %v1971 = vunpack.c.h.b16 %v516
    %v1972 = vunpack.c.l.b16 %v517
    %v1973 = vunpack.c.h.b16 %v517
    %v1974 = vunpack.c.l.b16 %v518
    %v1975 = vunpack.c.h.b16 %v518
    %v1976 = vunpack.c.l.b16 %v519
    %v1977 = vunpack.c.h.b16 %v519
    %v1978 = vunpack.c.l.b16 %v520
    %v1979 = vunpack.c.h.b16 %v520
    %v1980 = vunpack.c.l.b16 %v521
    %v1981 = vunpack.c.h.b16 %v521
    %v1982 = vunpack.c.l.b16 %v522
    %v1983 = vunpack.c.h.b16 %v522
    %v1984 = vunpack.c.l.b16 %v523
    %v1985 = vunpack.c.h.b16 %v523
    %v1986 = vunpack.c.l.b16 %v524
    %v1987 = vunpack.c.h.b16 %v524
    %v1988 = vunpack.c.l.b16 %v525
    %v1989 = vunpack.c.h.b16 %v525
    %v1990 = vunpack.c.l.b16 %v526
    %v1991 = vunpack.c.h.b16 %v526
    %v1992 = vunpack.c.l.b16 %v527
    %v1993 = vunpack.c.h.b16 %v527
    %v1994 = vunpack.c.l.b16 %v528
    %v1995 = vunpack.c.h.b16 %v528
    %v1996 = vunpack.c.l.b16 %v529
    %v1997 = vunpack.c.h.b16 %v529
    %v1998 = vunpack.c.l.b16 %v530
    %v1999 = vunpack.c.h.b16 %v530
    %v2000 = vunpack.c.l.b16 %v531
    %v2001 = vunpack.c.h.b16 %v531
    %v2002 = vunpack.c.l.b16 %v532
    %v2003 = vunpack.c.h.b16 %v532
    %v2004 = vunpack.c.l.b16 %v533
    %v2005 = vunpack.c.h.b16 %v533
    %v2006 = vunpack.c.l.b16 %v534
    %v2007 = vunpack.c.h.b16 %v534
    %v2008 = vunpack.c.l.b16 %v535
    %v2009 = vunpack.c.h.b16 %v535
    %v2010 = vunpack.c.l.b16 %v536
    %v2011 = vunpack.c.h.b16 %v536
    %v2012 = vunpack.c.l.b16 %v537
    %v2013 = vunpack.c.h.b16 %v537
    %v2014 = vunpack.c.l.b16 %v538
    %v2015 = vunpack.c.h.b16 %v538
    %v2016 = vunpack.c.l.b16 %v539
    %v2017 = vunpack.c.h.b16 %v539
    %v2018 = vunpack.c.l.b16 %v540
    %v2019 = vunpack.c.h.b16 %v540
    %v2020 = vunpack.c.l.b16 %v541
    %v2021 = vunpack.c.h.b16 %v541
    %v2022 = vunpack.c.l.b16 %v542
    %v2023 = vunpack.c.h.b16 %v542
    %v2024 = vunpack.c.l.b16 %v543
    %v2025 = vunpack.c.h.b16 %v543
    %v2026 = vunpack.c.l.b16 %v544
    %v2027 = vunpack.c.h.b16 %v544
    %v2028 = vunpack.c.l.b16 %v545
    %v2029 = vunpack.c.h.b16 %v545
    %v2030 = vunpack.c.l.b16 %v546
    %v2031 = vunpack.c.h.b16 %v546
    %v2032 = vunpack.c.l.b16 %v547
    %v2033 = vunpack.c.h.b16 %v547
    %v2034 = vunpack.c.l.b16 %v548
    %v2035 = vunpack.c.h.b16 %v548
    %v2036 = vunpack.c.l.b16 %v549
    %v2037 = vunpack.c.h.b16 %v549
    %v2038 = vunpack.c.l.b16 %v550
    %v2039 = vunpack.c.h.b16 %v550
    %v2040 = vunpack.c.l.b16 %v551
    %v2041 = vunpack.c.h.b16 %v551
    %v2042 = vunpack.c.l.b16 %v552
    %v2043 = vunpack.c.h.b16 %v552
    %v2044 = vunpack.c.l.b16 %v553
    %v2045 = vunpack.c.h.b16 %v553
    %v2046 = vunpack.c.l.b16 %v554
    %v2047 = vunpack.c.h.b16 %v554
    %v2048 = vunpack.c.l.b16 %v555
    %v2049 = vunpack.c.h.b16 %v555
    %v2050 = vunpack.c.l.b16 %v556
    %v2051 = vunpack.c.h.b16 %v556
    %v2052 = vunpack.c.l.b16 %v557
    %v2053 = vunpack.c.h.b16 %v557
    %v2054 = vunpack.c.l.b16 %v558
    %v2055 = vunpack.c.h.b16 %v558
    %v2056 = vunpack.c.l.b16 %v559
    %v2057 = vunpack.c.h.b16 %v559
    %v2058 = vunpack.c.l.b16 %v560
    %v2059 = vunpack.c.h.b16 %v560
    %v2060 = vunpack.c.l.b16 %v561
    %v2061 = vunpack.c.h.b16 %v561
    %v2062 = vunpack.c.l.b16 %v562
    %v2063 = vunpack.c.h.b16 %v562
    %v2064 = vunpack.c.l.b16 %v563
    %v2065 = vunpack.c.h.b16 %v563
    %v2066 = vunpack.c.l.b16 %v564
    %v2067 = vunpack.c.h.b16 %v564
    %v2068 = vunpack.c.l.b16 %v565
    %v2069 = vunpack.c.h.b16 %v565
    %v2070 = vunpack.c.l.b16 %v566
    %v2071 = vunpack.c.h.b16 %v566
    %v2072 = vunpack.c.l.b16 %v567
    %v2073 = vunpack.c.h.b16 %v567
    %v2074 = vunpack.c.l.b16 %v568
    %v2075 = vunpack.c.h.b16 %v568
    %v2076 = vunpack.c.l.b16 %v569
    %v2077 = vunpack.c.h.b16 %v569
    %v2078 = vunpack.c.l.b16 %v570
    %v2079 = vunpack.c.h.b16 %v570
    %v2080 = vunpack.c.l.b16 %v571
    %v2081 = vunpack.c.h.b16 %v571
    %v2082 = vunpack.c.l.b16 %v572
    %v2083 = vunpack.c.h.b16 %v572
    %v2084 = vunpack.c.l.b16 %v573
    %v2085 = vunpack.c.h.b16 %v573
    %v2086 = vunpack.c.l.b16 %v574
    %v2087 = vunpack.c.h.b16 %v574
    %v2088 = vunpack.c.l.b16 %v575
    %v2089 = vunpack.c.h.b16 %v575
    %v2090 = vunpack.c.l.b16 %v576
    %v2091 = vunpack.c.h.b16 %v576
    %v2092 = vunpack.c.l.b16 %v577
    %v2093 = vunpack.c.h.b16 %v577
    %v2094 = vunpack.c.l.b16 %v578
    %v2095 = vunpack.c.h.b16 %v578
    %v2096 = vunpack.c.l.b16 %v579
    %v2097 = vunpack.c.h.b16 %v579
    %v2098 = vunpack.c.l.b16 %v580
    %v2099 = vunpack.c.h.b16 %v580
    %v2100 = vunpack.c.l.b16 %v581
    %v2101 = vunpack.c.h.b16 %v581
    %v2102 = vunpack.c.l.b16 %v582
    %v2103 = vunpack.c.h.b16 %v582
    %v2104 = vunpack.c.l.b16 %v583
    %v2105 = vunpack.c.h.b16 %v583
    %v2106 = vunpack.c.l.b16 %v584
    %v2107 = vunpack.c.h.b16 %v584
    %v2108 = vunpack.c.l.b16 %v585
    %v2109 = vunpack.c.h.b16 %v585
    %v2110 = vunpack.c.l.b16 %v586
    %v2111 = vunpack.c.h.b16 %v586
    %v2112 = vunpack.c.l.b16 %v587
    %v2113 = vunpack.c.h.b16 %v587
    %v2114 = vunpack.c.l.b16 %v588
    %v2115 = vunpack.c.h.b16 %v588
    %v2116 = vunpack.c.l.b16 %v589
    %v2117 = vunpack.c.h.b16 %v589
    %v2118 = vunpack.c.l.b16 %v590
    %v2119 = vunpack.c.h.b16 %v590
    %v2120 = vunpack.c.l.b16 %v591
    %v2121 = vunpack.c.h.b16 %v591
    %v2122 = vunpack.c.l.b16 %v592
    %v2123 = vunpack.c.h.b16 %v592
    %v2124 = vunpack.c.l.b16 %v593
    %v2125 = vunpack.c.h.b16 %v593
    %v2126 = vunpack.c.l.b16 %v594
    %v2127 = vunpack.c.h.b16 %v594
    %v2128 = vunpack.c.l.b16 %v595
    %v2129 = vunpack.c.h.b16 %v595
    %v2130 = vunpack.c.l.b16 %v596
    %v2131 = vunpack.c.h.b16 %v596
    %v2132 = vunpack.c.l.b16 %v597
    %v2133 = vunpack.c.h.b16 %v597
    %v2134 = vunpack.c.l.b16 %v598
    %v2135 = vunpack.c.h.b16 %v598
    %v2136 = vunpack.c.l.b16 %v599
    %v2137 = vunpack.c.h.b16 %v599
    %v2138 = vunpack.c.l.b16 %v600
    %v2139 = vunpack.c.h.b16 %v600
    %v2140 = vunpack.c.l.b16 %v601
    %v2141 = vunpack.c.h.b16 %v601
    %v2142 = vunpack.c.l.b16 %v602
    %v2143 = vunpack.c.h.b16 %v602
    %v2144 = vunpack.c.l.b16 %v603
    %v2145 = vunpack.c.h.b16 %v603
    %v2146 = vunpack.c.l.b16 %v604
    %v2147 = vunpack.c.h.b16 %v604
    %v2148 = vunpack.c.l.b16 %v605
    %v2149 = vunpack.c.h.b16 %v605
    %v2150 = vunpack.c.l.b16 %v606
    %v2151 = vunpack.c.h.b16 %v606
    %v2152 = vunpack.c.l.b16 %v607
    %v2153 = vunpack.c.h.b16 %v607
    %v2154 = vunpack.c.l.b16 %v608
    %v2155 = vunpack.c.h.b16 %v608
    %v2156 = vunpack.c.l.b16 %v609
    %v2157 = vunpack.c.h.b16 %v609
    %v2158 = vunpack.c.l.b16 %v610
    %v2159 = vunpack.c.h.b16 %v610
    %v2160 = vunpack.c.l.b16 %v611
    %v2161 = vunpack.c.h.b16 %v611
    %v2162 = vunpack.c.l.b16 %v612
    %v2163 = vunpack.c.h.b16 %v612
    %v2164 = vunpack.c.l.b16 %v613
    %v2165 = vunpack.c.h.b16 %v613
    %v2166 = vunpack.c.l.b16 %v614
    %v2167 = vunpack.c.h.b16 %v614
    %v2168 = vunpack.c.l.b16 %v615
    %v2169 = vunpack.c.h.b16 %v615
    %v2170 = vunpack.c.l.b16 %v616
    %v2171 = vunpack.c.h.b16 %v616
    %v2172 = vunpack.c.l.b16 %v617
    %v2173 = vunpack.c.h.b16 %v617
    %v2174 = vunpack.c.l.b16 %v618
    %v2175 = vunpack.c.h.b16 %v618
    %v2176 = vunpack.c.l.b16 %v619
    %v2177 = vunpack.c.h.b16 %v619
    %v2178 = vunpack.c.l.b16 %v620
    %v2179 = vunpack.c.h.b16 %v620
    %v2180 = vunpack.c.l.b16 %v621
    %v2181 = vunpack.c.h.b16 %v621
    %v2182 = vunpack.c.l.b16 %v622
    %v2183 = vunpack.c.h.b16 %v622
    %v2184 = vunpack.c.l.b16 %v623
    %v2185 = vunpack.c.h.b16 %v623
    %v2186 = vunpack.c.l.b16 %v624
    %v2187 = vunpack.c.h.b16 %v624
    %v2188 = vunpack.c.l.b16 %v625
    %v2189 = vunpack.c.h.b16 %v625
    %v2190 = vunpack.c.l.b16 %v626
    %v2191 = vunpack.c.h.b16 %v626
    %v2192 = vunpack.c.l.b16 %v627
    %v2193 = vunpack.c.h.b16 %v627
    %v2194 = vunpack.c.l.b16 %v628
    %v2195 = vunpack.c.h.b16 %v628
    %v2196 = vunpack.c.l.b16 %v629
    %v2197 = vunpack.c.h.b16 %v629
    %v2198 = vunpack.c.l.b16 %v630
    %v2199 = vunpack.c.h.b16 %v630
    %v2200 = vunpack.c.l.b16 %v631
    %v2201 = vunpack.c.h.b16 %v631
    %v2202 = vunpack.c.l.b16 %v632
    %v2203 = vunpack.c.h.b16 %v632
    %v2204 = vunpack.c.l.b16 %v633
    %v2205 = vunpack.c.h.b16 %v633
    %v2206 = vunpack.c.l.b16 %v634
    %v2207 = vunpack.c.h.b16 %v634
    %v2208 = vunpack.c.l.b16 %v635
    %v2209 = vunpack.c.h.b16 %v635
    %v2210 = vunpack.c.l.b16 %v636
    %v2211 = vunpack.c.h.b16 %v636
    %v2212 = vunpack.c.l.b16 %v637
    %v2213 = vunpack.c.h.b16 %v637
    %v2214 = vunpack.c.l.b16 %v638
    %v2215 = vunpack.c.h.b16 %v638
    %v2216 = vunpack.c.l.b16 %v639
    %v2217 = vunpack.c.h.b16 %v639
    %v2218 = vunpack.c.l.b16 %v640
    %v2219 = vunpack.c.h.b16 %v640
    %v2220 = vunpack.c.l.b16 %v641
    %v2221 = vunpack.c.h.b16 %v641
    %v2222 = vunpack.c.l.b16 %v642
    %v2223 = vunpack.c.h.b16 %v642
    %v2224 = vunpack.c.l.b16 %v643
    %v2225 = vunpack.c.h.b16 %v643
    %v2226 = vunpack.c.l.b16 %v644
    %v2227 = vunpack.c.h.b16 %v644
    %v2228 = vunpack.c.l.b16 %v645
    %v2229 = vunpack.c.h.b16 %v645
    %v2230 = vunpack.c.l.b16 %v646
    %v2231 = vunpack.c.h.b16 %v646
    %v2232 = vunpack.c.l.b16 %v647
    %v2233 = vunpack.c.h.b16 %v647
    %v2234 = vunpack.c.l.b16 %v648
    %v2235 = vunpack.c.h.b16 %v648
    %v2236 = vunpack.c.l.b16 %v649
    %v2237 = vunpack.c.h.b16 %v649
    %v2238 = vunpack.c.l.b16 %v650
    %v2239 = vunpack.c.h.b16 %v650
    %v2240 = vunpack.c.l.b16 %v651
    %v2241 = vunpack.c.h.b16 %v651
    %v2242 = vunpack.c.l.b16 %v652
    %v2243 = vunpack.c.h.b16 %v652
    %v2244 = vunpack.c.l.b16 %v653
    %v2245 = vunpack.c.h.b16 %v653
    %v2246 = vunpack.c.l.b16 %v654
    %v2247 = vunpack.c.h.b16 %v654
    %v2248 = vunpack.c.l.b16 %v655
    %v2249 = vunpack.c.h.b16 %v655
    %v2250 = vunpack.c.l.b16 %v656
    %v2251 = vunpack.c.h.b16 %v656
    %v2252 = vunpack.c.l.b16 %v657
    %v2253 = vunpack.c.h.b16 %v657
    %v2254 = vunpack.c.l.b16 %v658
    %v2255 = vunpack.c.h.b16 %v658
    %v2256 = vunpack.c.l.b16 %v659
    %v2257 = vunpack.c.h.b16 %v659
    %v2258 = vunpack.c.l.b16 %v660
    %v2259 = vunpack.c.h.b16 %v660
    %v2260 = vunpack.c.l.b16 %v661
    %v2261 = vunpack.c.h.b16 %v661
    %v2262 = vunpack.c.l.b16 %v662
    %v2263 = vunpack.c.h.b16 %v662
    %v2264 = vunpack.c.l.b16 %v663
    %v2265 = vunpack.c.h.b16 %v663
    %v2266 = vunpack.c.l.b16 %v664
    %v2267 = vunpack.c.h.b16 %v664
    %v2268 = vunpack.c.l.b16 %v665
    %v2269 = vunpack.c.h.b16 %v665
    %v2270 = vunpack.c.l.b16 %v666
    %v2271 = vunpack.c.h.b16 %v666
    %v2272 = vunpack.c.l.b16 %v667
    %v2273 = vunpack.c.h.b16 %v667
    %v2274 = vunpack.c.l.b16 %v668
    %v2275 = vunpack.c.h.b16 %v668
    %v2276 = vunpack.c.l.b16 %v669
    %v2277 = vunpack.c.h.b16 %v669
    %v2278 = vunpack.c.l.b16 %v670
    %v2279 = vunpack.c.h.b16 %v670
    %v2280 = vunpack.c.l.b16 %v671
    %v2281 = vunpack.c.h.b16 %v671
    %v2282 = vunpack.c.l.b16 %v672
    %v2283 = vunpack.c.h.b16 %v672
    %v2284 = vunpack.c.l.b16 %v673
    %v2285 = vunpack.c.h.b16 %v673
    %v2286 = vunpack.c.l.b16 %v674
    %v2287 = vunpack.c.h.b16 %v674
    %v2288 = vunpack.c.l.b16 %v675
    %v2289 = vunpack.c.h.b16 %v675
    %v2290 = vunpack.c.l.b16 %v676
    %v2291 = vunpack.c.h.b16 %v676
    %v2292 = vunpack.c.l.b16 %v677
    %v2293 = vunpack.c.h.b16 %v677
    %v2294 = vpack.c.b16 %v1274, %v1270
    %v2295 = vpack.c.b16 %v1275, %v1271
    %v2296 = vpack.c.b16 %v1276, %v1272
    %v2297 = vpack.c.b16 %v1277, %v1273
    %v2298 = vpack.c.b16 %v1282, %v1278
    %v2299 = vpack.c.b16 %v1283, %v1279
    %v2300 = vpack.c.b16 %v1284, %v1280
    %v2301 = vpack.c.b16 %v1285, %v1281
    %v2302 = vpack.c.b16 %v1290, %v1286
    %v2303 = vpack.c.b16 %v1291, %v1287
    %v2304 = vpack.c.b16 %v1292, %v1288
    %v2305 = vpack.c.b16 %v1293, %v1289
    %v2306 = vpack.c.b16 %v1298, %v1294
    %v2307 = vpack.c.b16 %v1299, %v1295
    %v2308 = vpack.c.b16 %v1300, %v1296
    %v2309 = vpack.c.b16 %v1301, %v1297
    %v2310 = vpack.c.b16 %v1306, %v1302
    %v2311 = vpack.c.b16 %v1307, %v1303
    %v2312 = vpack.c.b16 %v1308, %v1304
    %v2313 = vpack.c.b16 %v1309, %v1305
    %v2314 = vpack.c.b16 %v1314, %v1310
    %v2315 = vpack.c.b16 %v1315, %v1311
    %v2316 = vpack.c.b16 %v1316, %v1312
    %v2317 = vpack.c.b16 %v1317, %v1313
    %v2318 = vpack.c.b16 %v1322, %v1318
    %v2319 = vpack.c.b16 %v1323, %v1319
    %v2320 = vpack.c.b16 %v1324, %v1320
    %v2321 = vpack.c.b16 %v1325, %v1321
    %v2322 = vpack.c.b16 %v1330, %v1326
    %v2323 = vpack.c.b16 %v1331, %v1327
    %v2324 = vpack.c.b16 %v1332, %v1328
    %v2325 = vpack.c.b16 %v1333, %v1329
    %v2326 = vpack.c.b16 %v1338, %v1334
    %v2327 = vpack.c.b16 %v1339, %v1335
    %v2328 = vpack.c.b16 %v1340, %v1336
    %v2329 = vpack.c.b16 %v1341, %v1337
    %v2330 = vpack.c.b16 %v1346, %v1342
    %v2331 = vpack.c.b16 %v1347, %v1343
    %v2332 = vpack.c.b16 %v1348, %v1344
    %v2333 = vpack.c.b16 %v1349, %v1345
    %v2334 = vpack.c.b16 %v1354, %v1350
    %v2335 = vpack.c.b16 %v1355, %v1351
    %v2336 = vpack.c.b16 %v1356, %v1352
    %v2337 = vpack.c.b16 %v1357, %v1353
    %v2338 = vpack.c.b16 %v1362, %v1358
    %v2339 = vpack.c.b16 %v1363, %v1359
    %v2340 = vpack.c.b16 %v1364, %v1360
    %v2341 = vpack.c.b16 %v1365, %v1361
    %v2342 = vpack.c.b16 %v1370, %v1366
    %v2343 = vpack.c.b16 %v1371, %v1367
    %v2344 = vpack.c.b16 %v1372, %v1368
    %v2345 = vpack.c.b16 %v1373, %v1369
    %v2346 = vpack.c.b16 %v1378, %v1374
    %v2347 = vpack.c.b16 %v1379, %v1375
    %v2348 = vpack.c.b16 %v1380, %v1376
    %v2349 = vpack.c.b16 %v1381, %v1377
    %v2350 = vpack.c.b16 %v1386, %v1382
    %v2351 = vpack.c.b16 %v1387, %v1383
    %v2352 = vpack.c.b16 %v1388, %v1384
    %v2353 = vpack.c.b16 %v1389, %v1385
    %v2354 = vpack.c.b16 %v1394, %v1390
    %v2355 = vpack.c.b16 %v1395, %v1391
    %v2356 = vpack.c.b16 %v1396, %v1392
    %v2357 = vpack.c.b16 %v1397, %v1393
    %v2358 = vpack.c.b16 %v1402, %v1398
    %v2359 = vpack.c.b16 %v1403, %v1399
    %v2360 = vpack.c.b16 %v1404, %v1400
    %v2361 = vpack.c.b16 %v1405, %v1401
    %v2362 = vpack.c.b16 %v1410, %v1406
    %v2363 = vpack.c.b16 %v1411, %v1407
    %v2364 = vpack.c.b16 %v1412, %v1408
    %v2365 = vpack.c.b16 %v1413, %v1409
    %v2366 = vpack.c.b16 %v1418, %v1414
    %v2367 = vpack.c.b16 %v1419, %v1415
    %v2368 = vpack.c.b16 %v1420, %v1416
    %v2369 = vpack.c.b16 %v1421, %v1417
    %v2370 = vpack.c.b16 %v1426, %v1422
    %v2371 = vpack.c.b16 %v1427, %v1423
    %v2372 = vpack.c.b16 %v1428, %v1424
    %v2373 = vpack.c.b16 %v1429, %v1425
    %v2374 = vpack.c.b16 %v1434, %v1430
    %v2375 = vpack.c.b16 %v1435, %v1431
    %v2376 = vpack.c.b16 %v1436, %v1432
    %v2377 = vpack.c.b16 %v1437, %v1433
    %v2378 = vpack.c.b16 %v1442, %v1438
    %v2379 = vpack.c.b16 %v1443, %v1439
    %v2380 = vpack.c.b16 %v1444, %v1440
    %v2381 = vpack.c.b16 %v1445, %v1441
    %v2382 = vpack.c.b16 %v1450, %v1446
    %v2383 = vpack.c.b16 %v1451, %v1447
    %v2384 = vpack.c.b16 %v1452, %v1448
    %v2385 = vpack.c.b16 %v1453, %v1449
    %v2386 = vpack.c.b16 %v1458, %v1454
    %v2387 = vpack.c.b16 %v1459, %v1455
    %v2388 = vpack.c.b16 %v1460, %v1456
    %v2389 = vpack.c.b16 %v1461, %v1457
    %v2390 = vpack.c.b16 %v1466, %v1462
    %v2391 = vpack.c.b16 %v1467, %v1463
    %v2392 = vpack.c.b16 %v1468, %v1464
    %v2393 = vpack.c.b16 %v1469, %v1465
    %v2394 = vpack.c.b16 %v1474, %v1470
    %v2395 = vpack.c.b16 %v1475, %v1471
    %v2396 = vpack.c.b16 %v1476, %v1472
    %v2397 = vpack.c.b16 %v1477, %v1473
    %v2398 = vpack.c.b16 %v1482, %v1478
    %v2399 = vpack.c.b16 %v1483, %v1479
    %v2400 = vpack.c.b16 %v1484, %v1480
    %v2401 = vpack.c.b16 %v1485, %v1481
    %v2402 = vpack.c.b16 %v1490, %v1486
    %v2403 = vpack.c.b16 %v1491, %v1487
    %v2404 = vpack.c.b16 %v1492, %v1488
    %v2405 = vpack.c.b16 %v1493, %v1489
    %v2406 = vpack.c.b16 %v1498, %v1494
    %v2407 = vpack.c.b16 %v1499, %v1495
    %v2408 = vpack.c.b16 %v1500, %v1496
    %v2409 = vpack.c.b16 %v1501, %v1497
    %v2410 = vpack.c.b16 %v1506, %v1502
    %v2411 = vpack.c.b16 %v1507, %v1503
    %v2412 = vpack.c.b16 %v1508, %v1504
    %v2413 = vpack.c.b16 %v1509, %v1505
    %v2414 = vpack.c.b16 %v1514, %v1510
    %v2415 = vpack.c.b16 %v1515, %v1511
    %v2416 = vpack.c.b16 %v1516, %v1512
    %v2417 = vpack.c.b16 %v1517, %v1513
    %v2418 = vpack.c.b16 %v1522, %v1518
    %v2419 = vpack.c.b16 %v1523, %v1519
    %v2420 = vpack.c.b16 %v1524, %v1520
    %v2421 = vpack.c.b16 %v1525, %v1521
    %v2422 = vpack.c.b16 %v1530, %v1526
    %v2423 = vpack.c.b16 %v1531, %v1527
    %v2424 = vpack.c.b16 %v1532, %v1528
    %v2425 = vpack.c.b16 %v1533, %v1529
    %v2426 = vpack.c.b16 %v1538, %v1534
    %v2427 = vpack.c.b16 %v1539, %v1535
    %v2428 = vpack.c.b16 %v1540, %v1536
    %v2429 = vpack.c.b16 %v1541, %v1537
    %v2430 = vpack.c.b16 %v1546, %v1542
    %v2431 = vpack.c.b16 %v1547, %v1543
    %v2432 = vpack.c.b16 %v1548, %v1544
    %v2433 = vpack.c.b16 %v1549, %v1545
    %v2434 = vpack.c.b16 %v1554, %v1550
    %v2435 = vpack.c.b16 %v1555, %v1551
    %v2436 = vpack.c.b16 %v1556, %v1552
    %v2437 = vpack.c.b16 %v1557, %v1553
    %v2438 = vpack.c.b16 %v1562, %v1558
    %v2439 = vpack.c.b16 %v1563, %v1559
    %v2440 = vpack.c.b16 %v1564, %v1560
    %v2441 = vpack.c.b16 %v1565, %v1561
    %v2442 = vpack.c.b16 %v1570, %v1566
    %v2443 = vpack.c.b16 %v1571, %v1567
    %v2444 = vpack.c.b16 %v1572, %v1568
    %v2445 = vpack.c.b16 %v1573, %v1569
    %v2446 = vpack.c.b16 %v1578, %v1574
    %v2447 = vpack.c.b16 %v1579, %v1575
    %v2448 = vpack.c.b16 %v1580, %v1576
    %v2449 = vpack.c.b16 %v1581, %v1577
    %v2450 = vpack.c.b16 %v1586, %v1582
    %v2451 = vpack.c.b16 %v1587, %v1583
    %v2452 = vpack.c.b16 %v1588, %v1584
    %v2453 = vpack.c.b16 %v1589, %v1585
    %v2454 = vpack.c.b16 %v1594, %v1590
    %v2455 = vpack.c.b16 %v1595, %v1591
    %v2456 = vpack.c.b16 %v1596, %v1592
    %v2457 = vpack.c.b16 %v1597, %v1593
    %v2458 = vpack.c.b16 %v1602, %v1598
    %v2459 = vpack.c.b16 %v1603, %v1599
    %v2460 = vpack.c.b16 %v1604, %v1600
    %v2461 = vpack.c.b16 %v1605, %v1601
    %v2462 = vpack.c.b16 %v1610, %v1606
    %v2463 = vpack.c.b16 %v1611, %v1607
    %v2464 = vpack.c.b16 %v1612, %v1608
    %v2465 = vpack.c.b16 %v1613, %v1609
    %v2466 = vpack.c.b16 %v1618, %v1614
    %v2467 = vpack.c.b16 %v1619, %v1615
    %v2468 = vpack.c.b16 %v1620, %v1616
    %v2469 = vpack.c.b16 %v1621, %v1617
    %v2470 = vpack.c.b16 %v1626, %v1622
    %v2471 = vpack.c.b16 %v1627, %v1623
    %v2472 = vpack.c.b16 %v1628, %v1624
    %v2473 = vpack.c.b16 %v1629, %v1625
    %v2474 = vpack.c.b16 %v1634, %v1630
    %v2475 = vpack.c.b16 %v1635, %v1631
    %v2476 = vpack.c.b16 %v1636, %v1632
    %v2477 = vpack.c.b16 %v1637, %v1633
    %v2478 = vpack.c.b16 %v1642, %v1638
    %v2479 = vpack.c.b16 %v1643, %v1639
    %v2480 = vpack.c.b16 %v1644, %v1640
    %v2481 = vpack.c.b16 %v1645, %v1641
    %v2482 = vpack.c.b16 %v1650, %v1646
    %v2483 = vpack.c.b16 %v1651, %v1647
    %v2484 = vpack.c.b16 %v1652, %v1648
    %v2485 = vpack.c.b16 %v1653, %v1649
    %v2486 = vpack.c.b16 %v1658, %v1654
    %v2487 = vpack.c.b16 %v1659, %v1655
    %v2488 = vpack.c.b16 %v1660, %v1656
    %v2489 = vpack.c.b16 %v1661, %v1657
    %v2490 = vpack.c.b16 %v1666, %v1662
    %v2491 = vpack.c.b16 %v1667, %v1663
    %v2492 = vpack.c.b16 %v1668, %v1664
    %v2493 = vpack.c.b16 %v1669, %v1665
    %v2494 = vpack.c.b16 %v1674, %v1670
    %v2495 = vpack.c.b16 %v1675, %v1671
    %v2496 = vpack.c.b16 %v1676, %v1672
    %v2497 = vpack.c.b16 %v1677, %v1673
    %v2498 = vpack.c.b16 %v1682, %v1678
    %v2499 = vpack.c.b16 %v1683, %v1679
    %v2500 = vpack.c.b16 %v1684, %v1680
    %v2501 = vpack.c.b16 %v1685, %v1681
    %v2502 = vpack.c.b16 %v1690, %v1686
    %v2503 = vpack.c.b16 %v1691, %v1687
    %v2504 = vpack.c.b16 %v1692, %v1688
    %v2505 = vpack.c.b16 %v1693, %v1689
    %v2506 = vpack.c.b16 %v1698, %v1694
    %v2507 = vpack.c.b16 %v1699, %v1695
    %v2508 = vpack.c.b16 %v1700, %v1696
    %v2509 = vpack.c.b16 %v1701, %v1697
    %v2510 = vpack.c.b16 %v1706, %v1702
    %v2511 = vpack.c.b16 %v1707, %v1703
    %v2512 = vpack.c.b16 %v1708, %v1704
    %v2513 = vpack.c.b16 %v1709, %v1705
    %v2514 = vpack.c.b16 %v1714, %v1710
    %v2515 = vpack.c.b16 %v1715, %v1711
    %v2516 = vpack.c.b16 %v1716, %v1712
    %v2517 = vpack.c.b16 %v1717, %v1713
    %v2518 = vpack.c.b16 %v1722, %v1718
    %v2519 = vpack.c.b16 %v1723, %v1719
    %v2520 = vpack.c.b16 %v1724, %v1720
    %v2521 = vpack.c.b16 %v1725, %v1721
    %v2522 = vpack.c.b16 %v1730, %v1726
    %v2523 = vpack.c.b16 %v1731, %v1727
    %v2524 = vpack.c.b16 %v1732, %v1728
    %v2525 = vpack.c.b16 %v1733, %v1729
    %v2526 = vpack.c.b16 %v1738, %v1734
    %v2527 = vpack.c.b16 %v1739, %v1735
    %v2528 = vpack.c.b16 %v1740, %v1736
    %v2529 = vpack.c.b16 %v1741, %v1737
    %v2530 = vpack.c.b16 %v1746, %v1742
    %v2531 = vpack.c.b16 %v1747, %v1743
    %v2532 = vpack.c.b16 %v1748, %v1744
    %v2533 = vpack.c.b16 %v1749, %v1745
    %v2534 = vpack.c.b16 %v1754, %v1750
    %v2535 = vpack.c.b16 %v1755, %v1751
    %v2536 = vpack.c.b16 %v1756, %v1752
    %v2537 = vpack.c.b16 %v1757, %v1753
    %v2538 = vpack.c.b16 %v1762, %v1758
    %v2539 = vpack.c.b16 %v1763, %v1759
    %v2540 = vpack.c.b16 %v1764, %v1760
    %v2541 = vpack.c.b16 %v1765, %v1761
    %v2542 = vpack.c.b16 %v1770, %v1766
    %v2543 = vpack.c.b16 %v1771, %v1767
    %v2544 = vpack.c.b16 %v1772, %v1768
    %v2545 = vpack.c.b16 %v1773, %v1769
    %v2546 = vpack.c.b16 %v1778, %v1774
    %v2547 = vpack.c.b16 %v1779, %v1775
    %v2548 = vpack.c.b16 %v1780, %v1776
    %v2549 = vpack.c.b16 %v1781, %v1777
    %v2550 = vpack.c.b16 %v1786, %v1782
    %v2551 = vpack.c.b16 %v1787, %v1783
    %v2552 = vpack.c.b16 %v1788, %v1784
    %v2553 = vpack.c.b16 %v1789, %v1785
    %v2554 = vpack.c.b16 %v1794, %v1790
    %v2555 = vpack.c.b16 %v1795, %v1791
    %v2556 = vpack.c.b16 %v1796, %v1792
    %v2557 = vpack.c.b16 %v1797, %v1793
    %v2558 = vpack.c.b16 %v1802, %v1798
    %v2559 = vpack.c.b16 %v1803, %v1799
    %v2560 = vpack.c.b16 %v1804, %v1800
    %v2561 = vpack.c.b16 %v1805, %v1801
    %v2562 = vpack.c.b16 %v1810, %v1806
    %v2563 = vpack.c.b16 %v1811, %v1807
    %v2564 = vpack.c.b16 %v1812, %v1808
    %v2565 = vpack.c.b16 %v1813, %v1809
    %v2566 = vpack.c.b16 %v1818, %v1814
    %v2567 = vpack.c.b16 %v1819, %v1815
    %v2568 = vpack.c.b16 %v1820, %v1816
    %v2569 = vpack.c.b16 %v1821, %v1817
    %v2570 = vpack.c.b16 %v1826, %v1822
    %v2571 = vpack.c.b16 %v1827, %v1823
    %v2572 = vpack.c.b16 %v1828, %v1824
    %v2573 = vpack.c.b16 %v1829, %v1825
    %v2574 = vpack.c.b16 %v1834, %v1830
    %v2575 = vpack.c.b16 %v1835, %v1831
    %v2576 = vpack.c.b16 %v1836, %v1832
    %v2577 = vpack.c.b16 %v1837, %v1833
    %v2578 = vpack.c.b16 %v1842, %v1838
    %v2579 = vpack.c.b16 %v1843, %v1839
    %v2580 = vpack.c.b16 %v1844, %v1840
    %v2581 = vpack.c.b16 %v1845, %v1841
    %v2582 = vpack.c.b16 %v1850, %v1846
    %v2583 = vpack.c.b16 %v1851, %v1847
    %v2584 = vpack.c.b16 %v1852, %v1848
    %v2585 = vpack.c.b16 %v1853, %v1849
    %v2586 = vpack.c.b16 %v1858, %v1854
    %v2587 = vpack.c.b16 %v1859, %v1855
    %v2588 = vpack.c.b16 %v1860, %v1856
    %v2589 = vpack.c.b16 %v1861, %v1857
    %v2590 = vpack.c.b16 %v1866, %v1862
    %v2591 = vpack.c.b16 %v1867, %v1863
    %v2592 = vpack.c.b16 %v1868, %v1864
    %v2593 = vpack.c.b16 %v1869, %v1865
    %v2594 = vpack.c.b16 %v1874, %v1870
    %v2595 = vpack.c.b16 %v1875, %v1871
    %v2596 = vpack.c.b16 %v1876, %v1872
    %v2597 = vpack.c.b16 %v1877, %v1873
    %v2598 = vpack.c.b16 %v1882, %v1878
    %v2599 = vpack.c.b16 %v1883, %v1879
    %v2600 = vpack.c.b16 %v1884, %v1880
    %v2601 = vpack.c.b16 %v1885, %v1881
    %v2602 = vpack.c.b16 %v1890, %v1886
    %v2603 = vpack.c.b16 %v1891, %v1887
    %v2604 = vpack.c.b16 %v1892, %v1888
    %v2605 = vpack.c.b16 %v1893, %v1889
    %v2606 = vpack.c.b16 %v1898, %v1894
    %v2607 = vpack.c.b16 %v1899, %v1895
    %v2608 = vpack.c.b16 %v1900, %v1896
    %v2609 = vpack.c.b16 %v1901, %v1897
    %v2610 = vpack.c.b16 %v1906, %v1902
    %v2611 = vpack.c.b16 %v1907, %v1903
    %v2612 = vpack.c.b16 %v1908, %v1904
    %v2613 = vpack.c.b16 %v1909, %v1905
    %v2614 = vpack.c.b16 %v1914, %v1910
    %v2615 = vpack.c.b16 %v1915, %v1911
    %v2616 = vpack.c.b16 %v1916, %v1912
    %v2617 = vpack.c.b16 %v1917, %v1913
    %v2618 = vpack.c.b16 %v1922, %v1918
    %v2619 = vpack.c.b16 %v1923, %v1919
    %v2620 = vpack.c.b16 %v1924, %v1920
    %v2621 = vpack.c.b16 %v1925, %v1921
    %v2622 = vpack.c.b16 %v1930, %v1926
    %v2623 = vpack.c.b16 %v1931, %v1927
    %v2624 = vpack.c.b16 %v1932, %v1928
    %v2625 = vpack.c.b16 %v1933, %v1929
    %v2626 = vpack.c.b16 %v1938, %v1934
    %v2627 = vpack.c.b16 %v1939, %v1935
    %v2628 = vpack.c.b16 %v1940, %v1936
    %v2629 = vpack.c.b16 %v1941, %v1937
    %v2630 = vpack.c.b16 %v1946, %v1942
    %v2631 = vpack.c.b16 %v1947, %v1943
    %v2632 = vpack.c.b16 %v1948, %v1944
    %v2633 = vpack.c.b16 %v1949, %v1945
    %v2634 = vpack.c.b16 %v1954, %v1950
    %v2635 = vpack.c.b16 %v1955, %v1951
    %v2636 = vpack.c.b16 %v1956, %v1952
    %v2637 = vpack.c.b16 %v1957, %v1953
    %v2638 = vpack.c.b16 %v1962, %v1958
    %v2639 = vpack.c.b16 %v1963, %v1959
    %v2640 = vpack.c.b16 %v1964, %v1960
    %v2641 = vpack.c.b16 %v1965, %v1961
    %v2642 = vpack.c.b16 %v1970, %v1966
    %v2643 = vpack.c.b16 %v1971, %v1967
    %v2644 = vpack.c.b16 %v1972, %v1968
    %v2645 = vpack.c.b16 %v1973, %v1969
    %v2646 = vpack.c.b16 %v1978, %v1974
    %v2647 = vpack.c.b16 %v1979, %v1975
    %v2648 = vpack.c.b16 %v1980, %v1976
    %v2649 = vpack.c.b16 %v1981, %v1977
    %v2650 = vpack.c.b16 %v1986, %v1982
    %v2651 = vpack.c.b16 %v1987, %v1983
    %v2652 = vpack.c.b16 %v1988, %v1984
    %v2653 = vpack.c.b16 %v1989, %v1985
    %v2654 = vpack.c.b16 %v1994, %v1990
    %v2655 = vpack.c.b16 %v1995, %v1991
    %v2656 = vpack.c.b16 %v1996, %v1992
    %v2657 = vpack.c.b16 %v1997, %v1993
    %v2658 = vpack.c.b16 %v2002, %v1998
    %v2659 = vpack.c.b16 %v2003, %v1999
    %v2660 = vpack.c.b16 %v2004, %v2000
    %v2661 = vpack.c.b16 %v2005, %v2001
    %v2662 = vpack.c.b16 %v2010, %v2006
    %v2663 = vpack.c.b16 %v2011, %v2007
    %v2664 = vpack.c.b16 %v2012, %v2008
    %v2665 = vpack.c.b16 %v2013, %v2009
    %v2666 = vpack.c.b16 %v2018, %v2014
    %v2667 = vpack.c.b16 %v2019, %v2015
    %v2668 = vpack.c.b16 %v2020, %v2016
    %v2669 = vpack.c.b16 %v2021, %v2017
    %v2670 = vpack.c.b16 %v2026, %v2022
    %v2671 = vpack.c.b16 %v2027, %v2023
    %v2672 = vpack.c.b16 %v2028, %v2024
    %v2673 = vpack.c.b16 %v2029, %v2025
    %v2674 = vpack.c.b16 %v2034, %v2030
    %v2675 = vpack.c.b16 %v2035, %v2031
    %v2676 = vpack.c.b16 %v2036, %v2032
    %v2677 = vpack.c.b16 %v2037, %v2033
    %v2678 = vpack.c.b16 %v2042, %v2038
    %v2679 = vpack.c.b16 %v2043, %v2039
    %v2680 = vpack.c.b16 %v2044, %v2040
    %v2681 = vpack.c.b16 %v2045, %v2041
    %v2682 = vpack.c.b16 %v2050, %v2046
    %v2683 = vpack.c.b16 %v2051, %v2047
    %v2684 = vpack.c.b16 %v2052, %v2048
    %v2685 = vpack.c.b16 %v2053, %v2049
    %v2686 = vpack.c.b16 %v2058, %v2054
    %v2687 = vpack.c.b16 %v2059, %v2055
    %v2688 = vpack.c.b16 %v2060, %v2056
    %v2689 = vpack.c.b16 %v2061, %v2057
    %v2690 = vpack.c.b16 %v2066, %v2062
    %v2691 = vpack.c.b16 %v2067, %v2063
    %v2692 = vpack.c.b16 %v2068, %v2064
    %v2693 = vpack.c.b16 %v2069, %v2065
    %v2694 = vpack.c.b16 %v2074, %v2070
    %v2695 = vpack.c.b16 %v2075, %v2071
    %v2696 = vpack.c.b16 %v2076, %v2072
    %v2697 = vpack.c.b16 %v2077, %v2073
    %v2698 = vpack.c.b16 %v2082, %v2078
    %v2699 = vpack.c.b16 %v2083, %v2079
    %v2700 = vpack.c.b16 %v2084, %v2080
    %v2701 = vpack.c.b16 %v2085, %v2081
    %v2702 = vpack.c.b16 %v2090, %v2086
    %v2703 = vpack.c.b16 %v2091, %v2087
    %v2704 = vpack.c.b16 %v2092, %v2088
    %v2705 = vpack.c.b16 %v2093, %v2089
    %v2706 = vpack.c.b16 %v2098, %v2094
    %v2707 = vpack.c.b16 %v2099, %v2095
    %v2708 = vpack.c.b16 %v2100, %v2096
    %v2709 = vpack.c.b16 %v2101, %v2097
    %v2710 = vpack.c.b16 %v2106, %v2102
    %v2711 = vpack.c.b16 %v2107, %v2103
    %v2712 = vpack.c.b16 %v2108, %v2104
    %v2713 = vpack.c.b16 %v2109, %v2105
    %v2714 = vpack.c.b16 %v2114, %v2110
    %v2715 = vpack.c.b16 %v2115, %v2111
    %v2716 = vpack.c.b16 %v2116, %v2112
    %v2717 = vpack.c.b16 %v2117, %v2113
    %v2718 = vpack.c.b16 %v2122, %v2118
    %v2719 = vpack.c.b16 %v2123, %v2119
    %v2720 = vpack.c.b16 %v2124, %v2120
    %v2721 = vpack.c.b16 %v2125, %v2121
    %v2722 = vpack.c.b16 %v2130, %v2126
    %v2723 = vpack.c.b16 %v2131, %v2127
    %v2724 = vpack.c.b16 %v2132, %v2128
    %v2725 = vpack.c.b16 %v2133, %v2129
    %v2726 = vpack.c.b16 %v2138, %v2134
    %v2727 = vpack.c.b16 %v2139, %v2135
    %v2728 = vpack.c.b16 %v2140, %v2136
    %v2729 = vpack.c.b16 %v2141, %v2137
    %v2730 = vpack.c.b16 %v2146, %v2142
    %v2731 = vpack.c.b16 %v2147, %v2143
    %v2732 = vpack.c.b16 %v2148, %v2144
    %v2733 = vpack.c.b16 %v2149, %v2145
    %v2734 = vpack.c.b16 %v2154, %v2150
    %v2735 = vpack.c.b16 %v2155, %v2151
    %v2736 = vpack.c.b16 %v2156, %v2152
    %v2737 = vpack.c.b16 %v2157, %v2153
    %v2738 = vpack.c.b16 %v2162, %v2158
    %v2739 = vpack.c.b16 %v2163, %v2159
    %v2740 = vpack.c.b16 %v2164, %v2160
    %v2741 = vpack.c.b16 %v2165, %v2161
    %v2742 = vpack.c.b16 %v2170, %v2166
    %v2743 = vpack.c.b16 %v2171, %v2167
    %v2744 = vpack.c.b16 %v2172, %v2168
    %v2745 = vpack.c.b16 %v2173, %v2169
    %v2746 = vpack.c.b16 %v2178, %v2174
    %v2747 = vpack.c.b16 %v2179, %v2175
    %v2748 = vpack.c.b16 %v2180, %v2176
    %v2749 = vpack.c.b16 %v2181, %v2177
    %v2750 = vpack.c.b16 %v2186, %v2182
    %v2751 = vpack.c.b16 %v2187, %v2183
    %v2752 = vpack.c.b16 %v2188, %v2184
    %v2753 = vpack.c.b16 %v2189, %v2185
    %v2754 = vpack.c.b16 %v2194, %v2190
    %v2755 = vpack.c.b16 %v2195, %v2191
    %v2756 = vpack.c.b16 %v2196, %v2192
    %v2757 = vpack.c.b16 %v2197, %v2193
    %v2758 = vpack.c.b16 %v2202, %v2198
    %v2759 = vpack.c.b16 %v2203, %v2199
    %v2760 = vpack.c.b16 %v2204, %v2200
    %v2761 = vpack.c.b16 %v2205, %v2201
    %v2762 = vpack.c.b16 %v2210, %v2206
    %v2763 = vpack.c.b16 %v2211, %v2207
    %v2764 = vpack.c.b16 %v2212, %v2208
    %v2765 = vpack.c.b16 %v2213, %v2209
    %v2766 = vpack.c.b16 %v2218, %v2214
    %v2767 = vpack.c.b16 %v2219, %v2215
    %v2768 = vpack.c.b16 %v2220, %v2216
    %v2769 = vpack.c.b16 %v2221, %v2217
    %v2770 = vpack.c.b16 %v2226, %v2222
    %v2771 = vpack.c.b16 %v2227, %v2223
    %v2772 = vpack.c.b16 %v2228, %v2224
    %v2773 = vpack.c.b16 %v2229, %v2225
    %v2774 = vpack.c.b16 %v2234, %v2230
    %v2775 = vpack.c.b16 %v2235, %v2231
    %v2776 = vpack.c.b16 %v2236, %v2232
    %v2777 = vpack.c.b16 %v2237, %v2233
    %v2778 = vpack.c.b16 %v2242, %v2238
    %v2779 = vpack.c.b16 %v2243, %v2239
    %v2780 = vpack.c.b16 %v2244, %v2240
    %v2781 = vpack.c.b16 %v2245, %v2241
    %v2782 = vpack.c.b16 %v2250, %v2246
    %v2783 = vpack.c.b16 %v2251, %v2247
    %v2784 = vpack.c.b16 %v2252, %v2248
    %v2785 = vpack.c.b16 %v2253, %v2249
    %v2786 = vpack.c.b16 %v2258, %v2254
    %v2787 = vpack.c.b16 %v2259, %v2255
    %v2788 = vpack.c.b16 %v2260, %v2256
    %v2789 = vpack.c.b16 %v2261, %v2257
    %v2790 = vpack.c.b16 %v2266, %v2262
    %v2791 = vpack.c.b16 %v2267, %v2263
    %v2792 = vpack.c.b16 %v2268, %v2264
    %v2793 = vpack.c.b16 %v2269, %v2265
    %v2794 = vpack.c.b16 %v2274, %v2270
    %v2795 = vpack.c.b16 %v2275, %v2271
    %v2796 = vpack.c.b16 %v2276, %v2272
    %v2797 = vpack.c.b16 %v2277, %v2273
    %v2798 = vpack.c.b16 %v2282, %v2278
    %v2799 = vpack.c.b16 %v2283, %v2279
    %v2800 = vpack.c.b16 %v2284, %v2280
    %v2801 = vpack.c.b16 %v2285, %v2281
    %v2802 = vpack.c.b16 %v2290, %v2286
    %v2803 = vpack.c.b16 %v2291, %v2287
    %v2804 = vpack.c.b16 %v2292, %v2288
    %v2805 = vpack.c.b16 %v2293, %v2289
    %3318 = vmatpush.bf16.msra.mxu0 %v2322
    %3319 = vmatpush.bf16.msra.mxu0 %v2318
    %3320 = vmatpush.bf16.msra.mxu0 %v2314
    %3321 = vmatpush.bf16.msra.mxu0 %v2310
    %3322 = vmatpush.bf16.msra.mxu0 %v2306
    %3323 = vmatpush.bf16.msra.mxu0 %v2302
    %3324 = vmatpush.bf16.msra.mxu0 %v2298
    %3325 = vmatpush.bf16.msra.mxu0 %v2294
    %3326 = vmatmul.bf16.gmra.mxu0 %v726
    %v3327 = vpop.f32.mrf.mxu0
    %v3328 = vadd.f32 0.0, %v3327
    %v3329 = vpop.f32.mrf.mxu0
    %v3330 = vadd.f32 0.0, %v3329
    %3331 = vdwg.mxu0
    %3332 = vmatpush.bf16.msra.mxu0 %v2354
    %3333 = vmatpush.bf16.msra.mxu0 %v2350
    %3334 = vmatpush.bf16.msra.mxu0 %v2346
    %3335 = vmatpush.bf16.msra.mxu0 %v2342
    %3336 = vmatpush.bf16.msra.mxu0 %v2338
    %3337 = vmatpush.bf16.msra.mxu0 %v2334
    %3338 = vmatpush.bf16.msra.mxu0 %v2330
    %3339 = vmatpush.bf16.msra.mxu0 %v2326
    %3340 = vmatmul.bf16.gmra.mxu0 %v727
    %v3341 = vpop.f32.mrf.mxu0
    %v3342 = vadd.f32 %v3328, %v3341
    %v3343 = vpop.f32.mrf.mxu0
    %v3344 = vadd.f32 %v3330, %v3343
    %3345 = vdwg.mxu0
    %3346 = vmatpush.bf16.msra.mxu0 %v2386
    %3347 = vmatpush.bf16.msra.mxu0 %v2382
    %3348 = vmatpush.bf16.msra.mxu0 %v2378
    %3349 = vmatpush.bf16.msra.mxu0 %v2374
    %3350 = vmatpush.bf16.msra.mxu0 %v2370
    %3351 = vmatpush.bf16.msra.mxu0 %v2366
    %3352 = vmatpush.bf16.msra.mxu0 %v2362
    %3353 = vmatpush.bf16.msra.mxu0 %v2358
    %3354 = vmatmul.bf16.gmra.mxu0 %v728
    %v3355 = vpop.f32.mrf.mxu0
    %v3356 = vadd.f32 %v3342, %v3355
    %v3357 = vpop.f32.mrf.mxu0
    %v3358 = vadd.f32 %v3344, %v3357
    %3359 = vdwg.mxu0
    %3360 = vmatpush.bf16.msra.mxu0 %v2418
    %3361 = vmatpush.bf16.msra.mxu0 %v2414
    %3362 = vmatpush.bf16.msra.mxu0 %v2410
    %3363 = vmatpush.bf16.msra.mxu0 %v2406
    %3364 = vmatpush.bf16.msra.mxu0 %v2402
    %3365 = vmatpush.bf16.msra.mxu0 %v2398
    %3366 = vmatpush.bf16.msra.mxu0 %v2394
    %3367 = vmatpush.bf16.msra.mxu0 %v2390
    %3368 = vmatmul.bf16.gmra.mxu0 %v729
    %v3369 = vpop.f32.mrf.mxu0
    %v3370 = vadd.f32 %v3356, %v3369
    %v3371 = vpop.f32.mrf.mxu0
    %v3372 = vadd.f32 %v3358, %v3371
    %3373 = vdwg.mxu0
    %3374 = vmatpush.bf16.msra.mxu0 %v2450
    %3375 = vmatpush.bf16.msra.mxu0 %v2446
    %3376 = vmatpush.bf16.msra.mxu0 %v2442
    %3377 = vmatpush.bf16.msra.mxu0 %v2438
    %3378 = vmatpush.bf16.msra.mxu0 %v2434
    %3379 = vmatpush.bf16.msra.mxu0 %v2430
    %3380 = vmatpush.bf16.msra.mxu0 %v2426
    %3381 = vmatpush.bf16.msra.mxu0 %v2422
    %3382 = vmatmul.bf16.gmra.mxu0 %v730
    %v3383 = vpop.f32.mrf.mxu0
    %v3384 = vadd.f32 %v3370, %v3383
    %v3385 = vpop.f32.mrf.mxu0
    %v3386 = vadd.f32 %v3372, %v3385
    %3387 = vdwg.mxu0
    %3388 = vmatpush.bf16.msra.mxu0 %v2482
    %3389 = vmatpush.bf16.msra.mxu0 %v2478
    %3390 = vmatpush.bf16.msra.mxu0 %v2474
    %3391 = vmatpush.bf16.msra.mxu0 %v2470
    %3392 = vmatpush.bf16.msra.mxu0 %v2466
    %3393 = vmatpush.bf16.msra.mxu0 %v2462
    %3394 = vmatpush.bf16.msra.mxu0 %v2458
    %3395 = vmatpush.bf16.msra.mxu0 %v2454
    %3396 = vmatmul.bf16.gmra.mxu0 %v731
    %v3397 = vpop.f32.mrf.mxu0
    %v3398 = vadd.f32 %v3384, %v3397
    %v3399 = vpop.f32.mrf.mxu0
    %v3400 = vadd.f32 %v3386, %v3399
    %3401 = vdwg.mxu0
    %3402 = vmatpush.bf16.msra.mxu0 %v2514
    %3403 = vmatpush.bf16.msra.mxu0 %v2510
    %3404 = vmatpush.bf16.msra.mxu0 %v2506
    %3405 = vmatpush.bf16.msra.mxu0 %v2502
    %3406 = vmatpush.bf16.msra.mxu0 %v2498
    %3407 = vmatpush.bf16.msra.mxu0 %v2494
    %3408 = vmatpush.bf16.msra.mxu0 %v2490
    %3409 = vmatpush.bf16.msra.mxu0 %v2486
    %3410 = vmatmul.bf16.gmra.mxu0 %v732
    %v3411 = vpop.f32.mrf.mxu0
    %v3412 = vadd.f32 %v3398, %v3411
    %v3413 = vpop.f32.mrf.mxu0
    %v3414 = vadd.f32 %v3400, %v3413
    %3415 = vdwg.mxu0
    %3416 = vmatpush.bf16.msra.mxu0 %v2546
    %3417 = vmatpush.bf16.msra.mxu0 %v2542
    %3418 = vmatpush.bf16.msra.mxu0 %v2538
    %3419 = vmatpush.bf16.msra.mxu0 %v2534
    %3420 = vmatpush.bf16.msra.mxu0 %v2530
    %3421 = vmatpush.bf16.msra.mxu0 %v2526
    %3422 = vmatpush.bf16.msra.mxu0 %v2522
    %3423 = vmatpush.bf16.msra.mxu0 %v2518
    %3424 = vmatmul.bf16.gmra.mxu0 %v733
    %v3425 = vpop.f32.mrf.mxu0
    %v3426 = vadd.f32 %v3412, %v3425
    %v3427 = vpop.f32.mrf.mxu0
    %v3428 = vadd.f32 %v3414, %v3427
    %3429 = vdwg.mxu0
    %3430 = vmatpush.bf16.msra.mxu0 %v2578
    %3431 = vmatpush.bf16.msra.mxu0 %v2574
    %3432 = vmatpush.bf16.msra.mxu0 %v2570
    %3433 = vmatpush.bf16.msra.mxu0 %v2566
    %3434 = vmatpush.bf16.msra.mxu0 %v2562
    %3435 = vmatpush.bf16.msra.mxu0 %v2558
    %3436 = vmatpush.bf16.msra.mxu0 %v2554
    %3437 = vmatpush.bf16.msra.mxu0 %v2550
    %3438 = vmatmul.bf16.gmra.mxu0 %v734
    %v3439 = vpop.f32.mrf.mxu0
    %v3440 = vadd.f32 %v3426, %v3439
    %v3441 = vpop.f32.mrf.mxu0
    %v3442 = vadd.f32 %v3428, %v3441
    %3443 = vdwg.mxu0
    %3444 = vmatpush.bf16.msra.mxu0 %v2610
    %3445 = vmatpush.bf16.msra.mxu0 %v2606
    %3446 = vmatpush.bf16.msra.mxu0 %v2602
    %3447 = vmatpush.bf16.msra.mxu0 %v2598
    %3448 = vmatpush.bf16.msra.mxu0 %v2594
    %3449 = vmatpush.bf16.msra.mxu0 %v2590
    %3450 = vmatpush.bf16.msra.mxu0 %v2586
    %3451 = vmatpush.bf16.msra.mxu0 %v2582
    %3452 = vmatmul.bf16.gmra.mxu0 %v735
    %v3453 = vpop.f32.mrf.mxu0
    %v3454 = vadd.f32 %v3440, %v3453
    %v3455 = vpop.f32.mrf.mxu0
    %v3456 = vadd.f32 %v3442, %v3455
    %3457 = vdwg.mxu0
    %3458 = vmatpush.bf16.msra.mxu0 %v2642
    %3459 = vmatpush.bf16.msra.mxu0 %v2638
    %3460 = vmatpush.bf16.msra.mxu0 %v2634
    %3461 = vmatpush.bf16.msra.mxu0 %v2630
    %3462 = vmatpush.bf16.msra.mxu0 %v2626
    %3463 = vmatpush.bf16.msra.mxu0 %v2622
    %3464 = vmatpush.bf16.msra.mxu0 %v2618
    %3465 = vmatpush.bf16.msra.mxu0 %v2614
    %3466 = vmatmul.bf16.gmra.mxu0 %v736
    %v3467 = vpop.f32.mrf.mxu0
    %v3468 = vadd.f32 %v3454, %v3467
    %v3469 = vpop.f32.mrf.mxu0
    %v3470 = vadd.f32 %v3456, %v3469
    %3471 = vdwg.mxu0
    %3472 = vmatpush.bf16.msra.mxu0 %v2674
    %3473 = vmatpush.bf16.msra.mxu0 %v2670
    %3474 = vmatpush.bf16.msra.mxu0 %v2666
    %3475 = vmatpush.bf16.msra.mxu0 %v2662
    %3476 = vmatpush.bf16.msra.mxu0 %v2658
    %3477 = vmatpush.bf16.msra.mxu0 %v2654
    %3478 = vmatpush.bf16.msra.mxu0 %v2650
    %3479 = vmatpush.bf16.msra.mxu0 %v2646
    %3480 = vmatmul.bf16.gmra.mxu0 %v737
    %v3481 = vpop.f32.mrf.mxu0
    %v3482 = vadd.f32 %v3468, %v3481
    %v3483 = vpop.f32.mrf.mxu0
    %v3484 = vadd.f32 %v3470, %v3483
    %3485 = vdwg.mxu0
    %3486 = vmatpush.bf16.msra.mxu0 %v2706
    %3487 = vmatpush.bf16.msra.mxu0 %v2702
    %3488 = vmatpush.bf16.msra.mxu0 %v2698
    %3489 = vmatpush.bf16.msra.mxu0 %v2694
    %3490 = vmatpush.bf16.msra.mxu0 %v2690
    %3491 = vmatpush.bf16.msra.mxu0 %v2686
    %3492 = vmatpush.bf16.msra.mxu0 %v2682
    %3493 = vmatpush.bf16.msra.mxu0 %v2678
    %3494 = vmatmul.bf16.gmra.mxu0 %v738
    %v3495 = vpop.f32.mrf.mxu0
    %v3496 = vadd.f32 %v3482, %v3495
    %v3497 = vpop.f32.mrf.mxu0
    %v3498 = vadd.f32 %v3484, %v3497
    %3499 = vdwg.mxu0
    %3500 = vmatpush.bf16.msra.mxu0 %v2738
    %3501 = vmatpush.bf16.msra.mxu0 %v2734
    %3502 = vmatpush.bf16.msra.mxu0 %v2730
    %3503 = vmatpush.bf16.msra.mxu0 %v2726
    %3504 = vmatpush.bf16.msra.mxu0 %v2722
    %3505 = vmatpush.bf16.msra.mxu0 %v2718
    %3506 = vmatpush.bf16.msra.mxu0 %v2714
    %3507 = vmatpush.bf16.msra.mxu0 %v2710
    %3508 = vmatmul.bf16.gmra.mxu0 %v739
    %v3509 = vpop.f32.mrf.mxu0
    %v3510 = vadd.f32 %v3496, %v3509
    %v3511 = vpop.f32.mrf.mxu0
    %v3512 = vadd.f32 %v3498, %v3511
    %3513 = vdwg.mxu0
    %3514 = vmatpush.bf16.msra.mxu0 %v2770
    %3515 = vmatpush.bf16.msra.mxu0 %v2766
    %3516 = vmatpush.bf16.msra.mxu0 %v2762
    %3517 = vmatpush.bf16.msra.mxu0 %v2758
    %3518 = vmatpush.bf16.msra.mxu0 %v2754
    %3519 = vmatpush.bf16.msra.mxu0 %v2750
    %3520 = vmatpush.bf16.msra.mxu0 %v2746
    %3521 = vmatpush.bf16.msra.mxu0 %v2742
    %3522 = vmatmul.bf16.gmra.mxu0 %v740
    %v3523 = vpop.f32.mrf.mxu0
    %v3524 = vadd.f32 %v3510, %v3523
    %v3525 = vpop.f32.mrf.mxu0
    %v3526 = vadd.f32 %v3512, %v3525
    %3527 = vdwg.mxu0
    %3528 = vmatpush.bf16.msra.mxu0 %v2802
    %3529 = vmatpush.bf16.msra.mxu0 %v2798
    %3530 = vmatpush.bf16.msra.mxu0 %v2794
    %3531 = vmatpush.bf16.msra.mxu0 %v2790
    %3532 = vmatpush.bf16.msra.mxu0 %v2786
    %3533 = vmatpush.bf16.msra.mxu0 %v2782
    %3534 = vmatpush.bf16.msra.mxu0 %v2778
    %3535 = vmatpush.bf16.msra.mxu0 %v2774
    %3536 = vmatmul.bf16.gmra.mxu0 %v741
    %v3537 = vpop.f32.mrf.mxu0
    %v3538 = vadd.f32 %v3524, %v3537
    %v3539 = vpop.f32.mrf.mxu0
    %v3540 = vadd.f32 %v3526, %v3539
    %3541 = vdwg.mxu0
    %3542 = vmatpush.bf16.msra.mxu0 %v2323
    %3543 = vmatpush.bf16.msra.mxu0 %v2319
    %3544 = vmatpush.bf16.msra.mxu0 %v2315
    %3545 = vmatpush.bf16.msra.mxu0 %v2311
    %3546 = vmatpush.bf16.msra.mxu0 %v2307
    %3547 = vmatpush.bf16.msra.mxu0 %v2303
    %3548 = vmatpush.bf16.msra.mxu0 %v2299
    %3549 = vmatpush.bf16.msra.mxu0 %v2295
    %3550 = vmatmul.bf16.gmra.mxu0 %v726
    %v3551 = vpop.f32.mrf.mxu0
    %v3552 = vadd.f32 0.0, %v3551
    %v3553 = vpop.f32.mrf.mxu0
    %v3554 = vadd.f32 0.0, %v3553
    %3555 = vdwg.mxu0
    %3556 = vmatpush.bf16.msra.mxu0 %v2355
    %3557 = vmatpush.bf16.msra.mxu0 %v2351
    %3558 = vmatpush.bf16.msra.mxu0 %v2347
    %3559 = vmatpush.bf16.msra.mxu0 %v2343
    %3560 = vmatpush.bf16.msra.mxu0 %v2339
    %3561 = vmatpush.bf16.msra.mxu0 %v2335
    %3562 = vmatpush.bf16.msra.mxu0 %v2331
    %3563 = vmatpush.bf16.msra.mxu0 %v2327
    %3564 = vmatmul.bf16.gmra.mxu0 %v727
    %v3565 = vpop.f32.mrf.mxu0
    %v3566 = vadd.f32 %v3552, %v3565
    %v3567 = vpop.f32.mrf.mxu0
    %v3568 = vadd.f32 %v3554, %v3567
    %3569 = vdwg.mxu0
    %3570 = vmatpush.bf16.msra.mxu0 %v2387
    %3571 = vmatpush.bf16.msra.mxu0 %v2383
    %3572 = vmatpush.bf16.msra.mxu0 %v2379
    %3573 = vmatpush.bf16.msra.mxu0 %v2375
    %3574 = vmatpush.bf16.msra.mxu0 %v2371
    %3575 = vmatpush.bf16.msra.mxu0 %v2367
    %3576 = vmatpush.bf16.msra.mxu0 %v2363
    %3577 = vmatpush.bf16.msra.mxu0 %v2359
    %3578 = vmatmul.bf16.gmra.mxu0 %v728
    %v3579 = vpop.f32.mrf.mxu0
    %v3580 = vadd.f32 %v3566, %v3579
    %v3581 = vpop.f32.mrf.mxu0
    %v3582 = vadd.f32 %v3568, %v3581
    %3583 = vdwg.mxu0
    %3584 = vmatpush.bf16.msra.mxu0 %v2419
    %3585 = vmatpush.bf16.msra.mxu0 %v2415
    %3586 = vmatpush.bf16.msra.mxu0 %v2411
    %3587 = vmatpush.bf16.msra.mxu0 %v2407
    %3588 = vmatpush.bf16.msra.mxu0 %v2403
    %3589 = vmatpush.bf16.msra.mxu0 %v2399
    %3590 = vmatpush.bf16.msra.mxu0 %v2395
    %3591 = vmatpush.bf16.msra.mxu0 %v2391
    %3592 = vmatmul.bf16.gmra.mxu0 %v729
    %v3593 = vpop.f32.mrf.mxu0
    %v3594 = vadd.f32 %v3580, %v3593
    %v3595 = vpop.f32.mrf.mxu0
    %v3596 = vadd.f32 %v3582, %v3595
    %3597 = vdwg.mxu0
    %3598 = vmatpush.bf16.msra.mxu0 %v2451
    %3599 = vmatpush.bf16.msra.mxu0 %v2447
    %3600 = vmatpush.bf16.msra.mxu0 %v2443
    %3601 = vmatpush.bf16.msra.mxu0 %v2439
    %3602 = vmatpush.bf16.msra.mxu0 %v2435
    %3603 = vmatpush.bf16.msra.mxu0 %v2431
    %3604 = vmatpush.bf16.msra.mxu0 %v2427
    %3605 = vmatpush.bf16.msra.mxu0 %v2423
    %3606 = vmatmul.bf16.gmra.mxu0 %v730
    %v3607 = vpop.f32.mrf.mxu0
    %v3608 = vadd.f32 %v3594, %v3607
    %v3609 = vpop.f32.mrf.mxu0
    %v3610 = vadd.f32 %v3596, %v3609
    %3611 = vdwg.mxu0
    %3612 = vmatpush.bf16.msra.mxu0 %v2483
    %3613 = vmatpush.bf16.msra.mxu0 %v2479
    %3614 = vmatpush.bf16.msra.mxu0 %v2475
    %3615 = vmatpush.bf16.msra.mxu0 %v2471
    %3616 = vmatpush.bf16.msra.mxu0 %v2467
    %3617 = vmatpush.bf16.msra.mxu0 %v2463
    %3618 = vmatpush.bf16.msra.mxu0 %v2459
    %3619 = vmatpush.bf16.msra.mxu0 %v2455
    %3620 = vmatmul.bf16.gmra.mxu0 %v731
    %v3621 = vpop.f32.mrf.mxu0
    %v3622 = vadd.f32 %v3608, %v3621
    %v3623 = vpop.f32.mrf.mxu0
    %v3624 = vadd.f32 %v3610, %v3623
    %3625 = vdwg.mxu0
    %3626 = vmatpush.bf16.msra.mxu0 %v2515
    %3627 = vmatpush.bf16.msra.mxu0 %v2511
    %3628 = vmatpush.bf16.msra.mxu0 %v2507
    %3629 = vmatpush.bf16.msra.mxu0 %v2503
    %3630 = vmatpush.bf16.msra.mxu0 %v2499
    %3631 = vmatpush.bf16.msra.mxu0 %v2495
    %3632 = vmatpush.bf16.msra.mxu0 %v2491
    %3633 = vmatpush.bf16.msra.mxu0 %v2487
    %3634 = vmatmul.bf16.gmra.mxu0 %v732
    %v3635 = vpop.f32.mrf.mxu0
    %v3636 = vadd.f32 %v3622, %v3635
    %v3637 = vpop.f32.mrf.mxu0
    %v3638 = vadd.f32 %v3624, %v3637
    %3639 = vdwg.mxu0
    %3640 = vmatpush.bf16.msra.mxu0 %v2547
    %3641 = vmatpush.bf16.msra.mxu0 %v2543
    %3642 = vmatpush.bf16.msra.mxu0 %v2539
    %3643 = vmatpush.bf16.msra.mxu0 %v2535
    %3644 = vmatpush.bf16.msra.mxu0 %v2531
    %3645 = vmatpush.bf16.msra.mxu0 %v2527
    %3646 = vmatpush.bf16.msra.mxu0 %v2523
    %3647 = vmatpush.bf16.msra.mxu0 %v2519
    %3648 = vmatmul.bf16.gmra.mxu0 %v733
    %v3649 = vpop.f32.mrf.mxu0
    %v3650 = vadd.f32 %v3636, %v3649
    %v3651 = vpop.f32.mrf.mxu0
    %v3652 = vadd.f32 %v3638, %v3651
    %3653 = vdwg.mxu0
    %3654 = vmatpush.bf16.msra.mxu0 %v2579
    %3655 = vmatpush.bf16.msra.mxu0 %v2575
    %3656 = vmatpush.bf16.msra.mxu0 %v2571
    %3657 = vmatpush.bf16.msra.mxu0 %v2567
    %3658 = vmatpush.bf16.msra.mxu0 %v2563
    %3659 = vmatpush.bf16.msra.mxu0 %v2559
    %3660 = vmatpush.bf16.msra.mxu0 %v2555
    %3661 = vmatpush.bf16.msra.mxu0 %v2551
    %3662 = vmatmul.bf16.gmra.mxu0 %v734
    %v3663 = vpop.f32.mrf.mxu0
    %v3664 = vadd.f32 %v3650, %v3663
    %v3665 = vpop.f32.mrf.mxu0
    %v3666 = vadd.f32 %v3652, %v3665
    %3667 = vdwg.mxu0
    %3668 = vmatpush.bf16.msra.mxu0 %v2611
    %3669 = vmatpush.bf16.msra.mxu0 %v2607
    %3670 = vmatpush.bf16.msra.mxu0 %v2603
    %3671 = vmatpush.bf16.msra.mxu0 %v2599
    %3672 = vmatpush.bf16.msra.mxu0 %v2595
    %3673 = vmatpush.bf16.msra.mxu0 %v2591
    %3674 = vmatpush.bf16.msra.mxu0 %v2587
    %3675 = vmatpush.bf16.msra.mxu0 %v2583
    %3676 = vmatmul.bf16.gmra.mxu0 %v735
    %v3677 = vpop.f32.mrf.mxu0
    %v3678 = vadd.f32 %v3664, %v3677
    %v3679 = vpop.f32.mrf.mxu0
    %v3680 = vadd.f32 %v3666, %v3679
    %3681 = vdwg.mxu0
    %3682 = vmatpush.bf16.msra.mxu0 %v2643
    %3683 = vmatpush.bf16.msra.mxu0 %v2639
    %3684 = vmatpush.bf16.msra.mxu0 %v2635
    %3685 = vmatpush.bf16.msra.mxu0 %v2631
    %3686 = vmatpush.bf16.msra.mxu0 %v2627
    %3687 = vmatpush.bf16.msra.mxu0 %v2623
    %3688 = vmatpush.bf16.msra.mxu0 %v2619
    %3689 = vmatpush.bf16.msra.mxu0 %v2615
    %3690 = vmatmul.bf16.gmra.mxu0 %v736
    %v3691 = vpop.f32.mrf.mxu0
    %v3692 = vadd.f32 %v3678, %v3691
    %v3693 = vpop.f32.mrf.mxu0
    %v3694 = vadd.f32 %v3680, %v3693
    %3695 = vdwg.mxu0
    %3696 = vmatpush.bf16.msra.mxu0 %v2675
    %3697 = vmatpush.bf16.msra.mxu0 %v2671
    %3698 = vmatpush.bf16.msra.mxu0 %v2667
    %3699 = vmatpush.bf16.msra.mxu0 %v2663
    %3700 = vmatpush.bf16.msra.mxu0 %v2659
    %3701 = vmatpush.bf16.msra.mxu0 %v2655
    %3702 = vmatpush.bf16.msra.mxu0 %v2651
    %3703 = vmatpush.bf16.msra.mxu0 %v2647
    %3704 = vmatmul.bf16.gmra.mxu0 %v737
    %v3705 = vpop.f32.mrf.mxu0
    %v3706 = vadd.f32 %v3692, %v3705
    %v3707 = vpop.f32.mrf.mxu0
    %v3708 = vadd.f32 %v3694, %v3707
    %3709 = vdwg.mxu0
    %3710 = vmatpush.bf16.msra.mxu0 %v2707
    %3711 = vmatpush.bf16.msra.mxu0 %v2703
    %3712 = vmatpush.bf16.msra.mxu0 %v2699
    %3713 = vmatpush.bf16.msra.mxu0 %v2695
    %3714 = vmatpush.bf16.msra.mxu0 %v2691
    %3715 = vmatpush.bf16.msra.mxu0 %v2687
    %3716 = vmatpush.bf16.msra.mxu0 %v2683
    %3717 = vmatpush.bf16.msra.mxu0 %v2679
    %3718 = vmatmul.bf16.gmra.mxu0 %v738
    %v3719 = vpop.f32.mrf.mxu0
    %v3720 = vadd.f32 %v3706, %v3719
    %v3721 = vpop.f32.mrf.mxu0
    %v3722 = vadd.f32 %v3708, %v3721
    %3723 = vdwg.mxu0
    %3724 = vmatpush.bf16.msra.mxu0 %v2739
    %3725 = vmatpush.bf16.msra.mxu0 %v2735
    %3726 = vmatpush.bf16.msra.mxu0 %v2731
    %3727 = vmatpush.bf16.msra.mxu0 %v2727
    %3728 = vmatpush.bf16.msra.mxu0 %v2723
    %3729 = vmatpush.bf16.msra.mxu0 %v2719
    %3730 = vmatpush.bf16.msra.mxu0 %v2715
    %3731 = vmatpush.bf16.msra.mxu0 %v2711
    %3732 = vmatmul.bf16.gmra.mxu0 %v739
    %v3733 = vpop.f32.mrf.mxu0
    %v3734 = vadd.f32 %v3720, %v3733
    %v3735 = vpop.f32.mrf.mxu0
    %v3736 = vadd.f32 %v3722, %v3735
    %3737 = vdwg.mxu0
    %3738 = vmatpush.bf16.msra.mxu0 %v2771
    %3739 = vmatpush.bf16.msra.mxu0 %v2767
    %3740 = vmatpush.bf16.msra.mxu0 %v2763
    %3741 = vmatpush.bf16.msra.mxu0 %v2759
    %3742 = vmatpush.bf16.msra.mxu0 %v2755
    %3743 = vmatpush.bf16.msra.mxu0 %v2751
    %3744 = vmatpush.bf16.msra.mxu0 %v2747
    %3745 = vmatpush.bf16.msra.mxu0 %v2743
    %3746 = vmatmul.bf16.gmra.mxu0 %v740
    %v3747 = vpop.f32.mrf.mxu0
    %v3748 = vadd.f32 %v3734, %v3747
    %v3749 = vpop.f32.mrf.mxu0
    %v3750 = vadd.f32 %v3736, %v3749
    %3751 = vdwg.mxu0
    %3752 = vmatpush.bf16.msra.mxu0 %v2803
    %3753 = vmatpush.bf16.msra.mxu0 %v2799
    %3754 = vmatpush.bf16.msra.mxu0 %v2795
    %3755 = vmatpush.bf16.msra.mxu0 %v2791
    %3756 = vmatpush.bf16.msra.mxu0 %v2787
    %3757 = vmatpush.bf16.msra.mxu0 %v2783
    %3758 = vmatpush.bf16.msra.mxu0 %v2779
    %3759 = vmatpush.bf16.msra.mxu0 %v2775
    %3760 = vmatmul.bf16.gmra.mxu0 %v741
    %v3761 = vpop.f32.mrf.mxu0
    %v3762 = vadd.f32 %v3748, %v3761
    %v3763 = vpop.f32.mrf.mxu0
    %v3764 = vadd.f32 %v3750, %v3763
    %3765 = vdwg.mxu0
    %3766 = vmatpush.bf16.msra.mxu0 %v2324
    %3767 = vmatpush.bf16.msra.mxu0 %v2320
    %3768 = vmatpush.bf16.msra.mxu0 %v2316
    %3769 = vmatpush.bf16.msra.mxu0 %v2312
    %3770 = vmatpush.bf16.msra.mxu0 %v2308
    %3771 = vmatpush.bf16.msra.mxu0 %v2304
    %3772 = vmatpush.bf16.msra.mxu0 %v2300
    %3773 = vmatpush.bf16.msra.mxu0 %v2296
    %3774 = vmatmul.bf16.gmra.mxu0 %v726
    %v3775 = vpop.f32.mrf.mxu0
    %v3776 = vadd.f32 0.0, %v3775
    %v3777 = vpop.f32.mrf.mxu0
    %v3778 = vadd.f32 0.0, %v3777
    %3779 = vdwg.mxu0
    %3780 = vmatpush.bf16.msra.mxu0 %v2356
    %3781 = vmatpush.bf16.msra.mxu0 %v2352
    %3782 = vmatpush.bf16.msra.mxu0 %v2348
    %3783 = vmatpush.bf16.msra.mxu0 %v2344
    %3784 = vmatpush.bf16.msra.mxu0 %v2340
    %3785 = vmatpush.bf16.msra.mxu0 %v2336
    %3786 = vmatpush.bf16.msra.mxu0 %v2332
    %3787 = vmatpush.bf16.msra.mxu0 %v2328
    %3788 = vmatmul.bf16.gmra.mxu0 %v727
    %v3789 = vpop.f32.mrf.mxu0
    %v3790 = vadd.f32 %v3776, %v3789
    %v3791 = vpop.f32.mrf.mxu0
    %v3792 = vadd.f32 %v3778, %v3791
    %3793 = vdwg.mxu0
    %3794 = vmatpush.bf16.msra.mxu0 %v2388
    %3795 = vmatpush.bf16.msra.mxu0 %v2384
    %3796 = vmatpush.bf16.msra.mxu0 %v2380
    %3797 = vmatpush.bf16.msra.mxu0 %v2376
    %3798 = vmatpush.bf16.msra.mxu0 %v2372
    %3799 = vmatpush.bf16.msra.mxu0 %v2368
    %3800 = vmatpush.bf16.msra.mxu0 %v2364
    %3801 = vmatpush.bf16.msra.mxu0 %v2360
    %3802 = vmatmul.bf16.gmra.mxu0 %v728
    %v3803 = vpop.f32.mrf.mxu0
    %v3804 = vadd.f32 %v3790, %v3803
    %v3805 = vpop.f32.mrf.mxu0
    %v3806 = vadd.f32 %v3792, %v3805
    %3807 = vdwg.mxu0
    %3808 = vmatpush.bf16.msra.mxu0 %v2420
    %3809 = vmatpush.bf16.msra.mxu0 %v2416
    %3810 = vmatpush.bf16.msra.mxu0 %v2412
    %3811 = vmatpush.bf16.msra.mxu0 %v2408
    %3812 = vmatpush.bf16.msra.mxu0 %v2404
    %3813 = vmatpush.bf16.msra.mxu0 %v2400
    %3814 = vmatpush.bf16.msra.mxu0 %v2396
    %3815 = vmatpush.bf16.msra.mxu0 %v2392
    %3816 = vmatmul.bf16.gmra.mxu0 %v729
    %v3817 = vpop.f32.mrf.mxu0
    %v3818 = vadd.f32 %v3804, %v3817
    %v3819 = vpop.f32.mrf.mxu0
    %v3820 = vadd.f32 %v3806, %v3819
    %3821 = vdwg.mxu0
    %3822 = vmatpush.bf16.msra.mxu0 %v2452
    %3823 = vmatpush.bf16.msra.mxu0 %v2448
    %3824 = vmatpush.bf16.msra.mxu0 %v2444
    %3825 = vmatpush.bf16.msra.mxu0 %v2440
    %3826 = vmatpush.bf16.msra.mxu0 %v2436
    %3827 = vmatpush.bf16.msra.mxu0 %v2432
    %3828 = vmatpush.bf16.msra.mxu0 %v2428
    %3829 = vmatpush.bf16.msra.mxu0 %v2424
    %3830 = vmatmul.bf16.gmra.mxu0 %v730
    %v3831 = vpop.f32.mrf.mxu0
    %v3832 = vadd.f32 %v3818, %v3831
    %v3833 = vpop.f32.mrf.mxu0
    %v3834 = vadd.f32 %v3820, %v3833
    %3835 = vdwg.mxu0
    %3836 = vmatpush.bf16.msra.mxu0 %v2484
    %3837 = vmatpush.bf16.msra.mxu0 %v2480
    %3838 = vmatpush.bf16.msra.mxu0 %v2476
    %3839 = vmatpush.bf16.msra.mxu0 %v2472
    %3840 = vmatpush.bf16.msra.mxu0 %v2468
    %3841 = vmatpush.bf16.msra.mxu0 %v2464
    %3842 = vmatpush.bf16.msra.mxu0 %v2460
    %3843 = vmatpush.bf16.msra.mxu0 %v2456
    %3844 = vmatmul.bf16.gmra.mxu0 %v731
    %v3845 = vpop.f32.mrf.mxu0
    %v3846 = vadd.f32 %v3832, %v3845
    %v3847 = vpop.f32.mrf.mxu0
    %v3848 = vadd.f32 %v3834, %v3847
    %3849 = vdwg.mxu0
    %3850 = vmatpush.bf16.msra.mxu0 %v2516
    %3851 = vmatpush.bf16.msra.mxu0 %v2512
    %3852 = vmatpush.bf16.msra.mxu0 %v2508
    %3853 = vmatpush.bf16.msra.mxu0 %v2504
    %3854 = vmatpush.bf16.msra.mxu0 %v2500
    %3855 = vmatpush.bf16.msra.mxu0 %v2496
    %3856 = vmatpush.bf16.msra.mxu0 %v2492
    %3857 = vmatpush.bf16.msra.mxu0 %v2488
    %3858 = vmatmul.bf16.gmra.mxu0 %v732
    %v3859 = vpop.f32.mrf.mxu0
    %v3860 = vadd.f32 %v3846, %v3859
    %v3861 = vpop.f32.mrf.mxu0
    %v3862 = vadd.f32 %v3848, %v3861
    %3863 = vdwg.mxu0
    %3864 = vmatpush.bf16.msra.mxu0 %v2548
    %3865 = vmatpush.bf16.msra.mxu0 %v2544
    %3866 = vmatpush.bf16.msra.mxu0 %v2540
    %3867 = vmatpush.bf16.msra.mxu0 %v2536
    %3868 = vmatpush.bf16.msra.mxu0 %v2532
    %3869 = vmatpush.bf16.msra.mxu0 %v2528
    %3870 = vmatpush.bf16.msra.mxu0 %v2524
    %3871 = vmatpush.bf16.msra.mxu0 %v2520
    %3872 = vmatmul.bf16.gmra.mxu0 %v733
    %v3873 = vpop.f32.mrf.mxu0
    %v3874 = vadd.f32 %v3860, %v3873
    %v3875 = vpop.f32.mrf.mxu0
    %v3876 = vadd.f32 %v3862, %v3875
    %3877 = vdwg.mxu0
    %3878 = vmatpush.bf16.msra.mxu0 %v2580
    %3879 = vmatpush.bf16.msra.mxu0 %v2576
    %3880 = vmatpush.bf16.msra.mxu0 %v2572
    %3881 = vmatpush.bf16.msra.mxu0 %v2568
    %3882 = vmatpush.bf16.msra.mxu0 %v2564
    %3883 = vmatpush.bf16.msra.mxu0 %v2560
    %3884 = vmatpush.bf16.msra.mxu0 %v2556
    %3885 = vmatpush.bf16.msra.mxu0 %v2552
    %3886 = vmatmul.bf16.gmra.mxu0 %v734
    %v3887 = vpop.f32.mrf.mxu0
    %v3888 = vadd.f32 %v3874, %v3887
    %v3889 = vpop.f32.mrf.mxu0
    %v3890 = vadd.f32 %v3876, %v3889
    %3891 = vdwg.mxu0
    %3892 = vmatpush.bf16.msra.mxu0 %v2612
    %3893 = vmatpush.bf16.msra.mxu0 %v2608
    %3894 = vmatpush.bf16.msra.mxu0 %v2604
    %3895 = vmatpush.bf16.msra.mxu0 %v2600
    %3896 = vmatpush.bf16.msra.mxu0 %v2596
    %3897 = vmatpush.bf16.msra.mxu0 %v2592
    %3898 = vmatpush.bf16.msra.mxu0 %v2588
    %3899 = vmatpush.bf16.msra.mxu0 %v2584
    %3900 = vmatmul.bf16.gmra.mxu0 %v735
    %v3901 = vpop.f32.mrf.mxu0
    %v3902 = vadd.f32 %v3888, %v3901
    %v3903 = vpop.f32.mrf.mxu0
    %v3904 = vadd.f32 %v3890, %v3903
    %3905 = vdwg.mxu0
    %3906 = vmatpush.bf16.msra.mxu0 %v2644
    %3907 = vmatpush.bf16.msra.mxu0 %v2640
    %3908 = vmatpush.bf16.msra.mxu0 %v2636
    %3909 = vmatpush.bf16.msra.mxu0 %v2632
    %3910 = vmatpush.bf16.msra.mxu0 %v2628
    %3911 = vmatpush.bf16.msra.mxu0 %v2624
    %3912 = vmatpush.bf16.msra.mxu0 %v2620
    %3913 = vmatpush.bf16.msra.mxu0 %v2616
    %3914 = vmatmul.bf16.gmra.mxu0 %v736
    %v3915 = vpop.f32.mrf.mxu0
    %v3916 = vadd.f32 %v3902, %v3915
    %v3917 = vpop.f32.mrf.mxu0
    %v3918 = vadd.f32 %v3904, %v3917
    %3919 = vdwg.mxu0
    %3920 = vmatpush.bf16.msra.mxu0 %v2676
    %3921 = vmatpush.bf16.msra.mxu0 %v2672
    %3922 = vmatpush.bf16.msra.mxu0 %v2668
    %3923 = vmatpush.bf16.msra.mxu0 %v2664
    %3924 = vmatpush.bf16.msra.mxu0 %v2660
    %3925 = vmatpush.bf16.msra.mxu0 %v2656
    %3926 = vmatpush.bf16.msra.mxu0 %v2652
    %3927 = vmatpush.bf16.msra.mxu0 %v2648
    %3928 = vmatmul.bf16.gmra.mxu0 %v737
    %v3929 = vpop.f32.mrf.mxu0
    %v3930 = vadd.f32 %v3916, %v3929
    %v3931 = vpop.f32.mrf.mxu0
    %v3932 = vadd.f32 %v3918, %v3931
    %3933 = vdwg.mxu0
    %3934 = vmatpush.bf16.msra.mxu0 %v2708
    %3935 = vmatpush.bf16.msra.mxu0 %v2704
    %3936 = vmatpush.bf16.msra.mxu0 %v2700
    %3937 = vmatpush.bf16.msra.mxu0 %v2696
    %3938 = vmatpush.bf16.msra.mxu0 %v2692
    %3939 = vmatpush.bf16.msra.mxu0 %v2688
    %3940 = vmatpush.bf16.msra.mxu0 %v2684
    %3941 = vmatpush.bf16.msra.mxu0 %v2680
    %3942 = vmatmul.bf16.gmra.mxu0 %v738
    %v3943 = vpop.f32.mrf.mxu0
    %v3944 = vadd.f32 %v3930, %v3943
    %v3945 = vpop.f32.mrf.mxu0
    %v3946 = vadd.f32 %v3932, %v3945
    %3947 = vdwg.mxu0
    %3948 = vmatpush.bf16.msra.mxu0 %v2740
    %3949 = vmatpush.bf16.msra.mxu0 %v2736
    %3950 = vmatpush.bf16.msra.mxu0 %v2732
    %3951 = vmatpush.bf16.msra.mxu0 %v2728
    %3952 = vmatpush.bf16.msra.mxu0 %v2724
    %3953 = vmatpush.bf16.msra.mxu0 %v2720
    %3954 = vmatpush.bf16.msra.mxu0 %v2716
    %3955 = vmatpush.bf16.msra.mxu0 %v2712
    %3956 = vmatmul.bf16.gmra.mxu0 %v739
    %v3957 = vpop.f32.mrf.mxu0
    %v3958 = vadd.f32 %v3944, %v3957
    %v3959 = vpop.f32.mrf.mxu0
    %v3960 = vadd.f32 %v3946, %v3959
    %3961 = vdwg.mxu0
    %3962 = vmatpush.bf16.msra.mxu0 %v2772
    %3963 = vmatpush.bf16.msra.mxu0 %v2768
    %3964 = vmatpush.bf16.msra.mxu0 %v2764
    %3965 = vmatpush.bf16.msra.mxu0 %v2760
    %3966 = vmatpush.bf16.msra.mxu0 %v2756
    %3967 = vmatpush.bf16.msra.mxu0 %v2752
    %3968 = vmatpush.bf16.msra.mxu0 %v2748
    %3969 = vmatpush.bf16.msra.mxu0 %v2744
    %3970 = vmatmul.bf16.gmra.mxu0 %v740
    %v3971 = vpop.f32.mrf.mxu0
    %v3972 = vadd.f32 %v3958, %v3971
    %v3973 = vpop.f32.mrf.mxu0
    %v3974 = vadd.f32 %v3960, %v3973
    %3975 = vdwg.mxu0
    %3976 = vmatpush.bf16.msra.mxu0 %v2804
    %3977 = vmatpush.bf16.msra.mxu0 %v2800
    %3978 = vmatpush.bf16.msra.mxu0 %v2796
    %3979 = vmatpush.bf16.msra.mxu0 %v2792
    %3980 = vmatpush.bf16.msra.mxu0 %v2788
    %3981 = vmatpush.bf16.msra.mxu0 %v2784
    %3982 = vmatpush.bf16.msra.mxu0 %v2780
    %3983 = vmatpush.bf16.msra.mxu0 %v2776
    %3984 = vmatmul.bf16.gmra.mxu0 %v741
    %v3985 = vpop.f32.mrf.mxu0
    %v3986 = vadd.f32 %v3972, %v3985
    %v3987 = vpop.f32.mrf.mxu0
    %v3988 = vadd.f32 %v3974, %v3987
    %3989 = vdwg.mxu0
    %3990 = vmatpush.bf16.msra.mxu0 %v2325
    %3991 = vmatpush.bf16.msra.mxu0 %v2321
    %3992 = vmatpush.bf16.msra.mxu0 %v2317
    %3993 = vmatpush.bf16.msra.mxu0 %v2313
    %3994 = vmatpush.bf16.msra.mxu0 %v2309
    %3995 = vmatpush.bf16.msra.mxu0 %v2305
    %3996 = vmatpush.bf16.msra.mxu0 %v2301
    %3997 = vmatpush.bf16.msra.mxu0 %v2297
    %3998 = vmatmul.bf16.gmra.mxu0 %v726
    %v3999 = vpop.f32.mrf.mxu0
    %v4000 = vadd.f32 0.0, %v3999
    %v4001 = vpop.f32.mrf.mxu0
    %v4002 = vadd.f32 0.0, %v4001
    %4003 = vdwg.mxu0
    %4004 = vmatpush.bf16.msra.mxu0 %v2357
    %4005 = vmatpush.bf16.msra.mxu0 %v2353
    %4006 = vmatpush.bf16.msra.mxu0 %v2349
    %4007 = vmatpush.bf16.msra.mxu0 %v2345
    %4008 = vmatpush.bf16.msra.mxu0 %v2341
    %4009 = vmatpush.bf16.msra.mxu0 %v2337
    %4010 = vmatpush.bf16.msra.mxu0 %v2333
    %4011 = vmatpush.bf16.msra.mxu0 %v2329
    %4012 = vmatmul.bf16.gmra.mxu0 %v727
    %v4013 = vpop.f32.mrf.mxu0
    %v4014 = vadd.f32 %v4000, %v4013
    %v4015 = vpop.f32.mrf.mxu0
    %v4016 = vadd.f32 %v4002, %v4015
    %4017 = vdwg.mxu0
    %4018 = vmatpush.bf16.msra.mxu0 %v2389
    %4019 = vmatpush.bf16.msra.mxu0 %v2385
    %4020 = vmatpush.bf16.msra.mxu0 %v2381
    %4021 = vmatpush.bf16.msra.mxu0 %v2377
    %4022 = vmatpush.bf16.msra.mxu0 %v2373
    %4023 = vmatpush.bf16.msra.mxu0 %v2369
    %4024 = vmatpush.bf16.msra.mxu0 %v2365
    %4025 = vmatpush.bf16.msra.mxu0 %v2361
    %4026 = vmatmul.bf16.gmra.mxu0 %v728
    %v4027 = vpop.f32.mrf.mxu0
    %v4028 = vadd.f32 %v4014, %v4027
    %v4029 = vpop.f32.mrf.mxu0
    %v4030 = vadd.f32 %v4016, %v4029
    %4031 = vdwg.mxu0
    %4032 = vmatpush.bf16.msra.mxu0 %v2421
    %4033 = vmatpush.bf16.msra.mxu0 %v2417
    %4034 = vmatpush.bf16.msra.mxu0 %v2413
    %4035 = vmatpush.bf16.msra.mxu0 %v2409
    %4036 = vmatpush.bf16.msra.mxu0 %v2405
    %4037 = vmatpush.bf16.msra.mxu0 %v2401
    %4038 = vmatpush.bf16.msra.mxu0 %v2397
    %4039 = vmatpush.bf16.msra.mxu0 %v2393
    %4040 = vmatmul.bf16.gmra.mxu0 %v729
    %v4041 = vpop.f32.mrf.mxu0
    %v4042 = vadd.f32 %v4028, %v4041
    %v4043 = vpop.f32.mrf.mxu0
    %v4044 = vadd.f32 %v4030, %v4043
    %4045 = vdwg.mxu0
    %4046 = vmatpush.bf16.msra.mxu0 %v2453
    %4047 = vmatpush.bf16.msra.mxu0 %v2449
    %4048 = vmatpush.bf16.msra.mxu0 %v2445
    %4049 = vmatpush.bf16.msra.mxu0 %v2441
    %4050 = vmatpush.bf16.msra.mxu0 %v2437
    %4051 = vmatpush.bf16.msra.mxu0 %v2433
    %4052 = vmatpush.bf16.msra.mxu0 %v2429
    %4053 = vmatpush.bf16.msra.mxu0 %v2425
    %4054 = vmatmul.bf16.gmra.mxu0 %v730
    %v4055 = vpop.f32.mrf.mxu0
    %v4056 = vadd.f32 %v4042, %v4055
    %v4057 = vpop.f32.mrf.mxu0
    %v4058 = vadd.f32 %v4044, %v4057
    %4059 = vdwg.mxu0
    %4060 = vmatpush.bf16.msra.mxu0 %v2485
    %4061 = vmatpush.bf16.msra.mxu0 %v2481
    %4062 = vmatpush.bf16.msra.mxu0 %v2477
    %4063 = vmatpush.bf16.msra.mxu0 %v2473
    %4064 = vmatpush.bf16.msra.mxu0 %v2469
    %4065 = vmatpush.bf16.msra.mxu0 %v2465
    %4066 = vmatpush.bf16.msra.mxu0 %v2461
    %4067 = vmatpush.bf16.msra.mxu0 %v2457
    %4068 = vmatmul.bf16.gmra.mxu0 %v731
    %v4069 = vpop.f32.mrf.mxu0
    %v4070 = vadd.f32 %v4056, %v4069
    %v4071 = vpop.f32.mrf.mxu0
    %v4072 = vadd.f32 %v4058, %v4071
    %4073 = vdwg.mxu0
    %4074 = vmatpush.bf16.msra.mxu0 %v2517
    %4075 = vmatpush.bf16.msra.mxu0 %v2513
    %4076 = vmatpush.bf16.msra.mxu0 %v2509
    %4077 = vmatpush.bf16.msra.mxu0 %v2505
    %4078 = vmatpush.bf16.msra.mxu0 %v2501
    %4079 = vmatpush.bf16.msra.mxu0 %v2497
    %4080 = vmatpush.bf16.msra.mxu0 %v2493
    %4081 = vmatpush.bf16.msra.mxu0 %v2489
    %4082 = vmatmul.bf16.gmra.mxu0 %v732
    %v4083 = vpop.f32.mrf.mxu0
    %v4084 = vadd.f32 %v4070, %v4083
    %v4085 = vpop.f32.mrf.mxu0
    %v4086 = vadd.f32 %v4072, %v4085
    %4087 = vdwg.mxu0
    %4088 = vmatpush.bf16.msra.mxu0 %v2549
    %4089 = vmatpush.bf16.msra.mxu0 %v2545
    %4090 = vmatpush.bf16.msra.mxu0 %v2541
    %4091 = vmatpush.bf16.msra.mxu0 %v2537
    %4092 = vmatpush.bf16.msra.mxu0 %v2533
    %4093 = vmatpush.bf16.msra.mxu0 %v2529
    %4094 = vmatpush.bf16.msra.mxu0 %v2525
    %4095 = vmatpush.bf16.msra.mxu0 %v2521
    %4096 = vmatmul.bf16.gmra.mxu0 %v733
    %v4097 = vpop.f32.mrf.mxu0
    %v4098 = vadd.f32 %v4084, %v4097
    %v4099 = vpop.f32.mrf.mxu0
    %v4100 = vadd.f32 %v4086, %v4099
    %4101 = vdwg.mxu0
    %4102 = vmatpush.bf16.msra.mxu0 %v2581
    %4103 = vmatpush.bf16.msra.mxu0 %v2577
    %4104 = vmatpush.bf16.msra.mxu0 %v2573
    %4105 = vmatpush.bf16.msra.mxu0 %v2569
    %4106 = vmatpush.bf16.msra.mxu0 %v2565
    %4107 = vmatpush.bf16.msra.mxu0 %v2561
    %4108 = vmatpush.bf16.msra.mxu0 %v2557
    %4109 = vmatpush.bf16.msra.mxu0 %v2553
    %4110 = vmatmul.bf16.gmra.mxu0 %v734
    %v4111 = vpop.f32.mrf.mxu0
    %v4112 = vadd.f32 %v4098, %v4111
    %v4113 = vpop.f32.mrf.mxu0
    %v4114 = vadd.f32 %v4100, %v4113
    %4115 = vdwg.mxu0
    %4116 = vmatpush.bf16.msra.mxu0 %v2613
    %4117 = vmatpush.bf16.msra.mxu0 %v2609
    %4118 = vmatpush.bf16.msra.mxu0 %v2605
    %4119 = vmatpush.bf16.msra.mxu0 %v2601
    %4120 = vmatpush.bf16.msra.mxu0 %v2597
    %4121 = vmatpush.bf16.msra.mxu0 %v2593
    %4122 = vmatpush.bf16.msra.mxu0 %v2589
    %4123 = vmatpush.bf16.msra.mxu0 %v2585
    %4124 = vmatmul.bf16.gmra.mxu0 %v735
    %v4125 = vpop.f32.mrf.mxu0
    %v4126 = vadd.f32 %v4112, %v4125
    %v4127 = vpop.f32.mrf.mxu0
    %v4128 = vadd.f32 %v4114, %v4127
    %4129 = vdwg.mxu0
    %4130 = vmatpush.bf16.msra.mxu0 %v2645
    %4131 = vmatpush.bf16.msra.mxu0 %v2641
    %4132 = vmatpush.bf16.msra.mxu0 %v2637
    %4133 = vmatpush.bf16.msra.mxu0 %v2633
    %4134 = vmatpush.bf16.msra.mxu0 %v2629
    %4135 = vmatpush.bf16.msra.mxu0 %v2625
    %4136 = vmatpush.bf16.msra.mxu0 %v2621
    %4137 = vmatpush.bf16.msra.mxu0 %v2617
    %4138 = vmatmul.bf16.gmra.mxu0 %v736
    %v4139 = vpop.f32.mrf.mxu0
    %v4140 = vadd.f32 %v4126, %v4139
    %v4141 = vpop.f32.mrf.mxu0
    %v4142 = vadd.f32 %v4128, %v4141
    %4143 = vdwg.mxu0
    %4144 = vmatpush.bf16.msra.mxu0 %v2677
    %4145 = vmatpush.bf16.msra.mxu0 %v2673
    %4146 = vmatpush.bf16.msra.mxu0 %v2669
    %4147 = vmatpush.bf16.msra.mxu0 %v2665
    %4148 = vmatpush.bf16.msra.mxu0 %v2661
    %4149 = vmatpush.bf16.msra.mxu0 %v2657
    %4150 = vmatpush.bf16.msra.mxu0 %v2653
    %4151 = vmatpush.bf16.msra.mxu0 %v2649
    %4152 = vmatmul.bf16.gmra.mxu0 %v737
    %v4153 = vpop.f32.mrf.mxu0
    %v4154 = vadd.f32 %v4140, %v4153
    %v4155 = vpop.f32.mrf.mxu0
    %v4156 = vadd.f32 %v4142, %v4155
    %4157 = vdwg.mxu0
    %4158 = vmatpush.bf16.msra.mxu0 %v2709
    %4159 = vmatpush.bf16.msra.mxu0 %v2705
    %4160 = vmatpush.bf16.msra.mxu0 %v2701
    %4161 = vmatpush.bf16.msra.mxu0 %v2697
    %4162 = vmatpush.bf16.msra.mxu0 %v2693
    %4163 = vmatpush.bf16.msra.mxu0 %v2689
    %4164 = vmatpush.bf16.msra.mxu0 %v2685
    %4165 = vmatpush.bf16.msra.mxu0 %v2681
    %4166 = vmatmul.bf16.gmra.mxu0 %v738
    %v4167 = vpop.f32.mrf.mxu0
    %v4168 = vadd.f32 %v4154, %v4167
    %v4169 = vpop.f32.mrf.mxu0
    %v4170 = vadd.f32 %v4156, %v4169
    %4171 = vdwg.mxu0
    %4172 = vmatpush.bf16.msra.mxu0 %v2741
    %4173 = vmatpush.bf16.msra.mxu0 %v2737
    %4174 = vmatpush.bf16.msra.mxu0 %v2733
    %4175 = vmatpush.bf16.msra.mxu0 %v2729
    %4176 = vmatpush.bf16.msra.mxu0 %v2725
    %4177 = vmatpush.bf16.msra.mxu0 %v2721
    %4178 = vmatpush.bf16.msra.mxu0 %v2717
    %4179 = vmatpush.bf16.msra.mxu0 %v2713
    %4180 = vmatmul.bf16.gmra.mxu0 %v739
    %v4181 = vpop.f32.mrf.mxu0
    %v4182 = vadd.f32 %v4168, %v4181
    %v4183 = vpop.f32.mrf.mxu0
    %v4184 = vadd.f32 %v4170, %v4183
    %4185 = vdwg.mxu0
    %4186 = vmatpush.bf16.msra.mxu0 %v2773
    %4187 = vmatpush.bf16.msra.mxu0 %v2769
    %4188 = vmatpush.bf16.msra.mxu0 %v2765
    %4189 = vmatpush.bf16.msra.mxu0 %v2761
    %4190 = vmatpush.bf16.msra.mxu0 %v2757
    %4191 = vmatpush.bf16.msra.mxu0 %v2753
    %4192 = vmatpush.bf16.msra.mxu0 %v2749
    %4193 = vmatpush.bf16.msra.mxu0 %v2745
    %4194 = vmatmul.bf16.gmra.mxu0 %v740
    %v4195 = vpop.f32.mrf.mxu0
    %v4196 = vadd.f32 %v4182, %v4195
    %v4197 = vpop.f32.mrf.mxu0
    %v4198 = vadd.f32 %v4184, %v4197
    %4199 = vdwg.mxu0
    %4200 = vmatpush.bf16.msra.mxu0 %v2805
    %4201 = vmatpush.bf16.msra.mxu0 %v2801
    %4202 = vmatpush.bf16.msra.mxu0 %v2797
    %4203 = vmatpush.bf16.msra.mxu0 %v2793
    %4204 = vmatpush.bf16.msra.mxu0 %v2789
    %4205 = vmatpush.bf16.msra.mxu0 %v2785
    %4206 = vmatpush.bf16.msra.mxu0 %v2781
    %4207 = vmatpush.bf16.msra.mxu0 %v2777
    %4208 = vmatmul.bf16.gmra.mxu0 %v741
    %v4209 = vpop.f32.mrf.mxu0
    %v4210 = vadd.f32 %v4196, %v4209
    %v4211 = vpop.f32.mrf.mxu0
    %v4212 = vadd.f32 %v4198, %v4211
    %4213 = vdwg.mxu0
    %v4214 = vadd.f32 %v142, %v3538
    %v4215 = vadd.f32 %v143, %v3762
    %v4216 = vadd.f32 %v144, %v3986
    %v4217 = vadd.f32 %v145, %v4210
    %v4218 = vadd.f32 %v146, %v3540
    %v4219 = vadd.f32 %v147, %v3764
    %v4220 = vadd.f32 %v148, %v3988
    %v4221 = vadd.f32 %v149, %v4212
    %4222 = vst [vmem:[#allocation2] sm:$0xff] %v4214
    %4223 = vst [vmem:[#allocation2 + $0x8] sm:$0xff] %v4215
    %4224 = vst [vmem:[#allocation2 + $0x10] sm:$0xff] %v4216
    %4225 = vst [vmem:[#allocation2 + $0x18] sm:$0xff] %v4217
    %4226 = vst [vmem:[#allocation2 + $0x20] sm:$0xff] %v4218
    %4227 = vst [vmem:[#allocation2 + $0x28] sm:$0xff] %v4219
    %4228 = vst [vmem:[#allocation2 + $0x30] sm:$0xff] %v4220
    %4229 = vst [vmem:[#allocation2 + $0x38] sm:$0xff] %v4221
    // Predicated region
    $region62: #{tpu_custom_call.1} parent=1 // pred_check
      %p4230 = pneg %p130
    $region63: #{tpu_custom_call.1} parent=1 // pred_check_branch
      %4232 = sbr.rel (%p4230) target = $region65
    $region64: #{tpu_custom_call.1} parent=1 // pred_region
      %v4233 = vld [vmem:[#allocation2] sm:$0xff]
      %v4234 = vld [vmem:[#allocation2 + $0x8] sm:$0xff]
      %v4235 = vld [vmem:[#allocation2 + $0x10] sm:$0xff]
      %v4236 = vld [vmem:[#allocation2 + $0x18] sm:$0xff]
      %v4237 = vld [vmem:[#allocation2 + $0x20] sm:$0xff]
      %v4238 = vld [vmem:[#allocation2 + $0x28] sm:$0xff]
      %v4239 = vld [vmem:[#allocation2 + $0x30] sm:$0xff]
      %v4240 = vld [vmem:[#allocation2 + $0x38] sm:$0xff]
      %v4241 = vld [vmem:[#allocation8] sm:$0xf]
      %v4243 = vperm.slane %v4241, 0
      %v4244 = vperm.slane %v4241, 1
      %v4245 = vperm.slane %v4241, 2
      %v4246 = vperm.slane %v4241, 3
      %v4251 = vadd.f32 %v4233, %v4243
      %v4252 = vadd.f32 %v4234, %v4244
      %v4253 = vadd.f32 %v4235, %v4245
      %v4254 = vadd.f32 %v4236, %v4246
      %v4255 = vadd.f32 %v4237, %v4243
      %v4256 = vadd.f32 %v4238, %v4244
      %v4257 = vadd.f32 %v4239, %v4245
      %v4258 = vadd.f32 %v4240, %v4246
      %v4259 = vmax.f32 %v4251, 0.0
      %v4260 = vmax.f32 %v4252, 0.0
      %v4261 = vmax.f32 %v4253, 0.0
      %v4262 = vmax.f32 %v4254, 0.0
      %v4263 = vmax.f32 %v4255, 0.0
      %v4264 = vmax.f32 %v4256, 0.0
      %v4265 = vmax.f32 %v4257, 0.0
      %v4266 = vmax.f32 %v4258, 0.0
      %v4267 = vpack.c.bf16 %v4263, %v4259
      %v4268 = vpack.c.bf16 %v4264, %v4260
      %v4269 = vpack.c.bf16 %v4265, %v4261
      %v4270 = vpack.c.bf16 %v4266, %v4262
      %v4271 = vld [vmem:[#allocation9] sm:$0xff]
      %v4272 = vld [vmem:[#allocation9 + $0x8] sm:$0xff]
      %v4273 = vld [vmem:[#allocation9 + $0x10] sm:$0xff]
      %v4274 = vld [vmem:[#allocation9 + $0x18] sm:$0xff]
      %v4275 = vld [vmem:[#allocation9 + $0x20] sm:$0xff]
      %v4276 = vld [vmem:[#allocation9 + $0x28] sm:$0xff]
      %v4277 = vld [vmem:[#allocation9 + $0x30] sm:$0xff]
      %v4278 = vld [vmem:[#allocation9 + $0x38] sm:$0xff]
      %v4279 = vld [vmem:[#allocation9 + $0x40] sm:$0xff]
      %v4280 = vld [vmem:[#allocation9 + $0x48] sm:$0xff]
      %v4281 = vld [vmem:[#allocation9 + $0x50] sm:$0xff]
      %v4282 = vld [vmem:[#allocation9 + $0x58] sm:$0xff]
      %v4283 = vld [vmem:[#allocation9 + $0x60] sm:$0xff]
      %v4284 = vld [vmem:[#allocation9 + $0x68] sm:$0xff]
      %v4285 = vld [vmem:[#allocation9 + $0x70] sm:$0xff]
      %v4286 = vld [vmem:[#allocation9 + $0x78] sm:$0xff]
      %v4287 = vld [vmem:[#allocation9 + $0x80] sm:$0xff]
      %v4288 = vld [vmem:[#allocation9 + $0x88] sm:$0xff]
      %v4289 = vld [vmem:[#allocation9 + $0x90] sm:$0xff]
      %v4290 = vld [vmem:[#allocation9 + $0x98] sm:$0xff]
      %v4291 = vld [vmem:[#allocation9 + $0xa0] sm:$0xff]
      %v4292 = vld [vmem:[#allocation9 + $0xa8] sm:$0xff]
      %v4293 = vld [vmem:[#allocation9 + $0xb0] sm:$0xff]
      %v4294 = vld [vmem:[#allocation9 + $0xb8] sm:$0xff]
      %v4295 = vld [vmem:[#allocation9 + $0xc0] sm:$0xff]
      %v4296 = vld [vmem:[#allocation9 + $0xc8] sm:$0xff]
      %v4297 = vld [vmem:[#allocation9 + $0xd0] sm:$0xff]
      %v4298 = vld [vmem:[#allocation9 + $0xd8] sm:$0xff]
      %v4299 = vld [vmem:[#allocation9 + $0xe0] sm:$0xff]
      %v4300 = vld [vmem:[#allocation9 + $0xe8] sm:$0xff]
      %v4301 = vld [vmem:[#allocation9 + $0xf0] sm:$0xff]
      %v4302 = vld [vmem:[#allocation9 + $0xf8] sm:$0xff]
      %v4303 = vld [vmem:[#allocation9 + $0x100] sm:$0xff]
      %v4304 = vld [vmem:[#allocation9 + $0x108] sm:$0xff]
      %v4305 = vld [vmem:[#allocation9 + $0x110] sm:$0xff]
      %v4306 = vld [vmem:[#allocation9 + $0x118] sm:$0xff]
      %v4307 = vld [vmem:[#allocation9 + $0x120] sm:$0xff]
      %v4308 = vld [vmem:[#allocation9 + $0x128] sm:$0xff]
      %v4309 = vld [vmem:[#allocation9 + $0x130] sm:$0xff]
      %v4310 = vld [vmem:[#allocation9 + $0x138] sm:$0xff]
      %v4311 = vld [vmem:[#allocation9 + $0x140] sm:$0xff]
      %v4312 = vld [vmem:[#allocation9 + $0x148] sm:$0xff]
      %v4313 = vld [vmem:[#allocation9 + $0x150] sm:$0xff]
      %v4314 = vld [vmem:[#allocation9 + $0x158] sm:$0xff]
      %v4315 = vld [vmem:[#allocation9 + $0x160] sm:$0xff]
      %v4316 = vld [vmem:[#allocation9 + $0x168] sm:$0xff]
      %v4317 = vld [vmem:[#allocation9 + $0x170] sm:$0xff]
      %v4318 = vld [vmem:[#allocation9 + $0x178] sm:$0xff]
      %v4319 = vld [vmem:[#allocation9 + $0x180] sm:$0xff]
      %v4320 = vld [vmem:[#allocation9 + $0x188] sm:$0xff]
      %v4321 = vld [vmem:[#allocation9 + $0x190] sm:$0xff]
      %v4322 = vld [vmem:[#allocation9 + $0x198] sm:$0xff]
      %v4323 = vld [vmem:[#allocation9 + $0x1a0] sm:$0xff]
      %v4324 = vld [vmem:[#allocation9 + $0x1a8] sm:$0xff]
      %v4325 = vld [vmem:[#allocation9 + $0x1b0] sm:$0xff]
      %v4326 = vld [vmem:[#allocation9 + $0x1b8] sm:$0xff]
      %v4327 = vld [vmem:[#allocation9 + $0x1c0] sm:$0xff]
      %v4328 = vld [vmem:[#allocation9 + $0x1c8] sm:$0xff]
      %v4329 = vld [vmem:[#allocation9 + $0x1d0] sm:$0xff]
      %v4330 = vld [vmem:[#allocation9 + $0x1d8] sm:$0xff]
      %v4331 = vld [vmem:[#allocation9 + $0x1e0] sm:$0xff]
      %v4332 = vld [vmem:[#allocation9 + $0x1e8] sm:$0xff]
      %v4333 = vld [vmem:[#allocation9 + $0x1f0] sm:$0xff]
      %v4334 = vld [vmem:[#allocation9 + $0x1f8] sm:$0xff]
      %v4335 = vld [vmem:[#allocation9 + $0x200] sm:$0xff]
      %v4336 = vld [vmem:[#allocation9 + $0x208] sm:$0xff]
      %v4337 = vld [vmem:[#allocation9 + $0x210] sm:$0xff]
      %v4338 = vld [vmem:[#allocation9 + $0x218] sm:$0xff]
      %v4339 = vld [vmem:[#allocation9 + $0x220] sm:$0xff]
      %v4340 = vld [vmem:[#allocation9 + $0x228] sm:$0xff]
      %v4341 = vld [vmem:[#allocation9 + $0x230] sm:$0xff]
      %v4342 = vld [vmem:[#allocation9 + $0x238] sm:$0xff]
      %v4343 = vld [vmem:[#allocation9 + $0x240] sm:$0xff]
      %v4344 = vld [vmem:[#allocation9 + $0x248] sm:$0xff]
      %v4345 = vld [vmem:[#allocation9 + $0x250] sm:$0xff]
      %v4346 = vld [vmem:[#allocation9 + $0x258] sm:$0xff]
      %v4347 = vld [vmem:[#allocation9 + $0x260] sm:$0xff]
      %v4348 = vld [vmem:[#allocation9 + $0x268] sm:$0xff]
      %v4349 = vld [vmem:[#allocation9 + $0x270] sm:$0xff]
      %v4350 = vld [vmem:[#allocation9 + $0x278] sm:$0xff]
      %v4351 = vld [vmem:[#allocation9 + $0x280] sm:$0xff]
      %v4352 = vld [vmem:[#allocation9 + $0x288] sm:$0xff]
      %v4353 = vld [vmem:[#allocation9 + $0x290] sm:$0xff]
      %v4354 = vld [vmem:[#allocation9 + $0x298] sm:$0xff]
      %v4355 = vld [vmem:[#allocation9 + $0x2a0] sm:$0xff]
      %v4356 = vld [vmem:[#allocation9 + $0x2a8] sm:$0xff]
      %v4357 = vld [vmem:[#allocation9 + $0x2b0] sm:$0xff]
      %v4358 = vld [vmem:[#allocation9 + $0x2b8] sm:$0xff]
      %v4359 = vld [vmem:[#allocation9 + $0x2c0] sm:$0xff]
      %v4360 = vld [vmem:[#allocation9 + $0x2c8] sm:$0xff]
      %v4361 = vld [vmem:[#allocation9 + $0x2d0] sm:$0xff]
      %v4362 = vld [vmem:[#allocation9 + $0x2d8] sm:$0xff]
      %v4363 = vld [vmem:[#allocation9 + $0x2e0] sm:$0xff]
      %v4364 = vld [vmem:[#allocation9 + $0x2e8] sm:$0xff]
      %v4365 = vld [vmem:[#allocation9 + $0x2f0] sm:$0xff]
      %v4366 = vld [vmem:[#allocation9 + $0x2f8] sm:$0xff]
      %v4367 = vld [vmem:[#allocation9 + $0x300] sm:$0xff]
      %v4368 = vld [vmem:[#allocation9 + $0x308] sm:$0xff]
      %v4369 = vld [vmem:[#allocation9 + $0x310] sm:$0xff]
      %v4370 = vld [vmem:[#allocation9 + $0x318] sm:$0xff]
      %v4371 = vld [vmem:[#allocation9 + $0x320] sm:$0xff]
      %v4372 = vld [vmem:[#allocation9 + $0x328] sm:$0xff]
      %v4373 = vld [vmem:[#allocation9 + $0x330] sm:$0xff]
      %v4374 = vld [vmem:[#allocation9 + $0x338] sm:$0xff]
      %v4375 = vld [vmem:[#allocation9 + $0x340] sm:$0xff]
      %v4376 = vld [vmem:[#allocation9 + $0x348] sm:$0xff]
      %v4377 = vld [vmem:[#allocation9 + $0x350] sm:$0xff]
      %v4378 = vld [vmem:[#allocation9 + $0x358] sm:$0xff]
      %v4379 = vld [vmem:[#allocation9 + $0x360] sm:$0xff]
      %v4380 = vld [vmem:[#allocation9 + $0x368] sm:$0xff]
      %v4381 = vld [vmem:[#allocation9 + $0x370] sm:$0xff]
      %v4382 = vld [vmem:[#allocation9 + $0x378] sm:$0xff]
      %v4383 = vld [vmem:[#allocation9 + $0x380] sm:$0xff]
      %v4384 = vld [vmem:[#allocation9 + $0x388] sm:$0xff]
      %v4385 = vld [vmem:[#allocation9 + $0x390] sm:$0xff]
      %v4386 = vld [vmem:[#allocation9 + $0x398] sm:$0xff]
      %v4387 = vld [vmem:[#allocation9 + $0x3a0] sm:$0xff]
      %v4388 = vld [vmem:[#allocation9 + $0x3a8] sm:$0xff]
      %v4389 = vld [vmem:[#allocation9 + $0x3b0] sm:$0xff]
      %v4390 = vld [vmem:[#allocation9 + $0x3b8] sm:$0xff]
      %v4391 = vld [vmem:[#allocation9 + $0x3c0] sm:$0xff]
      %v4392 = vld [vmem:[#allocation9 + $0x3c8] sm:$0xff]
      %v4393 = vld [vmem:[#allocation9 + $0x3d0] sm:$0xff]
      %v4394 = vld [vmem:[#allocation9 + $0x3d8] sm:$0xff]
      %v4395 = vld [vmem:[#allocation9 + $0x3e0] sm:$0xff]
      %v4396 = vld [vmem:[#allocation9 + $0x3e8] sm:$0xff]
      %v4397 = vld [vmem:[#allocation9 + $0x3f0] sm:$0xff]
      %v4398 = vld [vmem:[#allocation9 + $0x3f8] sm:$0xff]
      %v4399 = vld [vmem:[#allocation11] sm:$0xf]
      %v4401 = vperm.slane %v4399, 0
      %v4402 = vperm.slane %v4399, 1
      %v4403 = vperm.slane %v4399, 2
      %v4404 = vperm.slane %v4399, 3
      %v4537 = vunpack.c.l.b16 %v4271
      %v4538 = vunpack.c.h.b16 %v4271
      %v4539 = vunpack.c.l.b16 %v4272
      %v4540 = vunpack.c.h.b16 %v4272
      %v4541 = vunpack.c.l.b16 %v4273
      %v4542 = vunpack.c.h.b16 %v4273
      %v4543 = vunpack.c.l.b16 %v4274
      %v4544 = vunpack.c.h.b16 %v4274
      %v4545 = vunpack.c.l.b16 %v4275
      %v4546 = vunpack.c.h.b16 %v4275
      %v4547 = vunpack.c.l.b16 %v4276
      %v4548 = vunpack.c.h.b16 %v4276
      %v4549 = vunpack.c.l.b16 %v4277
      %v4550 = vunpack.c.h.b16 %v4277
      %v4551 = vunpack.c.l.b16 %v4278
      %v4552 = vunpack.c.h.b16 %v4278
      %v4553 = vunpack.c.l.b16 %v4279
      %v4554 = vunpack.c.h.b16 %v4279
      %v4555 = vunpack.c.l.b16 %v4280
      %v4556 = vunpack.c.h.b16 %v4280
      %v4557 = vunpack.c.l.b16 %v4281
      %v4558 = vunpack.c.h.b16 %v4281
      %v4559 = vunpack.c.l.b16 %v4282
      %v4560 = vunpack.c.h.b16 %v4282
      %v4561 = vunpack.c.l.b16 %v4283
      %v4562 = vunpack.c.h.b16 %v4283
      %v4563 = vunpack.c.l.b16 %v4284
      %v4564 = vunpack.c.h.b16 %v4284
      %v4565 = vunpack.c.l.b16 %v4285
      %v4566 = vunpack.c.h.b16 %v4285
      %v4567 = vunpack.c.l.b16 %v4286
      %v4568 = vunpack.c.h.b16 %v4286
      %v4569 = vunpack.c.l.b16 %v4287
      %v4570 = vunpack.c.h.b16 %v4287
      %v4571 = vunpack.c.l.b16 %v4288
      %v4572 = vunpack.c.h.b16 %v4288
      %v4573 = vunpack.c.l.b16 %v4289
      %v4574 = vunpack.c.h.b16 %v4289
      %v4575 = vunpack.c.l.b16 %v4290
      %v4576 = vunpack.c.h.b16 %v4290
      %v4577 = vunpack.c.l.b16 %v4291
      %v4578 = vunpack.c.h.b16 %v4291
      %v4579 = vunpack.c.l.b16 %v4292
      %v4580 = vunpack.c.h.b16 %v4292
      %v4581 = vunpack.c.l.b16 %v4293
      %v4582 = vunpack.c.h.b16 %v4293
      %v4583 = vunpack.c.l.b16 %v4294
      %v4584 = vunpack.c.h.b16 %v4294
      %v4585 = vunpack.c.l.b16 %v4295
      %v4586 = vunpack.c.h.b16 %v4295
      %v4587 = vunpack.c.l.b16 %v4296
      %v4588 = vunpack.c.h.b16 %v4296
      %v4589 = vunpack.c.l.b16 %v4297
      %v4590 = vunpack.c.h.b16 %v4297
      %v4591 = vunpack.c.l.b16 %v4298
      %v4592 = vunpack.c.h.b16 %v4298
      %v4593 = vunpack.c.l.b16 %v4299
      %v4594 = vunpack.c.h.b16 %v4299
      %v4595 = vunpack.c.l.b16 %v4300
      %v4596 = vunpack.c.h.b16 %v4300
      %v4597 = vunpack.c.l.b16 %v4301
      %v4598 = vunpack.c.h.b16 %v4301
      %v4599 = vunpack.c.l.b16 %v4302
      %v4600 = vunpack.c.h.b16 %v4302
      %v4601 = vunpack.c.l.b16 %v4303
      %v4602 = vunpack.c.h.b16 %v4303
      %v4603 = vunpack.c.l.b16 %v4304
      %v4604 = vunpack.c.h.b16 %v4304
      %v4605 = vunpack.c.l.b16 %v4305
      %v4606 = vunpack.c.h.b16 %v4305
      %v4607 = vunpack.c.l.b16 %v4306
      %v4608 = vunpack.c.h.b16 %v4306
      %v4609 = vunpack.c.l.b16 %v4307
      %v4610 = vunpack.c.h.b16 %v4307
      %v4611 = vunpack.c.l.b16 %v4308
      %v4612 = vunpack.c.h.b16 %v4308
      %v4613 = vunpack.c.l.b16 %v4309
      %v4614 = vunpack.c.h.b16 %v4309
      %v4615 = vunpack.c.l.b16 %v4310
      %v4616 = vunpack.c.h.b16 %v4310
      %v4617 = vunpack.c.l.b16 %v4311
      %v4618 = vunpack.c.h.b16 %v4311
      %v4619 = vunpack.c.l.b16 %v4312
      %v4620 = vunpack.c.h.b16 %v4312
      %v4621 = vunpack.c.l.b16 %v4313
      %v4622 = vunpack.c.h.b16 %v4313
      %v4623 = vunpack.c.l.b16 %v4314
      %v4624 = vunpack.c.h.b16 %v4314
      %v4625 = vunpack.c.l.b16 %v4315
      %v4626 = vunpack.c.h.b16 %v4315
      %v4627 = vunpack.c.l.b16 %v4316
      %v4628 = vunpack.c.h.b16 %v4316
      %v4629 = vunpack.c.l.b16 %v4317
      %v4630 = vunpack.c.h.b16 %v4317
      %v4631 = vunpack.c.l.b16 %v4318
      %v4632 = vunpack.c.h.b16 %v4318
      %v4633 = vunpack.c.l.b16 %v4319
      %v4634 = vunpack.c.h.b16 %v4319
      %v4635 = vunpack.c.l.b16 %v4320
      %v4636 = vunpack.c.h.b16 %v4320
      %v4637 = vunpack.c.l.b16 %v4321
      %v4638 = vunpack.c.h.b16 %v4321
      %v4639 = vunpack.c.l.b16 %v4322
      %v4640 = vunpack.c.h.b16 %v4322
      %v4641 = vunpack.c.l.b16 %v4323
      %v4642 = vunpack.c.h.b16 %v4323
      %v4643 = vunpack.c.l.b16 %v4324
      %v4644 = vunpack.c.h.b16 %v4324
      %v4645 = vunpack.c.l.b16 %v4325
      %v4646 = vunpack.c.h.b16 %v4325
      %v4647 = vunpack.c.l.b16 %v4326
      %v4648 = vunpack.c.h.b16 %v4326
      %v4649 = vunpack.c.l.b16 %v4327
      %v4650 = vunpack.c.h.b16 %v4327
      %v4651 = vunpack.c.l.b16 %v4328
      %v4652 = vunpack.c.h.b16 %v4328
      %v4653 = vunpack.c.l.b16 %v4329
      %v4654 = vunpack.c.h.b16 %v4329
      %v4655 = vunpack.c.l.b16 %v4330
      %v4656 = vunpack.c.h.b16 %v4330
      %v4657 = vunpack.c.l.b16 %v4331
      %v4658 = vunpack.c.h.b16 %v4331
      %v4659 = vunpack.c.l.b16 %v4332
      %v4660 = vunpack.c.h.b16 %v4332
      %v4661 = vunpack.c.l.b16 %v4333
      %v4662 = vunpack.c.h.b16 %v4333
      %v4663 = vunpack.c.l.b16 %v4334
      %v4664 = vunpack.c.h.b16 %v4334
      %v4665 = vunpack.c.l.b16 %v4335
      %v4666 = vunpack.c.h.b16 %v4335
      %v4667 = vunpack.c.l.b16 %v4336
      %v4668 = vunpack.c.h.b16 %v4336
      %v4669 = vunpack.c.l.b16 %v4337
      %v4670 = vunpack.c.h.b16 %v4337
      %v4671 = vunpack.c.l.b16 %v4338
      %v4672 = vunpack.c.h.b16 %v4338
      %v4673 = vunpack.c.l.b16 %v4339
      %v4674 = vunpack.c.h.b16 %v4339
      %v4675 = vunpack.c.l.b16 %v4340
      %v4676 = vunpack.c.h.b16 %v4340
      %v4677 = vunpack.c.l.b16 %v4341
      %v4678 = vunpack.c.h.b16 %v4341
      %v4679 = vunpack.c.l.b16 %v4342
      %v4680 = vunpack.c.h.b16 %v4342
      %v4681 = vunpack.c.l.b16 %v4343
      %v4682 = vunpack.c.h.b16 %v4343
      %v4683 = vunpack.c.l.b16 %v4344
      %v4684 = vunpack.c.h.b16 %v4344
      %v4685 = vunpack.c.l.b16 %v4345
      %v4686 = vunpack.c.h.b16 %v4345
      %v4687 = vunpack.c.l.b16 %v4346
      %v4688 = vunpack.c.h.b16 %v4346
      %v4689 = vunpack.c.l.b16 %v4347
      %v4690 = vunpack.c.h.b16 %v4347
      %v4691 = vunpack.c.l.b16 %v4348
      %v4692 = vunpack.c.h.b16 %v4348
      %v4693 = vunpack.c.l.b16 %v4349
      %v4694 = vunpack.c.h.b16 %v4349
      %v4695 = vunpack.c.l.b16 %v4350
      %v4696 = vunpack.c.h.b16 %v4350
      %v4697 = vunpack.c.l.b16 %v4351
      %v4698 = vunpack.c.h.b16 %v4351
      %v4699 = vunpack.c.l.b16 %v4352
      %v4700 = vunpack.c.h.b16 %v4352
      %v4701 = vunpack.c.l.b16 %v4353
      %v4702 = vunpack.c.h.b16 %v4353
      %v4703 = vunpack.c.l.b16 %v4354
      %v4704 = vunpack.c.h.b16 %v4354
      %v4705 = vunpack.c.l.b16 %v4355
      %v4706 = vunpack.c.h.b16 %v4355
      %v4707 = vunpack.c.l.b16 %v4356
      %v4708 = vunpack.c.h.b16 %v4356
      %v4709 = vunpack.c.l.b16 %v4357
      %v4710 = vunpack.c.h.b16 %v4357
      %v4711 = vunpack.c.l.b16 %v4358
      %v4712 = vunpack.c.h.b16 %v4358
      %v4713 = vunpack.c.l.b16 %v4359
      %v4714 = vunpack.c.h.b16 %v4359
      %v4715 = vunpack.c.l.b16 %v4360
      %v4716 = vunpack.c.h.b16 %v4360
      %v4717 = vunpack.c.l.b16 %v4361
      %v4718 = vunpack.c.h.b16 %v4361
      %v4719 = vunpack.c.l.b16 %v4362
      %v4720 = vunpack.c.h.b16 %v4362
      %v4721 = vunpack.c.l.b16 %v4363
      %v4722 = vunpack.c.h.b16 %v4363
      %v4723 = vunpack.c.l.b16 %v4364
      %v4724 = vunpack.c.h.b16 %v4364
      %v4725 = vunpack.c.l.b16 %v4365
      %v4726 = vunpack.c.h.b16 %v4365
      %v4727 = vunpack.c.l.b16 %v4366
      %v4728 = vunpack.c.h.b16 %v4366
      %v4729 = vunpack.c.l.b16 %v4367
      %v4730 = vunpack.c.h.b16 %v4367
      %v4731 = vunpack.c.l.b16 %v4368
      %v4732 = vunpack.c.h.b16 %v4368
      %v4733 = vunpack.c.l.b16 %v4369
      %v4734 = vunpack.c.h.b16 %v4369
      %v4735 = vunpack.c.l.b16 %v4370
      %v4736 = vunpack.c.h.b16 %v4370
      %v4737 = vunpack.c.l.b16 %v4371
      %v4738 = vunpack.c.h.b16 %v4371
      %v4739 = vunpack.c.l.b16 %v4372
      %v4740 = vunpack.c.h.b16 %v4372
      %v4741 = vunpack.c.l.b16 %v4373
      %v4742 = vunpack.c.h.b16 %v4373
      %v4743 = vunpack.c.l.b16 %v4374
      %v4744 = vunpack.c.h.b16 %v4374
      %v4745 = vunpack.c.l.b16 %v4375
      %v4746 = vunpack.c.h.b16 %v4375
      %v4747 = vunpack.c.l.b16 %v4376
      %v4748 = vunpack.c.h.b16 %v4376
      %v4749 = vunpack.c.l.b16 %v4377
      %v4750 = vunpack.c.h.b16 %v4377
      %v4751 = vunpack.c.l.b16 %v4378
      %v4752 = vunpack.c.h.b16 %v4378
      %v4753 = vunpack.c.l.b16 %v4379
      %v4754 = vunpack.c.h.b16 %v4379
      %v4755 = vunpack.c.l.b16 %v4380
      %v4756 = vunpack.c.h.b16 %v4380
      %v4757 = vunpack.c.l.b16 %v4381
      %v4758 = vunpack.c.h.b16 %v4381
      %v4759 = vunpack.c.l.b16 %v4382
      %v4760 = vunpack.c.h.b16 %v4382
      %v4761 = vunpack.c.l.b16 %v4383
      %v4762 = vunpack.c.h.b16 %v4383
      %v4763 = vunpack.c.l.b16 %v4384
      %v4764 = vunpack.c.h.b16 %v4384
      %v4765 = vunpack.c.l.b16 %v4385
      %v4766 = vunpack.c.h.b16 %v4385
      %v4767 = vunpack.c.l.b16 %v4386
      %v4768 = vunpack.c.h.b16 %v4386
      %v4769 = vunpack.c.l.b16 %v4387
      %v4770 = vunpack.c.h.b16 %v4387
      %v4771 = vunpack.c.l.b16 %v4388
      %v4772 = vunpack.c.h.b16 %v4388
      %v4773 = vunpack.c.l.b16 %v4389
      %v4774 = vunpack.c.h.b16 %v4389
      %v4775 = vunpack.c.l.b16 %v4390
      %v4776 = vunpack.c.h.b16 %v4390
      %v4777 = vunpack.c.l.b16 %v4391
      %v4778 = vunpack.c.h.b16 %v4391
      %v4779 = vunpack.c.l.b16 %v4392
      %v4780 = vunpack.c.h.b16 %v4392
      %v4781 = vunpack.c.l.b16 %v4393
      %v4782 = vunpack.c.h.b16 %v4393
      %v4783 = vunpack.c.l.b16 %v4394
      %v4784 = vunpack.c.h.b16 %v4394
      %v4785 = vunpack.c.l.b16 %v4395
      %v4786 = vunpack.c.h.b16 %v4395
      %v4787 = vunpack.c.l.b16 %v4396
      %v4788 = vunpack.c.h.b16 %v4396
      %v4789 = vunpack.c.l.b16 %v4397
      %v4790 = vunpack.c.h.b16 %v4397
      %v4791 = vunpack.c.l.b16 %v4398
      %v4792 = vunpack.c.h.b16 %v4398
      %v4793 = vpack.c.b16 %v4541, %v4537
      %v4794 = vpack.c.b16 %v4542, %v4538
      %v4795 = vpack.c.b16 %v4543, %v4539
      %v4796 = vpack.c.b16 %v4544, %v4540
      %v4797 = vpack.c.b16 %v4549, %v4545
      %v4798 = vpack.c.b16 %v4550, %v4546
      %v4799 = vpack.c.b16 %v4551, %v4547
      %v4800 = vpack.c.b16 %v4552, %v4548
      %v4801 = vpack.c.b16 %v4557, %v4553
      %v4802 = vpack.c.b16 %v4558, %v4554
      %v4803 = vpack.c.b16 %v4559, %v4555
      %v4804 = vpack.c.b16 %v4560, %v4556
      %v4805 = vpack.c.b16 %v4565, %v4561
      %v4806 = vpack.c.b16 %v4566, %v4562
      %v4807 = vpack.c.b16 %v4567, %v4563
      %v4808 = vpack.c.b16 %v4568, %v4564
      %v4809 = vpack.c.b16 %v4573, %v4569
      %v4810 = vpack.c.b16 %v4574, %v4570
      %v4811 = vpack.c.b16 %v4575, %v4571
      %v4812 = vpack.c.b16 %v4576, %v4572
      %v4813 = vpack.c.b16 %v4581, %v4577
      %v4814 = vpack.c.b16 %v4582, %v4578
      %v4815 = vpack.c.b16 %v4583, %v4579
      %v4816 = vpack.c.b16 %v4584, %v4580
      %v4817 = vpack.c.b16 %v4589, %v4585
      %v4818 = vpack.c.b16 %v4590, %v4586
      %v4819 = vpack.c.b16 %v4591, %v4587
      %v4820 = vpack.c.b16 %v4592, %v4588
      %v4821 = vpack.c.b16 %v4597, %v4593
      %v4822 = vpack.c.b16 %v4598, %v4594
      %v4823 = vpack.c.b16 %v4599, %v4595
      %v4824 = vpack.c.b16 %v4600, %v4596
      %v4825 = vpack.c.b16 %v4605, %v4601
      %v4826 = vpack.c.b16 %v4606, %v4602
      %v4827 = vpack.c.b16 %v4607, %v4603
      %v4828 = vpack.c.b16 %v4608, %v4604
      %v4829 = vpack.c.b16 %v4613, %v4609
      %v4830 = vpack.c.b16 %v4614, %v4610
      %v4831 = vpack.c.b16 %v4615, %v4611
      %v4832 = vpack.c.b16 %v4616, %v4612
      %v4833 = vpack.c.b16 %v4621, %v4617
      %v4834 = vpack.c.b16 %v4622, %v4618
      %v4835 = vpack.c.b16 %v4623, %v4619
      %v4836 = vpack.c.b16 %v4624, %v4620
      %v4837 = vpack.c.b16 %v4629, %v4625
      %v4838 = vpack.c.b16 %v4630, %v4626
      %v4839 = vpack.c.b16 %v4631, %v4627
      %v4840 = vpack.c.b16 %v4632, %v4628
      %v4841 = vpack.c.b16 %v4637, %v4633
      %v4842 = vpack.c.b16 %v4638, %v4634
      %v4843 = vpack.c.b16 %v4639, %v4635
      %v4844 = vpack.c.b16 %v4640, %v4636
      %v4845 = vpack.c.b16 %v4645, %v4641
      %v4846 = vpack.c.b16 %v4646, %v4642
      %v4847 = vpack.c.b16 %v4647, %v4643
      %v4848 = vpack.c.b16 %v4648, %v4644
      %v4849 = vpack.c.b16 %v4653, %v4649
      %v4850 = vpack.c.b16 %v4654, %v4650
      %v4851 = vpack.c.b16 %v4655, %v4651
      %v4852 = vpack.c.b16 %v4656, %v4652
      %v4853 = vpack.c.b16 %v4661, %v4657
      %v4854 = vpack.c.b16 %v4662, %v4658
      %v4855 = vpack.c.b16 %v4663, %v4659
      %v4856 = vpack.c.b16 %v4664, %v4660
      %v4857 = vpack.c.b16 %v4669, %v4665
      %v4858 = vpack.c.b16 %v4670, %v4666
      %v4859 = vpack.c.b16 %v4671, %v4667
      %v4860 = vpack.c.b16 %v4672, %v4668
      %v4861 = vpack.c.b16 %v4677, %v4673
      %v4862 = vpack.c.b16 %v4678, %v4674
      %v4863 = vpack.c.b16 %v4679, %v4675
      %v4864 = vpack.c.b16 %v4680, %v4676
      %v4865 = vpack.c.b16 %v4685, %v4681
      %v4866 = vpack.c.b16 %v4686, %v4682
      %v4867 = vpack.c.b16 %v4687, %v4683
      %v4868 = vpack.c.b16 %v4688, %v4684
      %v4869 = vpack.c.b16 %v4693, %v4689
      %v4870 = vpack.c.b16 %v4694, %v4690
      %v4871 = vpack.c.b16 %v4695, %v4691
      %v4872 = vpack.c.b16 %v4696, %v4692
      %v4873 = vpack.c.b16 %v4701, %v4697
      %v4874 = vpack.c.b16 %v4702, %v4698
      %v4875 = vpack.c.b16 %v4703, %v4699
      %v4876 = vpack.c.b16 %v4704, %v4700
      %v4877 = vpack.c.b16 %v4709, %v4705
      %v4878 = vpack.c.b16 %v4710, %v4706
      %v4879 = vpack.c.b16 %v4711, %v4707
      %v4880 = vpack.c.b16 %v4712, %v4708
      %v4881 = vpack.c.b16 %v4717, %v4713
      %v4882 = vpack.c.b16 %v4718, %v4714
      %v4883 = vpack.c.b16 %v4719, %v4715
      %v4884 = vpack.c.b16 %v4720, %v4716
      %v4885 = vpack.c.b16 %v4725, %v4721
      %v4886 = vpack.c.b16 %v4726, %v4722
      %v4887 = vpack.c.b16 %v4727, %v4723
      %v4888 = vpack.c.b16 %v4728, %v4724
      %v4889 = vpack.c.b16 %v4733, %v4729
      %v4890 = vpack.c.b16 %v4734, %v4730
      %v4891 = vpack.c.b16 %v4735, %v4731
      %v4892 = vpack.c.b16 %v4736, %v4732
      %v4893 = vpack.c.b16 %v4741, %v4737
      %v4894 = vpack.c.b16 %v4742, %v4738
      %v4895 = vpack.c.b16 %v4743, %v4739
      %v4896 = vpack.c.b16 %v4744, %v4740
      %v4897 = vpack.c.b16 %v4749, %v4745
      %v4898 = vpack.c.b16 %v4750, %v4746
      %v4899 = vpack.c.b16 %v4751, %v4747
      %v4900 = vpack.c.b16 %v4752, %v4748
      %v4901 = vpack.c.b16 %v4757, %v4753
      %v4902 = vpack.c.b16 %v4758, %v4754
      %v4903 = vpack.c.b16 %v4759, %v4755
      %v4904 = vpack.c.b16 %v4760, %v4756
      %v4905 = vpack.c.b16 %v4765, %v4761
      %v4906 = vpack.c.b16 %v4766, %v4762
      %v4907 = vpack.c.b16 %v4767, %v4763
      %v4908 = vpack.c.b16 %v4768, %v4764
      %v4909 = vpack.c.b16 %v4773, %v4769
      %v4910 = vpack.c.b16 %v4774, %v4770
      %v4911 = vpack.c.b16 %v4775, %v4771
      %v4912 = vpack.c.b16 %v4776, %v4772
      %v4913 = vpack.c.b16 %v4781, %v4777
      %v4914 = vpack.c.b16 %v4782, %v4778
      %v4915 = vpack.c.b16 %v4783, %v4779
      %v4916 = vpack.c.b16 %v4784, %v4780
      %v4917 = vpack.c.b16 %v4789, %v4785
      %v4918 = vpack.c.b16 %v4790, %v4786
      %v4919 = vpack.c.b16 %v4791, %v4787
      %v4920 = vpack.c.b16 %v4792, %v4788
      %5049 = vmatpush.bf16.msra.mxu0 %v4821
      %5050 = vmatpush.bf16.msra.mxu0 %v4817
      %5051 = vmatpush.bf16.msra.mxu0 %v4813
      %5052 = vmatpush.bf16.msra.mxu0 %v4809
      %5053 = vmatpush.bf16.msra.mxu0 %v4805
      %5054 = vmatpush.bf16.msra.mxu0 %v4801
      %5055 = vmatpush.bf16.msra.mxu0 %v4797
      %5056 = vmatpush.bf16.msra.mxu0 %v4793
      %5057 = vmatmul.bf16.gmra.mxu0 %v4267
      %v5058 = vpop.f32.mrf.mxu0
      %v5059 = vadd.f32 %v4401, %v5058
      %v5060 = vpop.f32.mrf.mxu0
      %v5061 = vadd.f32 %v4401, %v5060
      %5062 = vdwg.mxu0
      %5063 = vmatpush.bf16.msra.mxu0 %v4853
      %5064 = vmatpush.bf16.msra.mxu0 %v4849
      %5065 = vmatpush.bf16.msra.mxu0 %v4845
      %5066 = vmatpush.bf16.msra.mxu0 %v4841
      %5067 = vmatpush.bf16.msra.mxu0 %v4837
      %5068 = vmatpush.bf16.msra.mxu0 %v4833
      %5069 = vmatpush.bf16.msra.mxu0 %v4829
      %5070 = vmatpush.bf16.msra.mxu0 %v4825
      %5071 = vmatmul.bf16.gmra.mxu0 %v4268
      %v5072 = vpop.f32.mrf.mxu0
      %v5073 = vadd.f32 %v5059, %v5072
      %v5074 = vpop.f32.mrf.mxu0
      %v5075 = vadd.f32 %v5061, %v5074
      %5076 = vdwg.mxu0
      %5077 = vmatpush.bf16.msra.mxu0 %v4885
      %5078 = vmatpush.bf16.msra.mxu0 %v4881
      %5079 = vmatpush.bf16.msra.mxu0 %v4877
      %5080 = vmatpush.bf16.msra.mxu0 %v4873
      %5081 = vmatpush.bf16.msra.mxu0 %v4869
      %5082 = vmatpush.bf16.msra.mxu0 %v4865
      %5083 = vmatpush.bf16.msra.mxu0 %v4861
      %5084 = vmatpush.bf16.msra.mxu0 %v4857
      %5085 = vmatmul.bf16.gmra.mxu0 %v4269
      %v5086 = vpop.f32.mrf.mxu0
      %v5087 = vadd.f32 %v5073, %v5086
      %v5088 = vpop.f32.mrf.mxu0
      %v5089 = vadd.f32 %v5075, %v5088
      %5090 = vdwg.mxu0
      %5091 = vmatpush.bf16.msra.mxu0 %v4917
      %5092 = vmatpush.bf16.msra.mxu0 %v4913
      %5093 = vmatpush.bf16.msra.mxu0 %v4909
      %5094 = vmatpush.bf16.msra.mxu0 %v4905
      %5095 = vmatpush.bf16.msra.mxu0 %v4901
      %5096 = vmatpush.bf16.msra.mxu0 %v4897
      %5097 = vmatpush.bf16.msra.mxu0 %v4893
      %5098 = vmatpush.bf16.msra.mxu0 %v4889
      %5099 = vmatmul.bf16.gmra.mxu0 %v4270
      %v5100 = vpop.f32.mrf.mxu0
      %v5101 = vadd.f32 %v5087, %v5100
      %v5102 = vpop.f32.mrf.mxu0
      %v5103 = vadd.f32 %v5089, %v5102
      %5104 = vdwg.mxu0
      %5105 = vmatpush.bf16.msra.mxu0 %v4822
      %5106 = vmatpush.bf16.msra.mxu0 %v4818
      %5107 = vmatpush.bf16.msra.mxu0 %v4814
      %5108 = vmatpush.bf16.msra.mxu0 %v4810
      %5109 = vmatpush.bf16.msra.mxu0 %v4806
      %5110 = vmatpush.bf16.msra.mxu0 %v4802
      %5111 = vmatpush.bf16.msra.mxu0 %v4798
      %5112 = vmatpush.bf16.msra.mxu0 %v4794
      %5113 = vmatmul.bf16.gmra.mxu0 %v4267
      %v5114 = vpop.f32.mrf.mxu0
      %v5115 = vadd.f32 %v4402, %v5114
      %v5116 = vpop.f32.mrf.mxu0
      %v5117 = vadd.f32 %v4402, %v5116
      %5118 = vdwg.mxu0
      %5119 = vmatpush.bf16.msra.mxu0 %v4854
      %5120 = vmatpush.bf16.msra.mxu0 %v4850
      %5121 = vmatpush.bf16.msra.mxu0 %v4846
      %5122 = vmatpush.bf16.msra.mxu0 %v4842
      %5123 = vmatpush.bf16.msra.mxu0 %v4838
      %5124 = vmatpush.bf16.msra.mxu0 %v4834
      %5125 = vmatpush.bf16.msra.mxu0 %v4830
      %5126 = vmatpush.bf16.msra.mxu0 %v4826
      %5127 = vmatmul.bf16.gmra.mxu0 %v4268
      %v5128 = vpop.f32.mrf.mxu0
      %v5129 = vadd.f32 %v5115, %v5128
      %v5130 = vpop.f32.mrf.mxu0
      %v5131 = vadd.f32 %v5117, %v5130
      %5132 = vdwg.mxu0
      %5133 = vmatpush.bf16.msra.mxu0 %v4886
      %5134 = vmatpush.bf16.msra.mxu0 %v4882
      %5135 = vmatpush.bf16.msra.mxu0 %v4878
      %5136 = vmatpush.bf16.msra.mxu0 %v4874
      %5137 = vmatpush.bf16.msra.mxu0 %v4870
      %5138 = vmatpush.bf16.msra.mxu0 %v4866
      %5139 = vmatpush.bf16.msra.mxu0 %v4862
      %5140 = vmatpush.bf16.msra.mxu0 %v4858
      %5141 = vmatmul.bf16.gmra.mxu0 %v4269
      %v5142 = vpop.f32.mrf.mxu0
      %v5143 = vadd.f32 %v5129, %v5142
      %v5144 = vpop.f32.mrf.mxu0
      %v5145 = vadd.f32 %v5131, %v5144
      %5146 = vdwg.mxu0
      %5147 = vmatpush.bf16.msra.mxu0 %v4918
      %5148 = vmatpush.bf16.msra.mxu0 %v4914
      %5149 = vmatpush.bf16.msra.mxu0 %v4910
      %5150 = vmatpush.bf16.msra.mxu0 %v4906
      %5151 = vmatpush.bf16.msra.mxu0 %v4902
      %5152 = vmatpush.bf16.msra.mxu0 %v4898
      %5153 = vmatpush.bf16.msra.mxu0 %v4894
      %5154 = vmatpush.bf16.msra.mxu0 %v4890
      %5155 = vmatmul.bf16.gmra.mxu0 %v4270
      %v5156 = vpop.f32.mrf.mxu0
      %v5157 = vadd.f32 %v5143, %v5156
      %v5158 = vpop.f32.mrf.mxu0
      %v5159 = vadd.f32 %v5145, %v5158
      %5160 = vdwg.mxu0
      %5161 = vmatpush.bf16.msra.mxu0 %v4823
      %5162 = vmatpush.bf16.msra.mxu0 %v4819
      %5163 = vmatpush.bf16.msra.mxu0 %v4815
      %5164 = vmatpush.bf16.msra.mxu0 %v4811
      %5165 = vmatpush.bf16.msra.mxu0 %v4807
      %5166 = vmatpush.bf16.msra.mxu0 %v4803
      %5167 = vmatpush.bf16.msra.mxu0 %v4799
      %5168 = vmatpush.bf16.msra.mxu0 %v4795
      %5169 = vmatmul.bf16.gmra.mxu0 %v4267
      %v5170 = vpop.f32.mrf.mxu0
      %v5171 = vadd.f32 %v4403, %v5170
      %v5172 = vpop.f32.mrf.mxu0
      %v5173 = vadd.f32 %v4403, %v5172
      %5174 = vdwg.mxu0
      %5175 = vmatpush.bf16.msra.mxu0 %v4855
      %5176 = vmatpush.bf16.msra.mxu0 %v4851
      %5177 = vmatpush.bf16.msra.mxu0 %v4847
      %5178 = vmatpush.bf16.msra.mxu0 %v4843
      %5179 = vmatpush.bf16.msra.mxu0 %v4839
      %5180 = vmatpush.bf16.msra.mxu0 %v4835
      %5181 = vmatpush.bf16.msra.mxu0 %v4831
      %5182 = vmatpush.bf16.msra.mxu0 %v4827
      %5183 = vmatmul.bf16.gmra.mxu0 %v4268
      %v5184 = vpop.f32.mrf.mxu0
      %v5185 = vadd.f32 %v5171, %v5184
      %v5186 = vpop.f32.mrf.mxu0
      %v5187 = vadd.f32 %v5173, %v5186
      %5188 = vdwg.mxu0
      %5189 = vmatpush.bf16.msra.mxu0 %v4887
      %5190 = vmatpush.bf16.msra.mxu0 %v4883
      %5191 = vmatpush.bf16.msra.mxu0 %v4879
      %5192 = vmatpush.bf16.msra.mxu0 %v4875
      %5193 = vmatpush.bf16.msra.mxu0 %v4871
      %5194 = vmatpush.bf16.msra.mxu0 %v4867
      %5195 = vmatpush.bf16.msra.mxu0 %v4863
      %5196 = vmatpush.bf16.msra.mxu0 %v4859
      %5197 = vmatmul.bf16.gmra.mxu0 %v4269
      %v5198 = vpop.f32.mrf.mxu0
      %v5199 = vadd.f32 %v5185, %v5198
      %v5200 = vpop.f32.mrf.mxu0
      %v5201 = vadd.f32 %v5187, %v5200
      %5202 = vdwg.mxu0
      %5203 = vmatpush.bf16.msra.mxu0 %v4919
      %5204 = vmatpush.bf16.msra.mxu0 %v4915
      %5205 = vmatpush.bf16.msra.mxu0 %v4911
      %5206 = vmatpush.bf16.msra.mxu0 %v4907
      %5207 = vmatpush.bf16.msra.mxu0 %v4903
      %5208 = vmatpush.bf16.msra.mxu0 %v4899
      %5209 = vmatpush.bf16.msra.mxu0 %v4895
      %5210 = vmatpush.bf16.msra.mxu0 %v4891
      %5211 = vmatmul.bf16.gmra.mxu0 %v4270
      %v5212 = vpop.f32.mrf.mxu0
      %v5213 = vadd.f32 %v5199, %v5212
      %v5214 = vpop.f32.mrf.mxu0
      %v5215 = vadd.f32 %v5201, %v5214
      %5216 = vdwg.mxu0
      %5217 = vmatpush.bf16.msra.mxu0 %v4824
      %5218 = vmatpush.bf16.msra.mxu0 %v4820
      %5219 = vmatpush.bf16.msra.mxu0 %v4816
      %5220 = vmatpush.bf16.msra.mxu0 %v4812
      %5221 = vmatpush.bf16.msra.mxu0 %v4808
      %5222 = vmatpush.bf16.msra.mxu0 %v4804
      %5223 = vmatpush.bf16.msra.mxu0 %v4800
      %5224 = vmatpush.bf16.msra.mxu0 %v4796
      %5225 = vmatmul.bf16.gmra.mxu0 %v4267
      %v5226 = vpop.f32.mrf.mxu0
      %v5227 = vadd.f32 %v4404, %v5226
      %v5228 = vpop.f32.mrf.mxu0
      %v5229 = vadd.f32 %v4404, %v5228
      %5230 = vdwg.mxu0
      %5231 = vmatpush.bf16.msra.mxu0 %v4856
      %5232 = vmatpush.bf16.msra.mxu0 %v4852
      %5233 = vmatpush.bf16.msra.mxu0 %v4848
      %5234 = vmatpush.bf16.msra.mxu0 %v4844
      %5235 = vmatpush.bf16.msra.mxu0 %v4840
      %5236 = vmatpush.bf16.msra.mxu0 %v4836
      %5237 = vmatpush.bf16.msra.mxu0 %v4832
      %5238 = vmatpush.bf16.msra.mxu0 %v4828
      %5239 = vmatmul.bf16.gmra.mxu0 %v4268
      %v5240 = vpop.f32.mrf.mxu0
      %v5241 = vadd.f32 %v5227, %v5240
      %v5242 = vpop.f32.mrf.mxu0
      %v5243 = vadd.f32 %v5229, %v5242
      %5244 = vdwg.mxu0
      %5245 = vmatpush.bf16.msra.mxu0 %v4888
      %5246 = vmatpush.bf16.msra.mxu0 %v4884
      %5247 = vmatpush.bf16.msra.mxu0 %v4880
      %5248 = vmatpush.bf16.msra.mxu0 %v4876
      %5249 = vmatpush.bf16.msra.mxu0 %v4872
      %5250 = vmatpush.bf16.msra.mxu0 %v4868
      %5251 = vmatpush.bf16.msra.mxu0 %v4864
      %5252 = vmatpush.bf16.msra.mxu0 %v4860
      %5253 = vmatmul.bf16.gmra.mxu0 %v4269
      %v5254 = vpop.f32.mrf.mxu0
      %v5255 = vadd.f32 %v5241, %v5254
      %v5256 = vpop.f32.mrf.mxu0
      %v5257 = vadd.f32 %v5243, %v5256
      %5258 = vdwg.mxu0
      %5259 = vmatpush.bf16.msra.mxu0 %v4920
      %5260 = vmatpush.bf16.msra.mxu0 %v4916
      %5261 = vmatpush.bf16.msra.mxu0 %v4912
      %5262 = vmatpush.bf16.msra.mxu0 %v4908
      %5263 = vmatpush.bf16.msra.mxu0 %v4904
      %5264 = vmatpush.bf16.msra.mxu0 %v4900
      %5265 = vmatpush.bf16.msra.mxu0 %v4896
      %5266 = vmatpush.bf16.msra.mxu0 %v4892
      %5267 = vmatmul.bf16.gmra.mxu0 %v4270
      %v5268 = vpop.f32.mrf.mxu0
      %v5269 = vadd.f32 %v5255, %v5268
      %v5270 = vpop.f32.mrf.mxu0
      %v5271 = vadd.f32 %v5257, %v5270
      %5272 = vdwg.mxu0
      %v5273 = vmax.f32 %v5101, 0.0
      %v5274 = vmax.f32 %v5157, 0.0
      %v5275 = vmax.f32 %v5213, 0.0
      %v5276 = vmax.f32 %v5269, 0.0
      %v5277 = vmax.f32 %v5103, 0.0
      %v5278 = vmax.f32 %v5159, 0.0
      %v5279 = vmax.f32 %v5215, 0.0
      %v5280 = vmax.f32 %v5271, 0.0
      %v5281 = vpack.c.bf16 %v5277, %v5273
      %v5282 = vpack.c.bf16 %v5278, %v5274
      %v5283 = vpack.c.bf16 %v5279, %v5275
      %v5284 = vpack.c.bf16 %v5280, %v5276
      %v5285 = vld [vmem:[#allocation12] sm:$0xf]
      %v5286 = vld [vmem:[#allocation12 + $0x4] sm:$0xf]
      %v5287 = vld [vmem:[#allocation12 + $0x8] sm:$0xf]
      %v5288 = vld [vmem:[#allocation12 + $0xc] sm:$0xf]
      %v5289 = vld [vmem:[#allocation12 + $0x10] sm:$0xf]
      %v5290 = vld [vmem:[#allocation12 + $0x14] sm:$0xf]
      %v5291 = vld [vmem:[#allocation12 + $0x18] sm:$0xf]
      %v5292 = vld [vmem:[#allocation12 + $0x1c] sm:$0xf]
      %v5293 = vld [vmem:[#allocation12 + $0x20] sm:$0xf]
      %v5294 = vld [vmem:[#allocation12 + $0x24] sm:$0xf]
      %v5295 = vld [vmem:[#allocation12 + $0x28] sm:$0xf]
      %v5296 = vld [vmem:[#allocation12 + $0x2c] sm:$0xf]
      %v5297 = vld [vmem:[#allocation12 + $0x30] sm:$0xf]
      %v5298 = vld [vmem:[#allocation12 + $0x34] sm:$0xf]
      %v5299 = vld [vmem:[#allocation12 + $0x38] sm:$0xf]
      %v5300 = vld [vmem:[#allocation12 + $0x3c] sm:$0xf]
      %v5301 = vld [vmem:[#allocation12 + $0x40] sm:$0xf]
      %v5302 = vld [vmem:[#allocation12 + $0x44] sm:$0xf]
      %v5303 = vld [vmem:[#allocation12 + $0x48] sm:$0xf]
      %v5304 = vld [vmem:[#allocation12 + $0x4c] sm:$0xf]
      %v5305 = vld [vmem:[#allocation12 + $0x50] sm:$0xf]
      %v5306 = vld [vmem:[#allocation12 + $0x54] sm:$0xf]
      %v5307 = vld [vmem:[#allocation12 + $0x58] sm:$0xf]
      %v5308 = vld [vmem:[#allocation12 + $0x5c] sm:$0xf]
      %v5309 = vld [vmem:[#allocation12 + $0x60] sm:$0xf]
      %v5310 = vld [vmem:[#allocation12 + $0x64] sm:$0xf]
      %v5311 = vld [vmem:[#allocation12 + $0x68] sm:$0xf]
      %v5312 = vld [vmem:[#allocation12 + $0x6c] sm:$0xf]
      %v5313 = vld [vmem:[#allocation12 + $0x70] sm:$0xf]
      %v5314 = vld [vmem:[#allocation12 + $0x74] sm:$0xf]
      %v5315 = vld [vmem:[#allocation12 + $0x78] sm:$0xf]
      %v5316 = vld [vmem:[#allocation12 + $0x7c] sm:$0xf]
      %v5317 = vld [vmem:[#allocation12 + $0x80] sm:$0xf]
      %v5318 = vld [vmem:[#allocation12 + $0x84] sm:$0xf]
      %v5319 = vld [vmem:[#allocation12 + $0x88] sm:$0xf]
      %v5320 = vld [vmem:[#allocation12 + $0x8c] sm:$0xf]
      %v5321 = vld [vmem:[#allocation12 + $0x90] sm:$0xf]
      %v5322 = vld [vmem:[#allocation12 + $0x94] sm:$0xf]
      %v5323 = vld [vmem:[#allocation12 + $0x98] sm:$0xf]
      %v5324 = vld [vmem:[#allocation12 + $0x9c] sm:$0xf]
      %v5325 = vld [vmem:[#allocation12 + $0xa0] sm:$0xf]
      %v5326 = vld [vmem:[#allocation12 + $0xa4] sm:$0xf]
      %v5327 = vld [vmem:[#allocation12 + $0xa8] sm:$0xf]
      %v5328 = vld [vmem:[#allocation12 + $0xac] sm:$0xf]
      %v5329 = vld [vmem:[#allocation12 + $0xb0] sm:$0xf]
      %v5330 = vld [vmem:[#allocation12 + $0xb4] sm:$0xf]
      %v5331 = vld [vmem:[#allocation12 + $0xb8] sm:$0xf]
      %v5332 = vld [vmem:[#allocation12 + $0xbc] sm:$0xf]
      %v5333 = vld [vmem:[#allocation12 + $0xc0] sm:$0xf]
      %v5334 = vld [vmem:[#allocation12 + $0xc4] sm:$0xf]
      %v5335 = vld [vmem:[#allocation12 + $0xc8] sm:$0xf]
      %v5336 = vld [vmem:[#allocation12 + $0xcc] sm:$0xf]
      %v5337 = vld [vmem:[#allocation12 + $0xd0] sm:$0xf]
      %v5338 = vld [vmem:[#allocation12 + $0xd4] sm:$0xf]
      %v5339 = vld [vmem:[#allocation12 + $0xd8] sm:$0xf]
      %v5340 = vld [vmem:[#allocation12 + $0xdc] sm:$0xf]
      %v5341 = vld [vmem:[#allocation12 + $0xe0] sm:$0xf]
      %v5342 = vld [vmem:[#allocation12 + $0xe4] sm:$0xf]
      %v5343 = vld [vmem:[#allocation12 + $0xe8] sm:$0xf]
      %v5344 = vld [vmem:[#allocation12 + $0xec] sm:$0xf]
      %v5345 = vld [vmem:[#allocation12 + $0xf0] sm:$0xf]
      %v5346 = vld [vmem:[#allocation12 + $0xf4] sm:$0xf]
      %v5347 = vld [vmem:[#allocation12 + $0xf8] sm:$0xf]
      %v5348 = vld [vmem:[#allocation12 + $0xfc] sm:$0xf]
      %v5349 = vld [vmem:[#allocation14] sm:$0x1]
      %v5351 = vperm.slane %v5349, 0
      %v5417 = vunpack.c.l.b16 %v5285
      %v5418 = vunpack.c.l.b16 %v5286
      %v5419 = vunpack.c.l.b16 %v5287
      %v5420 = vunpack.c.l.b16 %v5288
      %v5421 = vunpack.c.l.b16 %v5289
      %v5422 = vunpack.c.l.b16 %v5290
      %v5423 = vunpack.c.l.b16 %v5291
      %v5424 = vunpack.c.l.b16 %v5292
      %v5425 = vunpack.c.l.b16 %v5293
      %v5426 = vunpack.c.l.b16 %v5294
      %v5427 = vunpack.c.l.b16 %v5295
      %v5428 = vunpack.c.l.b16 %v5296
      %v5429 = vunpack.c.l.b16 %v5297
      %v5430 = vunpack.c.l.b16 %v5298
      %v5431 = vunpack.c.l.b16 %v5299
      %v5432 = vunpack.c.l.b16 %v5300
      %v5433 = vunpack.c.l.b16 %v5301
      %v5434 = vunpack.c.l.b16 %v5302
      %v5435 = vunpack.c.l.b16 %v5303
      %v5436 = vunpack.c.l.b16 %v5304
      %v5437 = vunpack.c.l.b16 %v5305
      %v5438 = vunpack.c.l.b16 %v5306
      %v5439 = vunpack.c.l.b16 %v5307
      %v5440 = vunpack.c.l.b16 %v5308
      %v5441 = vunpack.c.l.b16 %v5309
      %v5442 = vunpack.c.l.b16 %v5310
      %v5443 = vunpack.c.l.b16 %v5311
      %v5444 = vunpack.c.l.b16 %v5312
      %v5445 = vunpack.c.l.b16 %v5313
      %v5446 = vunpack.c.l.b16 %v5314
      %v5447 = vunpack.c.l.b16 %v5315
      %v5448 = vunpack.c.l.b16 %v5316
      %v5449 = vunpack.c.l.b16 %v5317
      %v5450 = vunpack.c.l.b16 %v5318
      %v5451 = vunpack.c.l.b16 %v5319
      %v5452 = vunpack.c.l.b16 %v5320
      %v5453 = vunpack.c.l.b16 %v5321
      %v5454 = vunpack.c.l.b16 %v5322
      %v5455 = vunpack.c.l.b16 %v5323
      %v5456 = vunpack.c.l.b16 %v5324
      %v5457 = vunpack.c.l.b16 %v5325
      %v5458 = vunpack.c.l.b16 %v5326
      %v5459 = vunpack.c.l.b16 %v5327
      %v5460 = vunpack.c.l.b16 %v5328
      %v5461 = vunpack.c.l.b16 %v5329
      %v5462 = vunpack.c.l.b16 %v5330
      %v5463 = vunpack.c.l.b16 %v5331
      %v5464 = vunpack.c.l.b16 %v5332
      %v5465 = vunpack.c.l.b16 %v5333
      %v5466 = vunpack.c.l.b16 %v5334
      %v5467 = vunpack.c.l.b16 %v5335
      %v5468 = vunpack.c.l.b16 %v5336
      %v5469 = vunpack.c.l.b16 %v5337
      %v5470 = vunpack.c.l.b16 %v5338
      %v5471 = vunpack.c.l.b16 %v5339
      %v5472 = vunpack.c.l.b16 %v5340
      %v5473 = vunpack.c.l.b16 %v5341
      %v5474 = vunpack.c.l.b16 %v5342
      %v5475 = vunpack.c.l.b16 %v5343
      %v5476 = vunpack.c.l.b16 %v5344
      %v5477 = vunpack.c.l.b16 %v5345
      %v5478 = vunpack.c.l.b16 %v5346
      %v5479 = vunpack.c.l.b16 %v5347
      %v5480 = vunpack.c.l.b16 %v5348
      %v5481 = vpack.c.b16 %v5418, %v5417
      %v5482 = vpack.c.b16 %v5420, %v5419
      %v5483 = vpack.c.b16 %v5422, %v5421
      %v5484 = vpack.c.b16 %v5424, %v5423
      %v5485 = vpack.c.b16 %v5426, %v5425
      %v5486 = vpack.c.b16 %v5428, %v5427
      %v5487 = vpack.c.b16 %v5430, %v5429
      %v5488 = vpack.c.b16 %v5432, %v5431
      %v5489 = vpack.c.b16 %v5434, %v5433
      %v5490 = vpack.c.b16 %v5436, %v5435
      %v5491 = vpack.c.b16 %v5438, %v5437
      %v5492 = vpack.c.b16 %v5440, %v5439
      %v5493 = vpack.c.b16 %v5442, %v5441
      %v5494 = vpack.c.b16 %v5444, %v5443
      %v5495 = vpack.c.b16 %v5446, %v5445
      %v5496 = vpack.c.b16 %v5448, %v5447
      %v5497 = vpack.c.b16 %v5450, %v5449
      %v5498 = vpack.c.b16 %v5452, %v5451
      %v5499 = vpack.c.b16 %v5454, %v5453
      %v5500 = vpack.c.b16 %v5456, %v5455
      %v5501 = vpack.c.b16 %v5458, %v5457
      %v5502 = vpack.c.b16 %v5460, %v5459
      %v5503 = vpack.c.b16 %v5462, %v5461
      %v5504 = vpack.c.b16 %v5464, %v5463
      %v5505 = vpack.c.b16 %v5466, %v5465
      %v5506 = vpack.c.b16 %v5468, %v5467
      %v5507 = vpack.c.b16 %v5470, %v5469
      %v5508 = vpack.c.b16 %v5472, %v5471
      %v5509 = vpack.c.b16 %v5474, %v5473
      %v5510 = vpack.c.b16 %v5476, %v5475
      %v5511 = vpack.c.b16 %v5478, %v5477
      %v5512 = vpack.c.b16 %v5480, %v5479
      %5545 = vmatpush.bf16.msra.mxu0 %v5488
      %5546 = vmatpush.bf16.msra.mxu0 %v5487
      %5547 = vmatpush.bf16.msra.mxu0 %v5486
      %5548 = vmatpush.bf16.msra.mxu0 %v5485
      %5549 = vmatpush.bf16.msra.mxu0 %v5484
      %5550 = vmatpush.bf16.msra.mxu0 %v5483
      %5551 = vmatpush.bf16.msra.mxu0 %v5482
      %5552 = vmatpush.bf16.msra.mxu0 %v5481
      %5553 = vmatmul.bf16.gmra.mxu0 %v5281
      %v5554 = vpop.f32.mrf.mxu0
      %v5555 = vadd.f32 %v5351, %v5554
      %v5556 = vpop.f32.mrf.mxu0
      %v5557 = vadd.f32 %v5351, %v5556
      %5558 = vdwg.mxu0
      %5559 = vmatpush.bf16.msra.mxu0 %v5496
      %5560 = vmatpush.bf16.msra.mxu0 %v5495
      %5561 = vmatpush.bf16.msra.mxu0 %v5494
      %5562 = vmatpush.bf16.msra.mxu0 %v5493
      %5563 = vmatpush.bf16.msra.mxu0 %v5492
      %5564 = vmatpush.bf16.msra.mxu0 %v5491
      %5565 = vmatpush.bf16.msra.mxu0 %v5490
      %5566 = vmatpush.bf16.msra.mxu0 %v5489
      %5567 = vmatmul.bf16.gmra.mxu0 %v5282
      %v5568 = vpop.f32.mrf.mxu0
      %v5569 = vadd.f32 %v5555, %v5568
      %v5570 = vpop.f32.mrf.mxu0
      %v5571 = vadd.f32 %v5557, %v5570
      %5572 = vdwg.mxu0
      %5573 = vmatpush.bf16.msra.mxu0 %v5504
      %5574 = vmatpush.bf16.msra.mxu0 %v5503
      %5575 = vmatpush.bf16.msra.mxu0 %v5502
      %5576 = vmatpush.bf16.msra.mxu0 %v5501
      %5577 = vmatpush.bf16.msra.mxu0 %v5500
      %5578 = vmatpush.bf16.msra.mxu0 %v5499
      %5579 = vmatpush.bf16.msra.mxu0 %v5498
      %5580 = vmatpush.bf16.msra.mxu0 %v5497
      %5581 = vmatmul.bf16.gmra.mxu0 %v5283
      %v5582 = vpop.f32.mrf.mxu0
      %v5583 = vadd.f32 %v5569, %v5582
      %v5584 = vpop.f32.mrf.mxu0
      %v5585 = vadd.f32 %v5571, %v5584
      %5586 = vdwg.mxu0
      %5587 = vmatpush.bf16.msra.mxu0 %v5512
      %5588 = vmatpush.bf16.msra.mxu0 %v5511
      %5589 = vmatpush.bf16.msra.mxu0 %v5510
      %5590 = vmatpush.bf16.msra.mxu0 %v5509
      %5591 = vmatpush.bf16.msra.mxu0 %v5508
      %5592 = vmatpush.bf16.msra.mxu0 %v5507
      %5593 = vmatpush.bf16.msra.mxu0 %v5506
      %5594 = vmatpush.bf16.msra.mxu0 %v5505
      %5595 = vmatmul.bf16.gmra.mxu0 %v5284
      %v5596 = vpop.f32.mrf.mxu0
      %v5597 = vadd.f32 %v5583, %v5596
      %v5598 = vpop.f32.mrf.mxu0
      %v5599 = vadd.f32 %v5585, %v5598
      %5600 = vdwg.mxu0
      %5601 = vst [vmem:[#allocation15] sm:$0xff] %v5597
      %5602 = vst [vmem:[#allocation15 + $0x8] sm:$0xff] %v5599
    $region65: #{tpu_custom_call.1} parent=1 // pred_fallthru
      _
    // Predicated region
    $region66: #{tpu_custom_call.1} parent=1 // pred_check
      _
    $region67: #{tpu_custom_call.1} parent=1 // pred_check_branch
      %5604 = sbr.rel (0) target = $region69
    $region68: #{tpu_custom_call.1} parent=1 // pred_region
      %5606 = vsyncadd [#allocation5], 0
      %s5607 = sshll.u32 [#allocation15], 4
      %s5608 = int_to_ptr.vmem [resolvable:$true] %s5607
      %s5609 = sshll.u32 %s7, 4
      %s5610 = int_to_ptr.hbm [resolvable:$true] %s5609
      %5615 = dma.vmem_to_hbm [thread:$0]  %s5608, 256, %s5610, [#allocation5], 128, 128, 8
    $region69: #{tpu_custom_call.1} parent=1 // pred_fallthru
      _
    // Predicated region
    $region70: #{tpu_custom_call.1} parent=1 // pred_check
      _
    $region71: #{tpu_custom_call.1} parent=1 // pred_check_branch
      %5617 = sbr.rel (0) target = $region73
    $region72: #{tpu_custom_call.1} parent=1 // pred_region
      %5619 = dma.done [#allocation5], 256
    $region73: #{tpu_custom_call.1} parent=1 // pred_fallthru
      _
    %5620 = vsyncpa [#allocation4], 1
    %5621 = vsyncpa [#allocation7], 1
    %5622 = vsyncpa [#allocation10], 1
    %5623 = vsyncpa [#allocation13], 1
    %5624 = vsyncpa [#allocation5], 1

</llo_original>
